<compile_context>
chip_gen: v6e
topology: v6e:2x2x1
jax: 0.10.0
libtpu: 0.0.40
codegen_flags: <defaults>
</compile_context>

<pallas_src>
import jax
import jax.numpy as jnp
from jax import lax
from jax.experimental import pallas as pl
from jax.experimental.pallas import tpu as pltpu


# ----------------------------- fused forward --------------------------------
def cnn_forward(x_nchw, params):
    N, C0, H, W = x_nchw.shape
    C1 = params["b1"].shape[0]
    C2 = params["b2"].shape[0]
    M = params["bfc"].shape[0]
    H2, W2 = H // 2, W // 2
    H4, W4 = H // 4, W // 4
    S4 = H4 * W4

    # ---- flat, padded stage-1 coordinate system (row stride WP) ------------
    WP = W + 2                        # padded row stride (explicit zero cols)
    S1 = H * WP                       # conv1 / dilated-pool1 flat extent
    P1LEN = (H + 2) * WP + 4          # padded image (taps read <= 2*WP+2+S1)
    Y1LEN = S1 + WP + 2               # conv1-output stage (pool1 reads +WP+1)
    MARG = 2 * WP + 2                 # zero margin before dilated pool1 data
    VD1LEN = S1 + 4 * WP + 4          # dilated pool1 (conv2 taps read +4*WP+4)
    N2 = S1                           # conv2 output extent (same dilated coords)
    Y2LEN = S1 + 2 * WP + 2           # conv2-output stage (pool2 reads +2*WP+2)
    TD2 = 4 * WP * (H4 - 1) + 4 * (W4 - 1) + 4   # pool2-output extent (dilated)

    # ---- tiny host-built constants ------------------------------------------
    # valid pool1 top-left lanes in the dilated layout: even row, even col < W
    s = jnp.arange(S1)
    mask1 = (((s % (2 * WP)) < 2 * W2) & ((s % 2) == 0)
             ).astype(jnp.float32).reshape(1, S1)
    # 0/1 matrix compacting pool2 output (dilated lanes) to h4*W4 + w4 order
    h4 = jnp.arange(H4)
    w4 = jnp.arange(W4)
    src = (4 * WP * h4[:, None] + 4 * w4[None, :]).reshape(-1)        # (S4,)
    g2 = (jnp.arange(TD2)[:, None] == src[None, :]).astype(jnp.float32)

    # ---- weight-side prep only (activations never leave the kernel) ---------
    w1m = params["w1"].reshape(9 * C0, C1).T          # (C1, 9*C0), (ky,kx,cin)
    w2m = params["w2"].reshape(9 * C1, C2).T          # (C2, 9*C1)
    b1 = params["b1"].reshape(C1, 1)
    b2 = params["b2"].reshape(C2, 1)
    wfc = params["wfc"]                               # (C2*S4, M), rows (c,h,w)
    bfc = params["bfc"].reshape(1, M)

    x_flat = x_nchw.reshape(N, C0, H * W)             # free reshape, stays NCHW

    def kernel(x_ref, w1_ref, b1_ref, w2_ref, b2_ref, wfc_ref, bfc_ref,
               m1_ref, g2_ref, o_ref,
               pad1, col1, ys1, vd1, col2, ys2, pfl):
        f32 = jnp.float32

        # ---- stage 1: image -> zero-padded flat layout (C0, (H+2)*WP) ----
        # Full zeroing of this buffer is only ~C0 sublanes x ~P1LEN lanes of
        # masked stores (a few KiB) -- cheaper than surgical halo zeroing.
        pad1[...] = jnp.zeros_like(pad1)
        xim = x_ref[0]                                  # (C0, H*W)
        for h in range(H):
            dst = (h + 1) * WP + 1
            pad1[:, dst:dst + W] = xim[:, h * W:(h + 1) * W]

        # ---- conv1: one im2col matmul, K = 9*C0 (taps = lane-offset slices)
        for ky in range(3):
            for kx in range(3):
                t = 3 * ky + kx
                off = ky * WP + kx
                col1[C0 * t:C0 * (t + 1), :] = pad1[:, off:off + S1]
        y1 = jnp.dot(w1_ref[...], col1[...], preferred_element_type=f32)
        y1 = jnp.maximum(y1 + b1_ref[...], 0.0)          # (C1, S1)

        # ---- pool1 2x2/2: shifted-slice max, then zero every junk lane ----
        ys1[:, 0:S1] = y1
        ys1[:, S1:] = jnp.zeros((C1, Y1LEN - S1), f32)
        v1 = jnp.maximum(
            jnp.maximum(ys1[:, 0:S1], ys1[:, 1:S1 + 1]),
            jnp.maximum(ys1[:, WP:S1 + WP], ys1[:, WP + 1:S1 + WP + 1]))
        # keep only valid pool windows; everything else becomes an exact 0,
        # which doubles as conv2's zero padding in this dilated layout.
        v1 = jnp.where(m1_ref[...] > 0.5, v1, 0.0)

        # dilated pool1 output with zero margins feeds conv2 directly
        vd1[:, 0:MARG] = jnp.zeros((C1, MARG), f32)
        vd1[:, MARG:MARG + S1] = v1
        vd1[:, MARG + S1:] = jnp.zeros((C1, VD1LEN - MARG - S1), f32)

        # ---- conv2: one im2col matmul over the dilated layout, K = 9*C1 ----
        for ky in range(3):
            for kx in range(3):
                t = 3 * ky + kx
                off = 2 * WP * ky + 2 * kx
                col2[C1 * t:C1 * (t + 1), :] = vd1[:, off:off + N2]
        y2 = jnp.dot(w2_ref[...], col2[...], preferred_element_type=f32)
        y2 = jnp.maximum(y2 + b2_ref[...], 0.0)          # (C2, N2)

        # ---- pool2 2x2/2 + compaction to (c, h4*W4+w4) via one 0/1 matmul --
        ys2[:, 0:N2] = y2
        ys2[:, N2:] = jnp.zeros((C2, Y2LEN - N2), f32)
        v2 = jnp.maximum(
            jnp.maximum(ys2[:, 0:TD2], ys2[:, 2:TD2 + 2]),
            jnp.maximum(ys2[:, 2 * WP:TD2 + 2 * WP],
                        ys2[:, 2 * WP + 2:TD2 + 2 * WP + 2]))
        p2 = jnp.dot(v2, g2_ref[...], preferred_element_type=f32)   # (C2, S4)

        # ---- fc: flatten (C2, S4) -> (1, C2*S4) in torch (c,h,w) order,
        #      then ONE matmul (replaces the old 64-step accumulation loop).
        for c in range(C2):
            pfl[:, c * S4:(c + 1) * S4] = p2[c:c + 1, :]
        out = jnp.dot(pfl[...], wfc_ref[...],
                      preferred_element_type=f32) + bfc_ref[...]
        o_ref[...] = out.reshape(o_ref.shape)

    out = pl.pallas_call(
        kernel,
        out_shape=jax.ShapeDtypeStruct((N, 1, M), jnp.float32),
        grid=(N,),
        in_specs=[
            pl.BlockSpec((1, C0, H * W), lambda n: (n, 0, 0)),
            pl.BlockSpec((C1, 9 * C0), lambda n: (0, 0)),
            pl.BlockSpec((C1, 1), lambda n: (0, 0)),
            pl.BlockSpec((C2, 9 * C1), lambda n: (0, 0)),
            pl.BlockSpec((C2, 1), lambda n: (0, 0)),
            pl.BlockSpec((C2 * S4, M), lambda n: (0, 0)),
            pl.BlockSpec((1, M), lambda n: (0, 0)),
            pl.BlockSpec((1, S1), lambda n: (0, 0)),
            pl.BlockSpec((TD2, S4), lambda n: (0, 0)),
        ],
        out_specs=pl.BlockSpec((1, 1, M), lambda n: (n, 0, 0)),
        scratch_shapes=[
            pltpu.VMEM((C0, P1LEN), jnp.float32),       # padded image (flat)
            pltpu.VMEM((9 * C0, S1), jnp.float32),      # im2col, stage 1
            pltpu.VMEM((C1, Y1LEN), jnp.float32),       # conv1-output stage
            pltpu.VMEM((C1, VD1LEN), jnp.float32),      # dilated pool1 output
            pltpu.VMEM((9 * C1, N2), jnp.float32),      # im2col, stage 2
            pltpu.VMEM((C2, Y2LEN), jnp.float32),       # conv2-output stage
            pltpu.VMEM((1, C2 * S4), jnp.float32),      # flattened pool2 output
        ],
        compiler_params=pltpu.CompilerParams(
            dimension_semantics=("parallel",),
            vmem_limit_bytes=32 * 1024 * 1024),
    )(x_flat, w1m, b1, w2m, b2, wfc, bfc, mask1, g2)
    return out.reshape(N, M)


# ----------------------------- reference (pure JAX) -------------------------
def cnn_reference(x_nchw, params):
    def conv(x, w_hwio, b):
        w_oihw = jnp.transpose(w_hwio, (3, 2, 0, 1))
        y = lax.conv_general_dilated(
            x, w_oihw, (1, 1), ((1, 1), (1, 1)),
            dimension_numbers=("NCHW", "OIHW", "NCHW"))
        return jax.nn.relu(y + b[None, :, None, None])

    def pool(x):
        return lax.reduce_window(x, -jnp.inf, lax.max,
                                 (1, 1, 2, 2), (1, 1, 2, 2), "VALID")

    x = pool(conv(x_nchw, params["w1"], params["b1"]))
    x = pool(conv(x, params["w2"], params["b2"]))
    x = x.reshape(x.shape[0], -1)
    return x @ params["wfc"] + params["bfc"]


def init_params(key, in_channels, num_classes):
    ks = jax.random.split(key, 6)
    return dict(
        w1=jax.random.normal(ks[0], (3, 3, in_channels, 8), jnp.float32) * 0.1,
        b1=jax.random.normal(ks[1], (8,), jnp.float32) * 0.1,
        w2=jax.random.normal(ks[2], (3, 3, 8, 16), jnp.float32) * 0.1,
        b2=jax.random.normal(ks[3], (16,), jnp.float32) * 0.1,
        wfc=jax.random.normal(ks[4], (16 * 8 * 8, num_classes),
                              jnp.float32) * 0.05,
        bfc=jax.random.normal(ks[5], (num_classes,), jnp.float32) * 0.05,
    )


if __name__ == "__main__":
    in_channels, num_classes = 3, 10
    N, H, W = 2, 32, 32       # fc1 expects 16*8*8 features => 32x32 input

    key = jax.random.PRNGKey(0)
    kx, kp = jax.random.split(key)
    x = jax.random.normal(kx, (N, in_channels, H, W), jnp.float32)
    params = init_params(kp, in_channels, num_classes)

    fwd = jax.jit(cnn_forward)
    out = jax.block_until_ready(fwd(x, params))
    ref = jax.block_until_ready(cnn_reference(x, params))

    assert out.shape == (N, num_classes)
    if not jnp.allclose(out, ref, atol=1e-3, rtol=1e-3):
        raise AssertionError("Pallas CNN output mismatch vs JAX reference")
    print("KERNEL_OK")
</pallas_src>

<mosaic_0001>
module attributes {stable_mosaic.version = 11 : i64} {
  func.func @kernel(%arg0: i32, %arg1: memref<1x3x1024xf32, #tpu.memory_space<vmem>>, %arg2: memref<8x27xf32, #tpu.memory_space<vmem>>, %arg3: memref<8x1xf32, #tpu.memory_space<vmem>>, %arg4: memref<16x72xf32, #tpu.memory_space<vmem>>, %arg5: memref<16x1xf32, #tpu.memory_space<vmem>>, %arg6: memref<1024x10xf32, #tpu.memory_space<vmem>>, %arg7: memref<1x10xf32, #tpu.memory_space<vmem>>, %arg8: memref<1x1088xf32, #tpu.memory_space<vmem>>, %arg9: memref<984x64xf32, #tpu.memory_space<vmem>>, %arg10: memref<1x1x10xf32, #tpu.memory_space<vmem>>, %arg11: memref<3x1160xf32, #tpu.memory_space<vmem>>, %arg12: memref<27x1088xf32, #tpu.memory_space<vmem>>, %arg13: memref<8x1124xf32, #tpu.memory_space<vmem>>, %arg14: memref<8x1228xf32, #tpu.memory_space<vmem>>, %arg15: memref<72x1088xf32, #tpu.memory_space<vmem>>, %arg16: memref<16x1158xf32, #tpu.memory_space<vmem>>, %arg17: memref<1x1024xf32, #tpu.memory_space<vmem>>) attributes {dimension_semantics = [#tpu.dimension_semantics<parallel>], iteration_bounds = array<i64: 2>, scalar_prefetch = 0 : i64, scratch_operands = 7 : i64, tpu.core_type = #tpu.core_type<tc>, window_params = [{transform_indices = @transform_0, window_bounds = array<i64: 1, 3, 1024>}, {pipeline_mode = #tpu.pipeline_mode<synchronous>, transform_indices = @transform_1, window_bounds = array<i64: 8, 27>}, {pipeline_mode = #tpu.pipeline_mode<synchronous>, transform_indices = @transform_2, window_bounds = array<i64: 8, 1>}, {pipeline_mode = #tpu.pipeline_mode<synchronous>, transform_indices = @transform_3, window_bounds = array<i64: 16, 72>}, {pipeline_mode = #tpu.pipeline_mode<synchronous>, transform_indices = @transform_4, window_bounds = array<i64: 16, 1>}, {pipeline_mode = #tpu.pipeline_mode<synchronous>, transform_indices = @transform_5, window_bounds = array<i64: 1024, 10>}, {pipeline_mode = #tpu.pipeline_mode<synchronous>, transform_indices = @transform_6, window_bounds = array<i64: 1, 10>}, {pipeline_mode = #tpu.pipeline_mode<synchronous>, transform_indices = @transform_7, window_bounds = array<i64: 1, 1088>}, {pipeline_mode = #tpu.pipeline_mode<synchronous>, transform_indices = @transform_8, window_bounds = array<i64: 984, 64>}, {transform_indices = @transform_9, window_bounds = array<i64: 1, 1, 10>}]} {
    %cst = arith.constant 0.000000e+00 : f32
    %0 = vector.broadcast %cst : f32 to vector<3x1160xf32>
    %c0 = arith.constant 0 : index
    %c0_0 = arith.constant 0 : index
    %1 = vector.load %arg11[%c0, %c0_0] : memref<3x1160xf32, #tpu.memory_space<vmem>>, vector<3x1160xf32>
    tpu.vector_store %arg11[%c0, %c0_0], %0 {strides = array<i32>} : memref<3x1160xf32, #tpu.memory_space<vmem>>, vector<3x1160xf32>,
    %c0_1 = arith.constant 0 : index
    %c0_2 = arith.constant 0 : index
    %c0_3 = arith.constant 0 : index
    %2 = vector.load %arg1[%c0_1, %c0_2, %c0_3] : memref<1x3x1024xf32, #tpu.memory_space<vmem>>, vector<1x3x1024xf32>
    %3 = vector.shape_cast %2 : vector<1x3x1024xf32> to vector<3x1024xf32>
    %4 = vector.extract_strided_slice %3 {offsets = [0, 0], sizes = [3, 32], strides = [1, 1]} : vector<3x1024xf32> to vector<3x32xf32>
    %c0_4 = arith.constant 0 : index
    %c35 = arith.constant 35 : index
    %5 = vector.load %arg11[%c0_4, %c35] : memref<3x1160xf32, #tpu.memory_space<vmem>>, vector<3x32xf32>
    tpu.vector_store %arg11[%c0_4, %c35], %4 {strides = array<i32>} : memref<3x1160xf32, #tpu.memory_space<vmem>>, vector<3x32xf32>,
    %6 = vector.extract_strided_slice %3 {offsets = [0, 32], sizes = [3, 32], strides = [1, 1]} : vector<3x1024xf32> to vector<3x32xf32>
    %c0_5 = arith.constant 0 : index
    %c69 = arith.constant 69 : index
    %7 = vector.load %arg11[%c0_5, %c69] : memref<3x1160xf32, #tpu.memory_space<vmem>>, vector<3x32xf32>
    tpu.vector_store %arg11[%c0_5, %c69], %6 {strides = array<i32>} : memref<3x1160xf32, #tpu.memory_space<vmem>>, vector<3x32xf32>,
    %8 = vector.extract_strided_slice %3 {offsets = [0, 64], sizes = [3, 32], strides = [1, 1]} : vector<3x1024xf32> to vector<3x32xf32>
    %c0_6 = arith.constant 0 : index
    %c103 = arith.constant 103 : index
    %9 = vector.load %arg11[%c0_6, %c103] : memref<3x1160xf32, #tpu.memory_space<vmem>>, vector<3x32xf32>
    tpu.vector_store %arg11[%c0_6, %c103], %8 {strides = array<i32>} : memref<3x1160xf32, #tpu.memory_space<vmem>>, vector<3x32xf32>,
    %10 = vector.extract_strided_slice %3 {offsets = [0, 96], sizes = [3, 32], strides = [1, 1]} : vector<3x1024xf32> to vector<3x32xf32>
    %c0_7 = arith.constant 0 : index
    %c137 = arith.constant 137 : index
    %11 = vector.load %arg11[%c0_7, %c137] : memref<3x1160xf32, #tpu.memory_space<vmem>>, vector<3x32xf32>
    tpu.vector_store %arg11[%c0_7, %c137], %10 {strides = array<i32>} : memref<3x1160xf32, #tpu.memory_space<vmem>>, vector<3x32xf32>,
    %12 = vector.extract_strided_slice %3 {offsets = [0, 128], sizes = [3, 32], strides = [1, 1]} : vector<3x1024xf32> to vector<3x32xf32>
    %c0_8 = arith.constant 0 : index
    %c171 = arith.constant 171 : index
    %13 = vector.load %arg11[%c0_8, %c171] : memref<3x1160xf32, #tpu.memory_space<vmem>>, vector<3x32xf32>
    tpu.vector_store %arg11[%c0_8, %c171], %12 {strides = array<i32>} : memref<3x1160xf32, #tpu.memory_space<vmem>>, vector<3x32xf32>,
    %14 = vector.extract_strided_slice %3 {offsets = [0, 160], sizes = [3, 32], strides = [1, 1]} : vector<3x1024xf32> to vector<3x32xf32>
    %c0_9 = arith.constant 0 : index
    %c205 = arith.constant 205 : index
    %15 = vector.load %arg11[%c0_9, %c205] : memref<3x1160xf32, #tpu.memory_space<vmem>>, vector<3x32xf32>
    tpu.vector_store %arg11[%c0_9, %c205], %14 {strides = array<i32>} : memref<3x1160xf32, #tpu.memory_space<vmem>>, vector<3x32xf32>,
    %16 = vector.extract_strided_slice %3 {offsets = [0, 192], sizes = [3, 32], strides = [1, 1]} : vector<3x1024xf32> to vector<3x32xf32>
    %c0_10 = arith.constant 0 : index
    %c239 = arith.constant 239 : index
    %17 = vector.load %arg11[%c0_10, %c239] : memref<3x1160xf32, #tpu.memory_space<vmem>>, vector<3x32xf32>
    tpu.vector_store %arg11[%c0_10, %c239], %16 {strides = array<i32>} : memref<3x1160xf32, #tpu.memory_space<vmem>>, vector<3x32xf32>,
    %18 = vector.extract_strided_slice %3 {offsets = [0, 224], sizes = [3, 32], strides = [1, 1]} : vector<3x1024xf32> to vector<3x32xf32>
    %c0_11 = arith.constant 0 : index
    %c273 = arith.constant 273 : index
    %19 = vector.load %arg11[%c0_11, %c273] : memref<3x1160xf32, #tpu.memory_space<vmem>>, vector<3x32xf32>
    tpu.vector_store %arg11[%c0_11, %c273], %18 {strides = array<i32>} : memref<3x1160xf32, #tpu.memory_space<vmem>>, vector<3x32xf32>,
    %20 = vector.extract_strided_slice %3 {offsets = [0, 256], sizes = [3, 32], strides = [1, 1]} : vector<3x1024xf32> to vector<3x32xf32>
    %c0_12 = arith.constant 0 : index
    %c307 = arith.constant 307 : index
    %21 = vector.load %arg11[%c0_12, %c307] : memref<3x1160xf32, #tpu.memory_space<vmem>>, vector<3x32xf32>
    tpu.vector_store %arg11[%c0_12, %c307], %20 {strides = array<i32>} : memref<3x1160xf32, #tpu.memory_space<vmem>>, vector<3x32xf32>,
    %22 = vector.extract_strided_slice %3 {offsets = [0, 288], sizes = [3, 32], strides = [1, 1]} : vector<3x1024xf32> to vector<3x32xf32>
    %c0_13 = arith.constant 0 : index
    %c341 = arith.constant 341 : index
    %23 = vector.load %arg11[%c0_13, %c341] : memref<3x1160xf32, #tpu.memory_space<vmem>>, vector<3x32xf32>
    tpu.vector_store %arg11[%c0_13, %c341], %22 {strides = array<i32>} : memref<3x1160xf32, #tpu.memory_space<vmem>>, vector<3x32xf32>,
    %24 = vector.extract_strided_slice %3 {offsets = [0, 320], sizes = [3, 32], strides = [1, 1]} : vector<3x1024xf32> to vector<3x32xf32>
    %c0_14 = arith.constant 0 : index
    %c375 = arith.constant 375 : index
    %25 = vector.load %arg11[%c0_14, %c375] : memref<3x1160xf32, #tpu.memory_space<vmem>>, vector<3x32xf32>
    tpu.vector_store %arg11[%c0_14, %c375], %24 {strides = array<i32>} : memref<3x1160xf32, #tpu.memory_space<vmem>>, vector<3x32xf32>,
    %26 = vector.extract_strided_slice %3 {offsets = [0, 352], sizes = [3, 32], strides = [1, 1]} : vector<3x1024xf32> to vector<3x32xf32>
    %c0_15 = arith.constant 0 : index
    %c409 = arith.constant 409 : index
    %27 = vector.load %arg11[%c0_15, %c409] : memref<3x1160xf32, #tpu.memory_space<vmem>>, vector<3x32xf32>
    tpu.vector_store %arg11[%c0_15, %c409], %26 {strides = array<i32>} : memref<3x1160xf32, #tpu.memory_space<vmem>>, vector<3x32xf32>,
    %28 = vector.extract_strided_slice %3 {offsets = [0, 384], sizes = [3, 32], strides = [1, 1]} : vector<3x1024xf32> to vector<3x32xf32>
    %c0_16 = arith.constant 0 : index
    %c443 = arith.constant 443 : index
    %29 = vector.load %arg11[%c0_16, %c443] : memref<3x1160xf32, #tpu.memory_space<vmem>>, vector<3x32xf32>
    tpu.vector_store %arg11[%c0_16, %c443], %28 {strides = array<i32>} : memref<3x1160xf32, #tpu.memory_space<vmem>>, vector<3x32xf32>,
    %30 = vector.extract_strided_slice %3 {offsets = [0, 416], sizes = [3, 32], strides = [1, 1]} : vector<3x1024xf32> to vector<3x32xf32>
    %c0_17 = arith.constant 0 : index
    %c477 = arith.constant 477 : index
    %31 = vector.load %arg11[%c0_17, %c477] : memref<3x1160xf32, #tpu.memory_space<vmem>>, vector<3x32xf32>
    tpu.vector_store %arg11[%c0_17, %c477], %30 {strides = array<i32>} : memref<3x1160xf32, #tpu.memory_space<vmem>>, vector<3x32xf32>,
    %32 = vector.extract_strided_slice %3 {offsets = [0, 448], sizes = [3, 32], strides = [1, 1]} : vector<3x1024xf32> to vector<3x32xf32>
    %c0_18 = arith.constant 0 : index
    %c511 = arith.constant 511 : index
    %33 = vector.load %arg11[%c0_18, %c511] : memref<3x1160xf32, #tpu.memory_space<vmem>>, vector<3x32xf32>
    tpu.vector_store %arg11[%c0_18, %c511], %32 {strides = array<i32>} : memref<3x1160xf32, #tpu.memory_space<vmem>>, vector<3x32xf32>,
    %34 = vector.extract_strided_slice %3 {offsets = [0, 480], sizes = [3, 32], strides = [1, 1]} : vector<3x1024xf32> to vector<3x32xf32>
    %c0_19 = arith.constant 0 : index
    %c545 = arith.constant 545 : index
    %35 = vector.load %arg11[%c0_19, %c545] : memref<3x1160xf32, #tpu.memory_space<vmem>>, vector<3x32xf32>
    tpu.vector_store %arg11[%c0_19, %c545], %34 {strides = array<i32>} : memref<3x1160xf32, #tpu.memory_space<vmem>>, vector<3x32xf32>,
    %36 = vector.extract_strided_slice %3 {offsets = [0, 512], sizes = [3, 32], strides = [1, 1]} : vector<3x1024xf32> to vector<3x32xf32>
    %c0_20 = arith.constant 0 : index
    %c579 = arith.constant 579 : index
    %37 = vector.load %arg11[%c0_20, %c579] : memref<3x1160xf32, #tpu.memory_space<vmem>>, vector<3x32xf32>
    tpu.vector_store %arg11[%c0_20, %c579], %36 {strides = array<i32>} : memref<3x1160xf32, #tpu.memory_space<vmem>>, vector<3x32xf32>,
    %38 = vector.extract_strided_slice %3 {offsets = [0, 544], sizes = [3, 32], strides = [1, 1]} : vector<3x1024xf32> to vector<3x32xf32>
    %c0_21 = arith.constant 0 : index
    %c613 = arith.constant 613 : index
    %39 = vector.load %arg11[%c0_21, %c613] : memref<3x1160xf32, #tpu.memory_space<vmem>>, vector<3x32xf32>
    tpu.vector_store %arg11[%c0_21, %c613], %38 {strides = array<i32>} : memref<3x1160xf32, #tpu.memory_space<vmem>>, vector<3x32xf32>,
    %40 = vector.extract_strided_slice %3 {offsets = [0, 576], sizes = [3, 32], strides = [1, 1]} : vector<3x1024xf32> to vector<3x32xf32>
    %c0_22 = arith.constant 0 : index
    %c647 = arith.constant 647 : index
    %41 = vector.load %arg11[%c0_22, %c647] : memref<3x1160xf32, #tpu.memory_space<vmem>>, vector<3x32xf32>
    tpu.vector_store %arg11[%c0_22, %c647], %40 {strides = array<i32>} : memref<3x1160xf32, #tpu.memory_space<vmem>>, vector<3x32xf32>,
    %42 = vector.extract_strided_slice %3 {offsets = [0, 608], sizes = [3, 32], strides = [1, 1]} : vector<3x1024xf32> to vector<3x32xf32>
    %c0_23 = arith.constant 0 : index
    %c681 = arith.constant 681 : index
    %43 = vector.load %arg11[%c0_23, %c681] : memref<3x1160xf32, #tpu.memory_space<vmem>>, vector<3x32xf32>
    tpu.vector_store %arg11[%c0_23, %c681], %42 {strides = array<i32>} : memref<3x1160xf32, #tpu.memory_space<vmem>>, vector<3x32xf32>,
    %44 = vector.extract_strided_slice %3 {offsets = [0, 640], sizes = [3, 32], strides = [1, 1]} : vector<3x1024xf32> to vector<3x32xf32>
    %c0_24 = arith.constant 0 : index
    %c715 = arith.constant 715 : index
    %45 = vector.load %arg11[%c0_24, %c715] : memref<3x1160xf32, #tpu.memory_space<vmem>>, vector<3x32xf32>
    tpu.vector_store %arg11[%c0_24, %c715], %44 {strides = array<i32>} : memref<3x1160xf32, #tpu.memory_space<vmem>>, vector<3x32xf32>,
    %46 = vector.extract_strided_slice %3 {offsets = [0, 672], sizes = [3, 32], strides = [1, 1]} : vector<3x1024xf32> to vector<3x32xf32>
    %c0_25 = arith.constant 0 : index
    %c749 = arith.constant 749 : index
    %47 = vector.load %arg11[%c0_25, %c749] : memref<3x1160xf32, #tpu.memory_space<vmem>>, vector<3x32xf32>
    tpu.vector_store %arg11[%c0_25, %c749], %46 {strides = array<i32>} : memref<3x1160xf32, #tpu.memory_space<vmem>>, vector<3x32xf32>,
    %48 = vector.extract_strided_slice %3 {offsets = [0, 704], sizes = [3, 32], strides = [1, 1]} : vector<3x1024xf32> to vector<3x32xf32>
    %c0_26 = arith.constant 0 : index
    %c783 = arith.constant 783 : index
    %49 = vector.load %arg11[%c0_26, %c783] : memref<3x1160xf32, #tpu.memory_space<vmem>>, vector<3x32xf32>
    tpu.vector_store %arg11[%c0_26, %c783], %48 {strides = array<i32>} : memref<3x1160xf32, #tpu.memory_space<vmem>>, vector<3x32xf32>,
    %50 = vector.extract_strided_slice %3 {offsets = [0, 736], sizes = [3, 32], strides = [1, 1]} : vector<3x1024xf32> to vector<3x32xf32>
    %c0_27 = arith.constant 0 : index
    %c817 = arith.constant 817 : index
    %51 = vector.load %arg11[%c0_27, %c817] : memref<3x1160xf32, #tpu.memory_space<vmem>>, vector<3x32xf32>
    tpu.vector_store %arg11[%c0_27, %c817], %50 {strides = array<i32>} : memref<3x1160xf32, #tpu.memory_space<vmem>>, vector<3x32xf32>,
    %52 = vector.extract_strided_slice %3 {offsets = [0, 768], sizes = [3, 32], strides = [1, 1]} : vector<3x1024xf32> to vector<3x32xf32>
    %c0_28 = arith.constant 0 : index
    %c851 = arith.constant 851 : index
    %53 = vector.load %arg11[%c0_28, %c851] : memref<3x1160xf32, #tpu.memory_space<vmem>>, vector<3x32xf32>
    tpu.vector_store %arg11[%c0_28, %c851], %52 {strides = array<i32>} : memref<3x1160xf32, #tpu.memory_space<vmem>>, vector<3x32xf32>,
    %54 = vector.extract_strided_slice %3 {offsets = [0, 800], sizes = [3, 32], strides = [1, 1]} : vector<3x1024xf32> to vector<3x32xf32>
    %c0_29 = arith.constant 0 : index
    %c885 = arith.constant 885 : index
    %55 = vector.load %arg11[%c0_29, %c885] : memref<3x1160xf32, #tpu.memory_space<vmem>>, vector<3x32xf32>
    tpu.vector_store %arg11[%c0_29, %c885], %54 {strides = array<i32>} : memref<3x1160xf32, #tpu.memory_space<vmem>>, vector<3x32xf32>,
    %56 = vector.extract_strided_slice %3 {offsets = [0, 832], sizes = [3, 32], strides = [1, 1]} : vector<3x1024xf32> to vector<3x32xf32>
    %c0_30 = arith.constant 0 : index
    %c919 = arith.constant 919 : index
    %57 = vector.load %arg11[%c0_30, %c919] : memref<3x1160xf32, #tpu.memory_space<vmem>>, vector<3x32xf32>
    tpu.vector_store %arg11[%c0_30, %c919], %56 {strides = array<i32>} : memref<3x1160xf32, #tpu.memory_space<vmem>>, vector<3x32xf32>,
    %58 = vector.extract_strided_slice %3 {offsets = [0, 864], sizes = [3, 32], strides = [1, 1]} : vector<3x1024xf32> to vector<3x32xf32>
    %c0_31 = arith.constant 0 : index
    %c953 = arith.constant 953 : index
    %59 = vector.load %arg11[%c0_31, %c953] : memref<3x1160xf32, #tpu.memory_space<vmem>>, vector<3x32xf32>
    tpu.vector_store %arg11[%c0_31, %c953], %58 {strides = array<i32>} : memref<3x1160xf32, #tpu.memory_space<vmem>>, vector<3x32xf32>,
    %60 = vector.extract_strided_slice %3 {offsets = [0, 896], sizes = [3, 32], strides = [1, 1]} : vector<3x1024xf32> to vector<3x32xf32>
    %c0_32 = arith.constant 0 : index
    %c987 = arith.constant 987 : index
    %61 = vector.load %arg11[%c0_32, %c987] : memref<3x1160xf32, #tpu.memory_space<vmem>>, vector<3x32xf32>
    tpu.vector_store %arg11[%c0_32, %c987], %60 {strides = array<i32>} : memref<3x1160xf32, #tpu.memory_space<vmem>>, vector<3x32xf32>,
    %62 = vector.extract_strided_slice %3 {offsets = [0, 928], sizes = [3, 32], strides = [1, 1]} : vector<3x1024xf32> to vector<3x32xf32>
    %c0_33 = arith.constant 0 : index
    %c1021 = arith.constant 1021 : index
    %63 = vector.load %arg11[%c0_33, %c1021] : memref<3x1160xf32, #tpu.memory_space<vmem>>, vector<3x32xf32>
    tpu.vector_store %arg11[%c0_33, %c1021], %62 {strides = array<i32>} : memref<3x1160xf32, #tpu.memory_space<vmem>>, vector<3x32xf32>,
    %64 = vector.extract_strided_slice %3 {offsets = [0, 960], sizes = [3, 32], strides = [1, 1]} : vector<3x1024xf32> to vector<3x32xf32>
    %c0_34 = arith.constant 0 : index
    %c1055 = arith.constant 1055 : index
    %65 = vector.load %arg11[%c0_34, %c1055] : memref<3x1160xf32, #tpu.memory_space<vmem>>, vector<3x32xf32>
    tpu.vector_store %arg11[%c0_34, %c1055], %64 {strides = array<i32>} : memref<3x1160xf32, #tpu.memory_space<vmem>>, vector<3x32xf32>,
    %66 = vector.extract_strided_slice %3 {offsets = [0, 992], sizes = [3, 32], strides = [1, 1]} : vector<3x1024xf32> to vector<3x32xf32>
    %c0_35 = arith.constant 0 : index
    %c1089 = arith.constant 1089 : index
    %67 = vector.load %arg11[%c0_35, %c1089] : memref<3x1160xf32, #tpu.memory_space<vmem>>, vector<3x32xf32>
    tpu.vector_store %arg11[%c0_35, %c1089], %66 {strides = array<i32>} : memref<3x1160xf32, #tpu.memory_space<vmem>>, vector<3x32xf32>,
    %c0_36 = arith.constant 0 : index
    %c0_37 = arith.constant 0 : index
    %68 = vector.load %arg11[%c0_36, %c0_37] : memref<3x1160xf32, #tpu.memory_space<vmem>>, vector<3x1088xf32>
    %c0_38 = arith.constant 0 : index
    %c0_39 = arith.constant 0 : index
    %69 = vector.load %arg12[%c0_38, %c0_39] : memref<27x1088xf32, #tpu.memory_space<vmem>>, vector<3x1088xf32>
    tpu.vector_store %arg12[%c0_38, %c0_39], %68 {strides = array<i32>} : memref<27x1088xf32, #tpu.memory_space<vmem>>, vector<3x1088xf32>,
    %c0_40 = arith.constant 0 : index
    %c1 = arith.constant 1 : index
    %70 = vector.load %arg11[%c0_40, %c1] : memref<3x1160xf32, #tpu.memory_space<vmem>>, vector<3x1088xf32>
    %c3 = arith.constant 3 : index
    %c0_41 = arith.constant 0 : index
    %71 = vector.load %arg12[%c3, %c0_41] : memref<27x1088xf32, #tpu.memory_space<vmem>>, vector<3x1088xf32>
    tpu.vector_store %arg12[%c3, %c0_41], %70 {strides = array<i32>} : memref<27x1088xf32, #tpu.memory_space<vmem>>, vector<3x1088xf32>,
    %c0_42 = arith.constant 0 : index
    %c2 = arith.constant 2 : index
    %72 = vector.load %arg11[%c0_42, %c2] : memref<3x1160xf32, #tpu.memory_space<vmem>>, vector<3x1088xf32>
    %c6 = arith.constant 6 : index
    %c0_43 = arith.constant 0 : index
    %73 = vector.load %arg12[%c6, %c0_43] : memref<27x1088xf32, #tpu.memory_space<vmem>>, vector<3x1088xf32>
    tpu.vector_store %arg12[%c6, %c0_43], %72 {strides = array<i32>} : memref<27x1088xf32, #tpu.memory_space<vmem>>, vector<3x1088xf32>,
    %c0_44 = arith.constant 0 : index
    %c34 = arith.constant 34 : index
    %74 = vector.load %arg11[%c0_44, %c34] : memref<3x1160xf32, #tpu.memory_space<vmem>>, vector<3x1088xf32>
    %c9 = arith.constant 9 : index
    %c0_45 = arith.constant 0 : index
    %75 = vector.load %arg12[%c9, %c0_45] : memref<27x1088xf32, #tpu.memory_space<vmem>>, vector<3x1088xf32>
    tpu.vector_store %arg12[%c9, %c0_45], %74 {strides = array<i32>} : memref<27x1088xf32, #tpu.memory_space<vmem>>, vector<3x1088xf32>,
    %c0_46 = arith.constant 0 : index
    %c35_47 = arith.constant 35 : index
    %76 = vector.load %arg11[%c0_46, %c35_47] : memref<3x1160xf32, #tpu.memory_space<vmem>>, vector<3x1088xf32>
    %c12 = arith.constant 12 : index
    %c0_48 = arith.constant 0 : index
    %77 = vector.load %arg12[%c12, %c0_48] : memref<27x1088xf32, #tpu.memory_space<vmem>>, vector<3x1088xf32>
    tpu.vector_store %arg12[%c12, %c0_48], %76 {strides = array<i32>} : memref<27x1088xf32, #tpu.memory_space<vmem>>, vector<3x1088xf32>,
    %c0_49 = arith.constant 0 : index
    %c36 = arith.constant 36 : index
    %78 = vector.load %arg11[%c0_49, %c36] : memref<3x1160xf32, #tpu.memory_space<vmem>>, vector<3x1088xf32>
    %c15 = arith.constant 15 : index
    %c0_50 = arith.constant 0 : index
    %79 = vector.load %arg12[%c15, %c0_50] : memref<27x1088xf32, #tpu.memory_space<vmem>>, vector<3x1088xf32>
    tpu.vector_store %arg12[%c15, %c0_50], %78 {strides = array<i32>} : memref<27x1088xf32, #tpu.memory_space<vmem>>, vector<3x1088xf32>,
    %c0_51 = arith.constant 0 : index
    %c68 = arith.constant 68 : index
    %80 = vector.load %arg11[%c0_51, %c68] : memref<3x1160xf32, #tpu.memory_space<vmem>>, vector<3x1088xf32>
    %c18 = arith.constant 18 : index
    %c0_52 = arith.constant 0 : index
    %81 = vector.load %arg12[%c18, %c0_52] : memref<27x1088xf32, #tpu.memory_space<vmem>>, vector<3x1088xf32>
    tpu.vector_store %arg12[%c18, %c0_52], %80 {strides = array<i32>} : memref<27x1088xf32, #tpu.memory_space<vmem>>, vector<3x1088xf32>,
    %c0_53 = arith.constant 0 : index
    %c69_54 = arith.constant 69 : index
    %82 = vector.load %arg11[%c0_53, %c69_54] : memref<3x1160xf32, #tpu.memory_space<vmem>>, vector<3x1088xf32>
    %c21 = arith.constant 21 : index
    %c0_55 = arith.constant 0 : index
    %83 = vector.load %arg12[%c21, %c0_55] : memref<27x1088xf32, #tpu.memory_space<vmem>>, vector<3x1088xf32>
    tpu.vector_store %arg12[%c21, %c0_55], %82 {strides = array<i32>} : memref<27x1088xf32, #tpu.memory_space<vmem>>, vector<3x1088xf32>,
    %c0_56 = arith.constant 0 : index
    %c70 = arith.constant 70 : index
    %84 = vector.load %arg11[%c0_56, %c70] : memref<3x1160xf32, #tpu.memory_space<vmem>>, vector<3x1088xf32>
    %c24 = arith.constant 24 : index
    %c0_57 = arith.constant 0 : index
    %85 = vector.load %arg12[%c24, %c0_57] : memref<27x1088xf32, #tpu.memory_space<vmem>>, vector<3x1088xf32>
    tpu.vector_store %arg12[%c24, %c0_57], %84 {strides = array<i32>} : memref<27x1088xf32, #tpu.memory_space<vmem>>, vector<3x1088xf32>,
    %c0_58 = arith.constant 0 : index
    %c0_59 = arith.constant 0 : index
    %86 = vector.load %arg2[%c0_58, %c0_59] : memref<8x27xf32, #tpu.memory_space<vmem>>, vector<8x27xf32>
    %c0_60 = arith.constant 0 : index
    %c0_61 = arith.constant 0 : index
    %87 = vector.load %arg12[%c0_60, %c0_61] : memref<27x1088xf32, #tpu.memory_space<vmem>>, vector<27x1088xf32>
    %cst_62 = arith.constant dense<0.000000e+00> : vector<8x1088xf32>
    %88 = tpu.matmul %86, %87, %cst_62 {dimension_numbers = #tpu.dot_dimension_numbers<[1], [0], [0], [1], [0, 0, 1, 1], [], []>} : vector<8x27xf32>, vector<27x1088xf32>, vector<8x1088xf32> -> vector<8x1088xf32>
    %c0_63 = arith.constant 0 : index
    %c0_64 = arith.constant 0 : index
    %89 = vector.load %arg3[%c0_63, %c0_64] : memref<8x1xf32, #tpu.memory_space<vmem>>, vector<8x1xf32>
    %90 = vector.broadcast %89 : vector<8x1xf32> to vector<8x1088xf32>
    %91 = arith.addf %88, %90 : vector<8x1088xf32>
    %cst_65 = arith.constant 0.000000e+00 : f32
    %92 = vector.broadcast %cst_65 : f32 to vector<8x1088xf32>
    %93 = arith.maximumf %91, %92 : vector<8x1088xf32>
    %c0_66 = arith.constant 0 : index
    %c0_67 = arith.constant 0 : index
    %94 = vector.load %arg13[%c0_66, %c0_67] : memref<8x1124xf32, #tpu.memory_space<vmem>>, vector<8x1088xf32>
    tpu.vector_store %arg13[%c0_66, %c0_67], %93 {strides = array<i32>} : memref<8x1124xf32, #tpu.memory_space<vmem>>, vector<8x1088xf32>,
    %cst_68 = arith.constant 0.000000e+00 : f32
    %95 = vector.broadcast %cst_68 : f32 to vector<8x36xf32>
    %c0_69 = arith.constant 0 : index
    %c1088 = arith.constant 1088 : index
    %96 = vector.load %arg13[%c0_69, %c1088] : memref<8x1124xf32, #tpu.memory_space<vmem>>, vector<8x36xf32>
    tpu.vector_store %arg13[%c0_69, %c1088], %95 {strides = array<i32>} : memref<8x1124xf32, #tpu.memory_space<vmem>>, vector<8x36xf32>,
    %c0_70 = arith.constant 0 : index
    %c0_71 = arith.constant 0 : index
    %97 = vector.load %arg13[%c0_70, %c0_71] : memref<8x1124xf32, #tpu.memory_space<vmem>>, vector<8x1088xf32>
    %c0_72 = arith.constant 0 : index
    %c1_73 = arith.constant 1 : index
    %98 = vector.load %arg13[%c0_72, %c1_73] : memref<8x1124xf32, #tpu.memory_space<vmem>>, vector<8x1088xf32>
    %99 = arith.maximumf %97, %98 : vector<8x1088xf32>
    %c0_74 = arith.constant 0 : index
    %c34_75 = arith.constant 34 : index
    %100 = vector.load %arg13[%c0_74, %c34_75] : memref<8x1124xf32, #tpu.memory_space<vmem>>, vector<8x1088xf32>
    %c0_76 = arith.constant 0 : index
    %c35_77 = arith.constant 35 : index
    %101 = vector.load %arg13[%c0_76, %c35_77] : memref<8x1124xf32, #tpu.memory_space<vmem>>, vector<8x1088xf32>
    %102 = arith.maximumf %100, %101 : vector<8x1088xf32>
    %103 = arith.maximumf %99, %102 : vector<8x1088xf32>
    %c0_78 = arith.constant 0 : index
    %c0_79 = arith.constant 0 : index
    %104 = vector.load %arg8[%c0_78, %c0_79] : memref<1x1088xf32, #tpu.memory_space<vmem>>, vector<1x1088xf32>
    %cst_80 = arith.constant 5.000000e-01 : f32
    %105 = vector.broadcast %cst_80 : f32 to vector<1x1088xf32>
    %106 = arith.cmpf ogt, %104, %105 : vector<1x1088xf32>
    %cst_81 = arith.constant 0.000000e+00 : f32
    %107 = vector.shape_cast %106 : vector<1x1088xi1> to vector<1x1088xi1>
    %108 = vector.broadcast %107 : vector<1x1088xi1> to vector<8x1088xi1>
    %109 = vector.broadcast %cst_81 : f32 to vector<8x1088xf32>
    %110 = arith.select %108, %103, %109 : vector<8x1088xi1>, vector<8x1088xf32>
    %cst_82 = arith.constant 0.000000e+00 : f32
    %111 = vector.broadcast %cst_82 : f32 to vector<8x70xf32>
    %c0_83 = arith.constant 0 : index
    %c0_84 = arith.constant 0 : index
    %112 = vector.load %arg14[%c0_83, %c0_84] : memref<8x1228xf32, #tpu.memory_space<vmem>>, vector<8x70xf32>
    tpu.vector_store %arg14[%c0_83, %c0_84], %111 {strides = array<i32>} : memref<8x1228xf32, #tpu.memory_space<vmem>>, vector<8x70xf32>,
    %c0_85 = arith.constant 0 : index
    %c70_86 = arith.constant 70 : index
    %113 = vector.load %arg14[%c0_85, %c70_86] : memref<8x1228xf32, #tpu.memory_space<vmem>>, vector<8x1088xf32>
    tpu.vector_store %arg14[%c0_85, %c70_86], %110 {strides = array<i32>} : memref<8x1228xf32, #tpu.memory_space<vmem>>, vector<8x1088xf32>,
    %cst_87 = arith.constant 0.000000e+00 : f32
    %114 = vector.broadcast %cst_87 : f32 to vector<8x70xf32>
    %c0_88 = arith.constant 0 : index
    %c1158 = arith.constant 1158 : index
    %115 = vector.load %arg14[%c0_88, %c1158] : memref<8x1228xf32, #tpu.memory_space<vmem>>, vector<8x70xf32>
    tpu.vector_store %arg14[%c0_88, %c1158], %114 {strides = array<i32>} : memref<8x1228xf32, #tpu.memory_space<vmem>>, vector<8x70xf32>,
    %c0_89 = arith.constant 0 : index
    %c0_90 = arith.constant 0 : index
    %116 = vector.load %arg14[%c0_89, %c0_90] : memref<8x1228xf32, #tpu.memory_space<vmem>>, vector<8x1088xf32>
    %c0_91 = arith.constant 0 : index
    %c0_92 = arith.constant 0 : index
    %117 = vector.load %arg15[%c0_91, %c0_92] : memref<72x1088xf32, #tpu.memory_space<vmem>>, vector<8x1088xf32>
    tpu.vector_store %arg15[%c0_91, %c0_92], %116 {strides = array<i32>} : memref<72x1088xf32, #tpu.memory_space<vmem>>, vector<8x1088xf32>,
    %c0_93 = arith.constant 0 : index
    %c2_94 = arith.constant 2 : index
    %118 = vector.load %arg14[%c0_93, %c2_94] : memref<8x1228xf32, #tpu.memory_space<vmem>>, vector<8x1088xf32>
    %c8 = arith.constant 8 : index
    %c0_95 = arith.constant 0 : index
    %119 = vector.load %arg15[%c8, %c0_95] : memref<72x1088xf32, #tpu.memory_space<vmem>>, vector<8x1088xf32>
    tpu.vector_store %arg15[%c8, %c0_95], %118 {strides = array<i32>} : memref<72x1088xf32, #tpu.memory_space<vmem>>, vector<8x1088xf32>,
    %c0_96 = arith.constant 0 : index
    %c4 = arith.constant 4 : index
    %120 = vector.load %arg14[%c0_96, %c4] : memref<8x1228xf32, #tpu.memory_space<vmem>>, vector<8x1088xf32>
    %c16 = arith.constant 16 : index
    %c0_97 = arith.constant 0 : index
    %121 = vector.load %arg15[%c16, %c0_97] : memref<72x1088xf32, #tpu.memory_space<vmem>>, vector<8x1088xf32>
    tpu.vector_store %arg15[%c16, %c0_97], %120 {strides = array<i32>} : memref<72x1088xf32, #tpu.memory_space<vmem>>, vector<8x1088xf32>,
    %c0_98 = arith.constant 0 : index
    %c68_99 = arith.constant 68 : index
    %122 = vector.load %arg14[%c0_98, %c68_99] : memref<8x1228xf32, #tpu.memory_space<vmem>>, vector<8x1088xf32>
    %c24_100 = arith.constant 24 : index
    %c0_101 = arith.constant 0 : index
    %123 = vector.load %arg15[%c24_100, %c0_101] : memref<72x1088xf32, #tpu.memory_space<vmem>>, vector<8x1088xf32>
    tpu.vector_store %arg15[%c24_100, %c0_101], %122 {strides = array<i32>} : memref<72x1088xf32, #tpu.memory_space<vmem>>, vector<8x1088xf32>,
    %c0_102 = arith.constant 0 : index
    %c70_103 = arith.constant 70 : index
    %124 = vector.load %arg14[%c0_102, %c70_103] : memref<8x1228xf32, #tpu.memory_space<vmem>>, vector<8x1088xf32>
    %c32 = arith.constant 32 : index
    %c0_104 = arith.constant 0 : index
    %125 = vector.load %arg15[%c32, %c0_104] : memref<72x1088xf32, #tpu.memory_space<vmem>>, vector<8x1088xf32>
    tpu.vector_store %arg15[%c32, %c0_104], %124 {strides = array<i32>} : memref<72x1088xf32, #tpu.memory_space<vmem>>, vector<8x1088xf32>,
    %c0_105 = arith.constant 0 : index
    %c72 = arith.constant 72 : index
    %126 = vector.load %arg14[%c0_105, %c72] : memref<8x1228xf32, #tpu.memory_space<vmem>>, vector<8x1088xf32>
    %c40 = arith.constant 40 : index
    %c0_106 = arith.constant 0 : index
    %127 = vector.load %arg15[%c40, %c0_106] : memref<72x1088xf32, #tpu.memory_space<vmem>>, vector<8x1088xf32>
    tpu.vector_store %arg15[%c40, %c0_106], %126 {strides = array<i32>} : memref<72x1088xf32, #tpu.memory_space<vmem>>, vector<8x1088xf32>,
    %c0_107 = arith.constant 0 : index
    %c136 = arith.constant 136 : index
    %128 = vector.load %arg14[%c0_107, %c136] : memref<8x1228xf32, #tpu.memory_space<vmem>>, vector<8x1088xf32>
    %c48 = arith.constant 48 : index
    %c0_108 = arith.constant 0 : index
    %129 = vector.load %arg15[%c48, %c0_108] : memref<72x1088xf32, #tpu.memory_space<vmem>>, vector<8x1088xf32>
    tpu.vector_store %arg15[%c48, %c0_108], %128 {strides = array<i32>} : memref<72x1088xf32, #tpu.memory_space<vmem>>, vector<8x1088xf32>,
    %c0_109 = arith.constant 0 : index
    %c138 = arith.constant 138 : index
    %130 = vector.load %arg14[%c0_109, %c138] : memref<8x1228xf32, #tpu.memory_space<vmem>>, vector<8x1088xf32>
    %c56 = arith.constant 56 : index
    %c0_110 = arith.constant 0 : index
    %131 = vector.load %arg15[%c56, %c0_110] : memref<72x1088xf32, #tpu.memory_space<vmem>>, vector<8x1088xf32>
    tpu.vector_store %arg15[%c56, %c0_110], %130 {strides = array<i32>} : memref<72x1088xf32, #tpu.memory_space<vmem>>, vector<8x1088xf32>,
    %c0_111 = arith.constant 0 : index
    %c140 = arith.constant 140 : index
    %132 = vector.load %arg14[%c0_111, %c140] : memref<8x1228xf32, #tpu.memory_space<vmem>>, vector<8x1088xf32>
    %c64 = arith.constant 64 : index
    %c0_112 = arith.constant 0 : index
    %133 = vector.load %arg15[%c64, %c0_112] : memref<72x1088xf32, #tpu.memory_space<vmem>>, vector<8x1088xf32>
    tpu.vector_store %arg15[%c64, %c0_112], %132 {strides = array<i32>} : memref<72x1088xf32, #tpu.memory_space<vmem>>, vector<8x1088xf32>,
    %c0_113 = arith.constant 0 : index
    %c0_114 = arith.constant 0 : index
    %134 = vector.load %arg4[%c0_113, %c0_114] : memref<16x72xf32, #tpu.memory_space<vmem>>, vector<16x72xf32>
    %c0_115 = arith.constant 0 : index
    %c0_116 = arith.constant 0 : index
    %135 = vector.load %arg15[%c0_115, %c0_116] : memref<72x1088xf32, #tpu.memory_space<vmem>>, vector<72x1088xf32>
    %cst_117 = arith.constant dense<0.000000e+00> : vector<16x1088xf32>
    %136 = tpu.matmul %134, %135, %cst_117 {dimension_numbers = #tpu.dot_dimension_numbers<[1], [0], [0], [1], [0, 0, 1, 1], [], []>} : vector<16x72xf32>, vector<72x1088xf32>, vector<16x1088xf32> -> vector<16x1088xf32>
    %c0_118 = arith.constant 0 : index
    %c0_119 = arith.constant 0 : index
    %137 = vector.load %arg5[%c0_118, %c0_119] : memref<16x1xf32, #tpu.memory_space<vmem>>, vector<16x1xf32>
    %138 = vector.broadcast %137 : vector<16x1xf32> to vector<16x1088xf32>
    %139 = arith.addf %136, %138 : vector<16x1088xf32>
    %cst_120 = arith.constant 0.000000e+00 : f32
    %140 = vector.broadcast %cst_120 : f32 to vector<16x1088xf32>
    %141 = arith.maximumf %139, %140 : vector<16x1088xf32>
    %c0_121 = arith.constant 0 : index
    %c0_122 = arith.constant 0 : index
    %142 = vector.load %arg16[%c0_121, %c0_122] : memref<16x1158xf32, #tpu.memory_space<vmem>>, vector<16x1088xf32>
    tpu.vector_store %arg16[%c0_121, %c0_122], %141 {strides = array<i32>} : memref<16x1158xf32, #tpu.memory_space<vmem>>, vector<16x1088xf32>,
    %cst_123 = arith.constant 0.000000e+00 : f32
    %143 = vector.broadcast %cst_123 : f32 to vector<16x70xf32>
    %c0_124 = arith.constant 0 : index
    %c1088_125 = arith.constant 1088 : index
    %144 = vector.load %arg16[%c0_124, %c1088_125] : memref<16x1158xf32, #tpu.memory_space<vmem>>, vector<16x70xf32>
    tpu.vector_store %arg16[%c0_124, %c1088_125], %143 {strides = array<i32>} : memref<16x1158xf32, #tpu.memory_space<vmem>>, vector<16x70xf32>,
    %c0_126 = arith.constant 0 : index
    %c0_127 = arith.constant 0 : index
    %145 = vector.load %arg16[%c0_126, %c0_127] : memref<16x1158xf32, #tpu.memory_space<vmem>>, vector<16x984xf32>
    %c0_128 = arith.constant 0 : index
    %c2_129 = arith.constant 2 : index
    %146 = vector.load %arg16[%c0_128, %c2_129] : memref<16x1158xf32, #tpu.memory_space<vmem>>, vector<16x984xf32>
    %147 = arith.maximumf %145, %146 : vector<16x984xf32>
    %c0_130 = arith.constant 0 : index
    %c68_131 = arith.constant 68 : index
    %148 = vector.load %arg16[%c0_130, %c68_131] : memref<16x1158xf32, #tpu.memory_space<vmem>>, vector<16x984xf32>
    %c0_132 = arith.constant 0 : index
    %c70_133 = arith.constant 70 : index
    %149 = vector.load %arg16[%c0_132, %c70_133] : memref<16x1158xf32, #tpu.memory_space<vmem>>, vector<16x984xf32>
    %150 = arith.maximumf %148, %149 : vector<16x984xf32>
    %151 = arith.maximumf %147, %150 : vector<16x984xf32>
    %c0_134 = arith.constant 0 : index
    %c0_135 = arith.constant 0 : index
    %152 = vector.load %arg9[%c0_134, %c0_135] : memref<984x64xf32, #tpu.memory_space<vmem>>, vector<984x64xf32>
    %cst_136 = arith.constant dense<0.000000e+00> : vector<16x64xf32>
    %153 = tpu.matmul %151, %152, %cst_136 {dimension_numbers = #tpu.dot_dimension_numbers<[1], [0], [0], [1], [0, 0, 1, 1], [], []>} : vector<16x984xf32>, vector<984x64xf32>, vector<16x64xf32> -> vector<16x64xf32>
    %154 = vector.extract_strided_slice %153 {offsets = [0, 0], sizes = [1, 64], strides = [1, 1]} : vector<16x64xf32> to vector<1x64xf32>
    %c0_137 = arith.constant 0 : index
    %c0_138 = arith.constant 0 : index
    %155 = vector.load %arg17[%c0_137, %c0_138] : memref<1x1024xf32, #tpu.memory_space<vmem>>, vector<1x64xf32>
    tpu.vector_store %arg17[%c0_137, %c0_138], %154 {strides = array<i32>} : memref<1x1024xf32, #tpu.memory_space<vmem>>, vector<1x64xf32>,
    %156 = vector.extract_strided_slice %153 {offsets = [1, 0], sizes = [1, 64], strides = [1, 1]} : vector<16x64xf32> to vector<1x64xf32>
    %c0_139 = arith.constant 0 : index
    %c64_140 = arith.constant 64 : index
    %157 = vector.load %arg17[%c0_139, %c64_140] : memref<1x1024xf32, #tpu.memory_space<vmem>>, vector<1x64xf32>
    tpu.vector_store %arg17[%c0_139, %c64_140], %156 {strides = array<i32>} : memref<1x1024xf32, #tpu.memory_space<vmem>>, vector<1x64xf32>,
    %158 = vector.extract_strided_slice %153 {offsets = [2, 0], sizes = [1, 64], strides = [1, 1]} : vector<16x64xf32> to vector<1x64xf32>
    %c0_141 = arith.constant 0 : index
    %c128 = arith.constant 128 : index
    %159 = vector.load %arg17[%c0_141, %c128] : memref<1x1024xf32, #tpu.memory_space<vmem>>, vector<1x64xf32>
    tpu.vector_store %arg17[%c0_141, %c128], %158 {strides = array<i32>} : memref<1x1024xf32, #tpu.memory_space<vmem>>, vector<1x64xf32>,
    %160 = vector.extract_strided_slice %153 {offsets = [3, 0], sizes = [1, 64], strides = [1, 1]} : vector<16x64xf32> to vector<1x64xf32>
    %c0_142 = arith.constant 0 : index
    %c192 = arith.constant 192 : index
    %161 = vector.load %arg17[%c0_142, %c192] : memref<1x1024xf32, #tpu.memory_space<vmem>>, vector<1x64xf32>
    tpu.vector_store %arg17[%c0_142, %c192], %160 {strides = array<i32>} : memref<1x1024xf32, #tpu.memory_space<vmem>>, vector<1x64xf32>,
    %162 = vector.extract_strided_slice %153 {offsets = [4, 0], sizes = [1, 64], strides = [1, 1]} : vector<16x64xf32> to vector<1x64xf32>
    %c0_143 = arith.constant 0 : index
    %c256 = arith.constant 256 : index
    %163 = vector.load %arg17[%c0_143, %c256] : memref<1x1024xf32, #tpu.memory_space<vmem>>, vector<1x64xf32>
    tpu.vector_store %arg17[%c0_143, %c256], %162 {strides = array<i32>} : memref<1x1024xf32, #tpu.memory_space<vmem>>, vector<1x64xf32>,
    %164 = vector.extract_strided_slice %153 {offsets = [5, 0], sizes = [1, 64], strides = [1, 1]} : vector<16x64xf32> to vector<1x64xf32>
    %c0_144 = arith.constant 0 : index
    %c320 = arith.constant 320 : index
    %165 = vector.load %arg17[%c0_144, %c320] : memref<1x1024xf32, #tpu.memory_space<vmem>>, vector<1x64xf32>
    tpu.vector_store %arg17[%c0_144, %c320], %164 {strides = array<i32>} : memref<1x1024xf32, #tpu.memory_space<vmem>>, vector<1x64xf32>,
    %166 = vector.extract_strided_slice %153 {offsets = [6, 0], sizes = [1, 64], strides = [1, 1]} : vector<16x64xf32> to vector<1x64xf32>
    %c0_145 = arith.constant 0 : index
    %c384 = arith.constant 384 : index
    %167 = vector.load %arg17[%c0_145, %c384] : memref<1x1024xf32, #tpu.memory_space<vmem>>, vector<1x64xf32>
    tpu.vector_store %arg17[%c0_145, %c384], %166 {strides = array<i32>} : memref<1x1024xf32, #tpu.memory_space<vmem>>, vector<1x64xf32>,
    %168 = vector.extract_strided_slice %153 {offsets = [7, 0], sizes = [1, 64], strides = [1, 1]} : vector<16x64xf32> to vector<1x64xf32>
    %c0_146 = arith.constant 0 : index
    %c448 = arith.constant 448 : index
    %169 = vector.load %arg17[%c0_146, %c448] : memref<1x1024xf32, #tpu.memory_space<vmem>>, vector<1x64xf32>
    tpu.vector_store %arg17[%c0_146, %c448], %168 {strides = array<i32>} : memref<1x1024xf32, #tpu.memory_space<vmem>>, vector<1x64xf32>,
    %170 = vector.extract_strided_slice %153 {offsets = [8, 0], sizes = [1, 64], strides = [1, 1]} : vector<16x64xf32> to vector<1x64xf32>
    %c0_147 = arith.constant 0 : index
    %c512 = arith.constant 512 : index
    %171 = vector.load %arg17[%c0_147, %c512] : memref<1x1024xf32, #tpu.memory_space<vmem>>, vector<1x64xf32>
    tpu.vector_store %arg17[%c0_147, %c512], %170 {strides = array<i32>} : memref<1x1024xf32, #tpu.memory_space<vmem>>, vector<1x64xf32>,
    %172 = vector.extract_strided_slice %153 {offsets = [9, 0], sizes = [1, 64], strides = [1, 1]} : vector<16x64xf32> to vector<1x64xf32>
    %c0_148 = arith.constant 0 : index
    %c576 = arith.constant 576 : index
    %173 = vector.load %arg17[%c0_148, %c576] : memref<1x1024xf32, #tpu.memory_space<vmem>>, vector<1x64xf32>
    tpu.vector_store %arg17[%c0_148, %c576], %172 {strides = array<i32>} : memref<1x1024xf32, #tpu.memory_space<vmem>>, vector<1x64xf32>,
    %174 = vector.extract_strided_slice %153 {offsets = [10, 0], sizes = [1, 64], strides = [1, 1]} : vector<16x64xf32> to vector<1x64xf32>
    %c0_149 = arith.constant 0 : index
    %c640 = arith.constant 640 : index
    %175 = vector.load %arg17[%c0_149, %c640] : memref<1x1024xf32, #tpu.memory_space<vmem>>, vector<1x64xf32>
    tpu.vector_store %arg17[%c0_149, %c640], %174 {strides = array<i32>} : memref<1x1024xf32, #tpu.memory_space<vmem>>, vector<1x64xf32>,
    %176 = vector.extract_strided_slice %153 {offsets = [11, 0], sizes = [1, 64], strides = [1, 1]} : vector<16x64xf32> to vector<1x64xf32>
    %c0_150 = arith.constant 0 : index
    %c704 = arith.constant 704 : index
    %177 = vector.load %arg17[%c0_150, %c704] : memref<1x1024xf32, #tpu.memory_space<vmem>>, vector<1x64xf32>
    tpu.vector_store %arg17[%c0_150, %c704], %176 {strides = array<i32>} : memref<1x1024xf32, #tpu.memory_space<vmem>>, vector<1x64xf32>,
    %178 = vector.extract_strided_slice %153 {offsets = [12, 0], sizes = [1, 64], strides = [1, 1]} : vector<16x64xf32> to vector<1x64xf32>
    %c0_151 = arith.constant 0 : index
    %c768 = arith.constant 768 : index
    %179 = vector.load %arg17[%c0_151, %c768] : memref<1x1024xf32, #tpu.memory_space<vmem>>, vector<1x64xf32>
    tpu.vector_store %arg17[%c0_151, %c768], %178 {strides = array<i32>} : memref<1x1024xf32, #tpu.memory_space<vmem>>, vector<1x64xf32>,
    %180 = vector.extract_strided_slice %153 {offsets = [13, 0], sizes = [1, 64], strides = [1, 1]} : vector<16x64xf32> to vector<1x64xf32>
    %c0_152 = arith.constant 0 : index
    %c832 = arith.constant 832 : index
    %181 = vector.load %arg17[%c0_152, %c832] : memref<1x1024xf32, #tpu.memory_space<vmem>>, vector<1x64xf32>
    tpu.vector_store %arg17[%c0_152, %c832], %180 {strides = array<i32>} : memref<1x1024xf32, #tpu.memory_space<vmem>>, vector<1x64xf32>,
    %182 = vector.extract_strided_slice %153 {offsets = [14, 0], sizes = [1, 64], strides = [1, 1]} : vector<16x64xf32> to vector<1x64xf32>
    %c0_153 = arith.constant 0 : index
    %c896 = arith.constant 896 : index
    %183 = vector.load %arg17[%c0_153, %c896] : memref<1x1024xf32, #tpu.memory_space<vmem>>, vector<1x64xf32>
    tpu.vector_store %arg17[%c0_153, %c896], %182 {strides = array<i32>} : memref<1x1024xf32, #tpu.memory_space<vmem>>, vector<1x64xf32>,
    %184 = vector.extract_strided_slice %153 {offsets = [15, 0], sizes = [1, 64], strides = [1, 1]} : vector<16x64xf32> to vector<1x64xf32>
    %c0_154 = arith.constant 0 : index
    %c960 = arith.constant 960 : index
    %185 = vector.load %arg17[%c0_154, %c960] : memref<1x1024xf32, #tpu.memory_space<vmem>>, vector<1x64xf32>
    tpu.vector_store %arg17[%c0_154, %c960], %184 {strides = array<i32>} : memref<1x1024xf32, #tpu.memory_space<vmem>>, vector<1x64xf32>,
    %c0_155 = arith.constant 0 : index
    %c0_156 = arith.constant 0 : index
    %186 = vector.load %arg17[%c0_155, %c0_156] : memref<1x1024xf32, #tpu.memory_space<vmem>>, vector<1x1024xf32>
    %c0_157 = arith.constant 0 : index
    %c0_158 = arith.constant 0 : index
    %187 = vector.load %arg6[%c0_157, %c0_158] : memref<1024x10xf32, #tpu.memory_space<vmem>>, vector<1024x10xf32>
    %cst_159 = arith.constant dense<0.000000e+00> : vector<1x10xf32>
    %188 = tpu.matmul %186, %187, %cst_159 {dimension_numbers = #tpu.dot_dimension_numbers<[1], [0], [0], [1], [0, 0, 1, 1], [], []>} : vector<1x1024xf32>, vector<1024x10xf32>, vector<1x10xf32> -> vector<1x10xf32>
    %c0_160 = arith.constant 0 : index
    %c0_161 = arith.constant 0 : index
    %189 = vector.load %arg7[%c0_160, %c0_161] : memref<1x10xf32, #tpu.memory_space<vmem>>, vector<1x10xf32>
    %190 = arith.addf %188, %189 : vector<1x10xf32>
    %191 = vector.shape_cast %190 : vector<1x10xf32> to vector<1x1x10xf32>
    %c0_162 = arith.constant 0 : index
    %c0_163 = arith.constant 0 : index
    %c0_164 = arith.constant 0 : index
    %192 = vector.load %arg10[%c0_162, %c0_163, %c0_164] : memref<1x1x10xf32, #tpu.memory_space<vmem>>, vector<1x1x10xf32>
    tpu.vector_store %arg10[%c0_162, %c0_163, %c0_164], %191 {strides = array<i32>} : memref<1x1x10xf32, #tpu.memory_space<vmem>>, vector<1x1x10xf32>,
    return
  }
  func.func @transform_0(%arg0: i32) -> (i32, i32, i32) {
    %c0_i32 = arith.constant 0 : i32
    %c0_i32_0 = arith.constant 0 : i32
    %c0_i32_1 = arith.constant 0 : i32
    return %arg0, %c0_i32, %c0_i32_0 : i32, i32, i32
  }
  func.func @transform_1(%arg0: i32) -> (i32, i32) {
    %c0_i32 = arith.constant 0 : i32
    %c0_i32_0 = arith.constant 0 : i32
    %c0_i32_1 = arith.constant 0 : i32
    return %c0_i32, %c0_i32_0 : i32, i32
  }
  func.func @transform_2(%arg0: i32) -> (i32, i32) {
    %c0_i32 = arith.constant 0 : i32
    %c0_i32_0 = arith.constant 0 : i32
    %c0_i32_1 = arith.constant 0 : i32
    return %c0_i32, %c0_i32_0 : i32, i32
  }
  func.func @transform_3(%arg0: i32) -> (i32, i32) {
    %c0_i32 = arith.constant 0 : i32
    %c0_i32_0 = arith.constant 0 : i32
    %c0_i32_1 = arith.constant 0 : i32
    return %c0_i32, %c0_i32_0 : i32, i32
  }
  func.func @transform_4(%arg0: i32) -> (i32, i32) {
    %c0_i32 = arith.constant 0 : i32
    %c0_i32_0 = arith.constant 0 : i32
    %c0_i32_1 = arith.constant 0 : i32
    return %c0_i32, %c0_i32_0 : i32, i32
  }
  func.func @transform_5(%arg0: i32) -> (i32, i32) {
    %c0_i32 = arith.constant 0 : i32
    %c0_i32_0 = arith.constant 0 : i32
    %c0_i32_1 = arith.constant 0 : i32
    return %c0_i32, %c0_i32_0 : i32, i32
  }
  func.func @transform_6(%arg0: i32) -> (i32, i32) {
    %c0_i32 = arith.constant 0 : i32
    %c0_i32_0 = arith.constant 0 : i32
    %c0_i32_1 = arith.constant 0 : i32
    return %c0_i32, %c0_i32_0 : i32, i32
  }
  func.func @transform_7(%arg0: i32) -> (i32, i32) {
    %c0_i32 = arith.constant 0 : i32
    %c0_i32_0 = arith.constant 0 : i32
    %c0_i32_1 = arith.constant 0 : i32
    return %c0_i32, %c0_i32_0 : i32, i32
  }
  func.func @transform_8(%arg0: i32) -> (i32, i32) {
    %c0_i32 = arith.constant 0 : i32
    %c0_i32_0 = arith.constant 0 : i32
    %c0_i32_1 = arith.constant 0 : i32
    return %c0_i32, %c0_i32_0 : i32, i32
  }
  func.func @transform_9(%arg0: i32) -> (i32, i32, i32) {
    %c0_i32 = arith.constant 0 : i32
    %c0_i32_0 = arith.constant 0 : i32
    %c0_i32_1 = arith.constant 0 : i32
    return %arg0, %c0_i32, %c0_i32_0 : i32, i32, i32
  }
}

</mosaic_0001>

<llo_original>
// kernel: cnn_forward.1
$region0: #{cnn_forward.1}
  #allocation0 [shape = 'u32[]', space=smem, size = 0x4, offset = 0x4, fixed_abs, tag = 'smem constant byte address 0x4 - core index']
  #allocation1 [shape = 'u32[144,128]{1,0:T(1,128)}', space=vmem, size = 0x12000, scoped, tag = 'internal scratch']
  #allocation2 [shape = 'f32[3,1160]{1,0:T(4,128)}', space=vmem, size = 0x5000, scoped, tag = 'scratch operand']
  #allocation3 [shape = 'f32[27,1088]{1,0:T(8,128)}', space=vmem, size = 0x24000, scoped, tag = 'scratch operand']
  #allocation4 [shape = 'f32[8,1124]{1,0:T(8,128)}', space=vmem, size = 0x9000, scoped, tag = 'scratch operand']
  #allocation5 [shape = 'f32[8,1228]{1,0:T(8,128)}', space=vmem, size = 0xa000, scoped, tag = 'scratch operand']
  #allocation6 [shape = 'f32[72,1088]{1,0:T(8,128)}', space=vmem, size = 0x51000, scoped, tag = 'scratch operand']
  #allocation7 [shape = 'f32[16,1158]{1,0:T(8,128)}', space=vmem, size = 0x14000, scoped, tag = 'scratch operand']
  #allocation8 [shape = 'f32[1,1024]{1,0:T(1,128)}', space=vmem, size = 0x1000, scoped, tag = 'scratch operand']
  %s0 = inlined_call_operand.vmem [shape: f32[2,3,1024], index: 0, kind: input, shape index: {}]
  %s1 = inlined_call_operand.vmem [shape: f32[8,27], index: 1, kind: input, shape index: {}]
  %s2 = inlined_call_operand.vmem [shape: f32[8,1], index: 2, kind: input, shape index: {}]
  %s3 = inlined_call_operand.vmem [shape: f32[16,72], index: 3, kind: input, shape index: {}]
  %s4 = inlined_call_operand.vmem [shape: f32[16,1], index: 4, kind: input, shape index: {}]
  %s5 = inlined_call_operand.vmem [shape: f32[1024,10], index: 5, kind: input, shape index: {}]
  %s6 = inlined_call_operand.vmem [shape: f32[1,10], index: 6, kind: input, shape index: {}]
  %s7 = inlined_call_operand.vmem [shape: f32[1,1088], index: 7, kind: input, shape index: {}]
  %s8 = inlined_call_operand.vmem [shape: f32[984,64], index: 8, kind: input, shape index: {}]
  %s9 = inlined_call_operand.hbm [shape: f32[2,1,10], index: 9, kind: output, shape index: {}]
  %s10 = sld [smem:[#allocation0]]
  $region69: #{cnn_forward.1} parent=0
    _
  %s12 = ssub.s32 1, %s10
  %s13 = scalar_select 0, %s12, %s10
  $region1: #{cnn_forward.1} parent=0
    #allocation9 [shape = 'u8[1024]{0}', space=vmem, size = 0x400, scoped, tag = 'output window, operand 0']
    #allocation10 [shape = 's32[2]{0}', space=sflag, size = 0x8, scoped, tag = 'scoped memory for cnn_forward.1']
    %14 = vsyncpa [#allocation10], 0
    %s15 = scalar_lea.sflag [#allocation10], 1
    %16 = vsyncpa %s15, 0
    loop: start=0, step=1, limit=4
    $region2: #{cnn_forward.1} parent=1 // loop_pre_header
      _
    $region3: #{cnn_forward.1} parent=1 // loop_header
      %s18 = sphi 0, %s22
      %p19 = scmp.ge.s32.totalorder %s18, 4
      %s28 = sphi 0, %s30
      %s31 = sphi 0, %s28
      %s32 = sphi 0, %s31
      %s48 = sphi 0, %s32
      %s52 = sphi 0, %s52
      %s54 = sphi 0, %s52
      %s55 = sphi 0, %s54
      %s69 = sphi 0, %s55
      %s73 = sphi 0, %s73
      %s75 = sphi 0, %s73
      %s76 = sphi 0, %s75
      %s90 = sphi 0, %s76
      %s94 = sphi 0, %s94
      %s96 = sphi 0, %s94
      %s97 = sphi 0, %s96
      %s111 = sphi 0, %s97
      %s115 = sphi 0, %s115
      %s117 = sphi 0, %s115
      %s118 = sphi 0, %s117
      %s132 = sphi 0, %s118
      %s136 = sphi 0, %s136
      %s138 = sphi 0, %s136
      %s139 = sphi 0, %s138
      %s153 = sphi 0, %s139
      %s157 = sphi 0, %s157
      %s159 = sphi 0, %s157
      %s160 = sphi 0, %s159
      %s174 = sphi 0, %s160
      %s178 = sphi 0, %s178
      %s180 = sphi 0, %s178
      %s181 = sphi 0, %s180
      %s195 = sphi 0, %s181
      %s199 = sphi 0, %s199
      %s201 = sphi 0, %s199
      %s202 = sphi 0, %s201
      %s216 = sphi 0, %s202
      %s222 = sphi 0, %s224
      %s225 = sphi 0, %s222
      %s226 = sphi 0, %s225
      %s242 = sphi 0, %s226
    $region4: #{cnn_forward.1} parent=1 // loop_header_branch
      %21 = sbr.rel (%p19) target = $region8
    $region5: #{cnn_forward.1} parent=1 // loop_body
      %s23 = ssub.s32 %s18, 1
      %s24 = ssub.s32 %s18, 2
      %s25 = sadd.s32 %s18, 1
      %s26 = ssub.s32 %s18, %s25
      %p27 = scmp.eq.s32.totalorder %s26, 0
      %s29 = sadd.s32 %s28, 1
      %s30 = scalar_select %p27, %s28, %s29
      %p33 = pneg %p27
      %p34 = scmp.eq.s32.totalorder %s18, 1
      %p35 = por %p33, %p34
      %p36 = scmp.ne.s32.totalorder %s28, %s31
      %p37 = scmp.eq.s32.totalorder %s18, 0
      %p38 = por %p36, %p37
      %p39 = scmp.ne.s32.totalorder %s28, %s31
      %p40 = scmp.eq.s32.totalorder %s23, 1
      %p41 = por %p39, %p40
      %p42 = scmp.ne.s32.totalorder %s31, %s32
      %p43 = scmp.eq.s32.totalorder %s23, 0
      %p44 = por %p42, %p43
      %p45 = scmp.ne.s32.totalorder %s31, %s32
      %p46 = scmp.eq.s32.totalorder %s24, 1
      %p47 = por %p45, %p46
      %p49 = scmp.ne.s32.totalorder %s32, %s48
      %p50 = scmp.eq.s32.totalorder %s24, 0
      %p51 = por %p49, %p50
      %s53 = sadd.s32 %s52, 1
      %p56 = scmp.eq.s32.totalorder %s18, 1
      %p57 = scmp.ne.s32.totalorder %s52, %s54
      %p58 = scmp.eq.s32.totalorder %s18, 0
      %p59 = por %p57, %p58
      %p60 = scmp.ne.s32.totalorder %s52, %s54
      %p61 = scmp.eq.s32.totalorder %s23, 1
      %p62 = por %p60, %p61
      %p63 = scmp.ne.s32.totalorder %s54, %s55
      %p64 = scmp.eq.s32.totalorder %s23, 0
      %p65 = por %p63, %p64
      %p66 = scmp.ne.s32.totalorder %s54, %s55
      %p67 = scmp.eq.s32.totalorder %s24, 1
      %p68 = por %p66, %p67
      %p70 = scmp.ne.s32.totalorder %s55, %s69
      %p71 = scmp.eq.s32.totalorder %s24, 0
      %p72 = por %p70, %p71
      %s74 = sadd.s32 %s73, 1
      %p77 = scmp.eq.s32.totalorder %s18, 1
      %p78 = scmp.ne.s32.totalorder %s73, %s75
      %p79 = scmp.eq.s32.totalorder %s18, 0
      %p80 = por %p78, %p79
      %p81 = scmp.ne.s32.totalorder %s73, %s75
      %p82 = scmp.eq.s32.totalorder %s23, 1
      %p83 = por %p81, %p82
      %p84 = scmp.ne.s32.totalorder %s75, %s76
      %p85 = scmp.eq.s32.totalorder %s23, 0
      %p86 = por %p84, %p85
      %p87 = scmp.ne.s32.totalorder %s75, %s76
      %p88 = scmp.eq.s32.totalorder %s24, 1
      %p89 = por %p87, %p88
      %p91 = scmp.ne.s32.totalorder %s76, %s90
      %p92 = scmp.eq.s32.totalorder %s24, 0
      %p93 = por %p91, %p92
      %s95 = sadd.s32 %s94, 1
      %p98 = scmp.eq.s32.totalorder %s18, 1
      %p99 = scmp.ne.s32.totalorder %s94, %s96
      %p100 = scmp.eq.s32.totalorder %s18, 0
      %p101 = por %p99, %p100
      %p102 = scmp.ne.s32.totalorder %s94, %s96
      %p103 = scmp.eq.s32.totalorder %s23, 1
      %p104 = por %p102, %p103
      %p105 = scmp.ne.s32.totalorder %s96, %s97
      %p106 = scmp.eq.s32.totalorder %s23, 0
      %p107 = por %p105, %p106
      %p108 = scmp.ne.s32.totalorder %s96, %s97
      %p109 = scmp.eq.s32.totalorder %s24, 1
      %p110 = por %p108, %p109
      %p112 = scmp.ne.s32.totalorder %s97, %s111
      %p113 = scmp.eq.s32.totalorder %s24, 0
      %p114 = por %p112, %p113
      %s116 = sadd.s32 %s115, 1
      %p119 = scmp.eq.s32.totalorder %s18, 1
      %p120 = scmp.ne.s32.totalorder %s115, %s117
      %p121 = scmp.eq.s32.totalorder %s18, 0
      %p122 = por %p120, %p121
      %p123 = scmp.ne.s32.totalorder %s115, %s117
      %p124 = scmp.eq.s32.totalorder %s23, 1
      %p125 = por %p123, %p124
      %p126 = scmp.ne.s32.totalorder %s117, %s118
      %p127 = scmp.eq.s32.totalorder %s23, 0
      %p128 = por %p126, %p127
      %p129 = scmp.ne.s32.totalorder %s117, %s118
      %p130 = scmp.eq.s32.totalorder %s24, 1
      %p131 = por %p129, %p130
      %p133 = scmp.ne.s32.totalorder %s118, %s132
      %p134 = scmp.eq.s32.totalorder %s24, 0
      %p135 = por %p133, %p134
      %s137 = sadd.s32 %s136, 1
      %p140 = scmp.eq.s32.totalorder %s18, 1
      %p141 = scmp.ne.s32.totalorder %s136, %s138
      %p142 = scmp.eq.s32.totalorder %s18, 0
      %p143 = por %p141, %p142
      %p144 = scmp.ne.s32.totalorder %s136, %s138
      %p145 = scmp.eq.s32.totalorder %s23, 1
      %p146 = por %p144, %p145
      %p147 = scmp.ne.s32.totalorder %s138, %s139
      %p148 = scmp.eq.s32.totalorder %s23, 0
      %p149 = por %p147, %p148
      %p150 = scmp.ne.s32.totalorder %s138, %s139
      %p151 = scmp.eq.s32.totalorder %s24, 1
      %p152 = por %p150, %p151
      %p154 = scmp.ne.s32.totalorder %s139, %s153
      %p155 = scmp.eq.s32.totalorder %s24, 0
      %p156 = por %p154, %p155
      %s158 = sadd.s32 %s157, 1
      %p161 = scmp.eq.s32.totalorder %s18, 1
      %p162 = scmp.ne.s32.totalorder %s157, %s159
      %p163 = scmp.eq.s32.totalorder %s18, 0
      %p164 = por %p162, %p163
      %p165 = scmp.ne.s32.totalorder %s157, %s159
      %p166 = scmp.eq.s32.totalorder %s23, 1
      %p167 = por %p165, %p166
      %p168 = scmp.ne.s32.totalorder %s159, %s160
      %p169 = scmp.eq.s32.totalorder %s23, 0
      %p170 = por %p168, %p169
      %p171 = scmp.ne.s32.totalorder %s159, %s160
      %p172 = scmp.eq.s32.totalorder %s24, 1
      %p173 = por %p171, %p172
      %p175 = scmp.ne.s32.totalorder %s160, %s174
      %p176 = scmp.eq.s32.totalorder %s24, 0
      %p177 = por %p175, %p176
      %s179 = sadd.s32 %s178, 1
      %p182 = scmp.eq.s32.totalorder %s18, 1
      %p183 = scmp.ne.s32.totalorder %s178, %s180
      %p184 = scmp.eq.s32.totalorder %s18, 0
      %p185 = por %p183, %p184
      %p186 = scmp.ne.s32.totalorder %s178, %s180
      %p187 = scmp.eq.s32.totalorder %s23, 1
      %p188 = por %p186, %p187
      %p189 = scmp.ne.s32.totalorder %s180, %s181
      %p190 = scmp.eq.s32.totalorder %s23, 0
      %p191 = por %p189, %p190
      %p192 = scmp.ne.s32.totalorder %s180, %s181
      %p193 = scmp.eq.s32.totalorder %s24, 1
      %p194 = por %p192, %p193
      %p196 = scmp.ne.s32.totalorder %s181, %s195
      %p197 = scmp.eq.s32.totalorder %s24, 0
      %p198 = por %p196, %p197
      %s200 = sadd.s32 %s199, 1
      %p203 = scmp.eq.s32.totalorder %s18, 1
      %p204 = scmp.ne.s32.totalorder %s199, %s201
      %p205 = scmp.eq.s32.totalorder %s18, 0
      %p206 = por %p204, %p205
      %p207 = scmp.ne.s32.totalorder %s199, %s201
      %p208 = scmp.eq.s32.totalorder %s23, 1
      %p209 = por %p207, %p208
      %p210 = scmp.ne.s32.totalorder %s201, %s202
      %p211 = scmp.eq.s32.totalorder %s23, 0
      %p212 = por %p210, %p211
      %p213 = scmp.ne.s32.totalorder %s201, %s202
      %p214 = scmp.eq.s32.totalorder %s24, 1
      %p215 = por %p213, %p214
      %p217 = scmp.ne.s32.totalorder %s202, %s216
      %p218 = scmp.eq.s32.totalorder %s24, 0
      %p219 = por %p217, %p218
      %s220 = ssub.s32 %s18, %s25
      %p221 = scmp.eq.s32.totalorder %s220, 0
      %s223 = sadd.s32 %s222, 1
      %s224 = scalar_select %p221, %s222, %s223
      %p227 = pneg %p221
      %p228 = scmp.eq.s32.totalorder %s18, 1
      %p229 = por %p227, %p228
      %p230 = scmp.ne.s32.totalorder %s222, %s225
      %p231 = scmp.eq.s32.totalorder %s18, 0
      %p232 = por %p230, %p231
      %p233 = scmp.ne.s32.totalorder %s222, %s225
      %p234 = scmp.eq.s32.totalorder %s23, 1
      %p235 = por %p233, %p234
      %p236 = scmp.ne.s32.totalorder %s225, %s226
      %p237 = scmp.eq.s32.totalorder %s23, 0
      %p238 = por %p236, %p237
      %p239 = scmp.ne.s32.totalorder %s225, %s226
      %p240 = scmp.eq.s32.totalorder %s24, 1
      %p241 = por %p239, %p240
      %p243 = scmp.ne.s32.totalorder %s226, %s242
      %p244 = scmp.eq.s32.totalorder %s24, 0
      %p245 = por %p243, %p244
      %p246 = scmp.le.s32.totalorder 1, %s18
      %p247 = scmp.lt.s32.totalorder %s18, 3
      %p248 = pnand %p246, %p247
      %p249 = pneg %p248
      // Predicated region
      $region9: #{cnn_forward.1} parent=5 // pred_check
        _
      $region10: #{cnn_forward.1} parent=5 // pred_check_branch
        %251 = sbr.rel (%p248) target = $region12
      $region11: #{cnn_forward.1} parent=5 // pred_region
        %s252 = ssub.s32 %s18, 1
        // Predicated region
        $region13: #{cnn_forward.1} parent=11 // pred_check
          %p253 = pneg %p65
        $region14: #{cnn_forward.1} parent=11 // pred_check_branch
          %255 = sbr.rel (%p253) target = $region16
        $region15: #{cnn_forward.1} parent=11 // pred_region
          _
        $region16: #{cnn_forward.1} parent=11 // pred_fallthru
          _
        // Predicated region
        $region17: #{cnn_forward.1} parent=11 // pred_check
          %p256 = pneg %p86
        $region18: #{cnn_forward.1} parent=11 // pred_check_branch
          %258 = sbr.rel (%p256) target = $region20
        $region19: #{cnn_forward.1} parent=11 // pred_region
          _
        $region20: #{cnn_forward.1} parent=11 // pred_fallthru
          _
        // Predicated region
        $region21: #{cnn_forward.1} parent=11 // pred_check
          %p259 = pneg %p107
        $region22: #{cnn_forward.1} parent=11 // pred_check_branch
          %261 = sbr.rel (%p259) target = $region24
        $region23: #{cnn_forward.1} parent=11 // pred_region
          _
        $region24: #{cnn_forward.1} parent=11 // pred_fallthru
          _
        // Predicated region
        $region25: #{cnn_forward.1} parent=11 // pred_check
          %p262 = pneg %p128
        $region26: #{cnn_forward.1} parent=11 // pred_check_branch
          %264 = sbr.rel (%p262) target = $region28
        $region27: #{cnn_forward.1} parent=11 // pred_region
          _
        $region28: #{cnn_forward.1} parent=11 // pred_fallthru
          _
        // Predicated region
        $region29: #{cnn_forward.1} parent=11 // pred_check
          %p265 = pneg %p149
        $region30: #{cnn_forward.1} parent=11 // pred_check_branch
          %267 = sbr.rel (%p265) target = $region32
        $region31: #{cnn_forward.1} parent=11 // pred_region
          _
        $region32: #{cnn_forward.1} parent=11 // pred_fallthru
          _
        // Predicated region
        $region33: #{cnn_forward.1} parent=11 // pred_check
          %p268 = pneg %p170
        $region34: #{cnn_forward.1} parent=11 // pred_check_branch
          %270 = sbr.rel (%p268) target = $region36
        $region35: #{cnn_forward.1} parent=11 // pred_region
          _
        $region36: #{cnn_forward.1} parent=11 // pred_fallthru
          _
        // Predicated region
        $region37: #{cnn_forward.1} parent=11 // pred_check
          %p271 = pneg %p191
        $region38: #{cnn_forward.1} parent=11 // pred_check_branch
          %273 = sbr.rel (%p271) target = $region40
        $region39: #{cnn_forward.1} parent=11 // pred_region
          _
        $region40: #{cnn_forward.1} parent=11 // pred_fallthru
          _
        // Predicated region
        $region41: #{cnn_forward.1} parent=11 // pred_check
          %p274 = pneg %p212
        $region42: #{cnn_forward.1} parent=11 // pred_check_branch
          %276 = sbr.rel (%p274) target = $region44
        $region43: #{cnn_forward.1} parent=11 // pred_region
          _
        $region44: #{cnn_forward.1} parent=11 // pred_fallthru
          _
      $region12: #{cnn_forward.1} parent=5 // pred_fallthru
        _
      %p277 = scmp.lt.s32.totalorder %s18, 2
      // Predicated region
      $region45: #{cnn_forward.1} parent=5 // pred_check
        %p278 = pneg %p277
      $region46: #{cnn_forward.1} parent=5 // pred_check_branch
        %280 = sbr.rel (%p278) target = $region48
      $region47: #{cnn_forward.1} parent=5 // pred_region
        // Predicated region
        $region49: #{cnn_forward.1} parent=47 // pred_check
          %p281 = pneg %p38
        $region50: #{cnn_forward.1} parent=47 // pred_check_branch
          %283 = sbr.rel (%p281) target = $region52
        $region51: #{cnn_forward.1} parent=47 // pred_region
          %p284 = scmp.lt.s32.totalorder %s18, 1
          %s285 = scalar_select %p284, %s18, 1
          %s286 = smul.addr %s285, 8
          %s287 = smul.addr %s286, 4
          %s288 = scalar_lea.vmem %s0, %s287
        $region52: #{cnn_forward.1} parent=47 // pred_fallthru
          _
      $region48: #{cnn_forward.1} parent=5 // pred_fallthru
        _
      %p289 = scmp.le.s32.totalorder 1, %s18
      %p290 = scmp.lt.s32.totalorder %s18, 3
      %p291 = pnand %p289, %p290
      %p292 = pneg %p291
      // Predicated region
      $region53: #{cnn_forward.1} parent=5 // pred_check
        _
      $region54: #{cnn_forward.1} parent=5 // pred_check_branch
        %294 = sbr.rel (%p291) target = $region56
      $region55: #{cnn_forward.1} parent=5 // pred_region
        %s295 = ssub.s32 %s18, 1
        %p296 = scmp.lt.s32.totalorder %s23, 1
        %s297 = scalar_select %p296, %s23, 1
        %s298 = smul.addr %s297, 8
        %s299 = smul.addr %s298, 4
        %s300 = scalar_lea.vmem %s0, %s299
        %p301 = pneg %p44
        %p302 = pneg %p41
        %p303 = pneg %p65
        %p304 = pneg %p62
        %p305 = pneg %p86
        %p306 = pneg %p83
        %p307 = pneg %p107
        %p308 = pneg %p104
        %p309 = pneg %p128
        %p310 = pneg %p125
        %p311 = pneg %p149
        %p312 = pneg %p146
        %p313 = pneg %p170
        %p314 = pneg %p167
        %p315 = pneg %p191
        %p316 = pneg %p188
        %p317 = pneg %p212
        %p318 = pneg %p209
        %p319 = pneg %p238
        %p320 = pneg %p235
        %s321 = sand.u32 %s225, 1
        %s322 = scalar_lea.sflag [#allocation10], %s321
        %s323 = sand.u32 %s225, 1
        %s324 = scalar_lea.vmem [#allocation9], %s323
        %p325 = scmp.lt.s32.totalorder %s23, 1
        %s326 = scalar_select %p325, %s23, 1
        %s327 = smul.addr %s326, 8
        %s328 = smul.addr %s327, 4
        %s329 = scalar_lea.vmem %s0, %s328
        %330 = vst [vmem:[#allocation2] sm:$0x77] 0.0
        %331 = vst [vmem:[#allocation2 + $0x8] sm:$0x77] 0.0
        %332 = vst [vmem:[#allocation2 + $0x10] sm:$0x77] 0.0
        %333 = vst [vmem:[#allocation2 + $0x18] sm:$0x77] 0.0
        %vm334 = vcmask 1042432
        %vm335 = vcmask 63492
        %vm336 = vmor %vm335, %vm334
        %337 = vst.msk [vmem:[#allocation2 + $0x20] sm:$0x77] %vm336, 0.0
        %v338 = vld [vmem:[%s329] sm:$0x77]
        %v339 = vld [vmem:[%s329 + $0x8] sm:$0x77]
        %v340 = vld [vmem:[%s329 + $0x10] sm:$0x77]
        %v341 = vld [vmem:[%s329 + $0x18] sm:$0x77]
        %343 = vrot.lane.b32.xlu0 %v338, 35
        %v344 = vpop.permute.xlu0 %343
        %vm346 = vcmask 543000
        %347 = vst.msk [vmem:[#allocation2] sm:$0x7] %vm346, %v344
        %348 = vrot.lane.b32.xlu0 %v338, 37
        %v349 = vpop.permute.xlu0 %348
        %vm351 = vcmask 821800
        %352 = vst.msk [vmem:[#allocation2] sm:$0x7] %vm351, %v349
        %353 = vrot.lane.b32.xlu0 %v338, 39
        %v354 = vpop.permute.xlu0 %353
        %v355 = vrot.slane %v354, 4
        %vm356 = vcmask 318464
        %v357 = vsel %vm356, %v355, %v354
        %vm359 = vcmask 1043256
        %vm360 = vcmask 55300
        %vm361 = vmor %vm360, %vm359
        %362 = vst.msk [vmem:[#allocation2] sm:$0x77] %vm361, %v357
        %363 = vrot.lane.b32.xlu0 %v338, 41
        %v364 = vpop.permute.xlu0 %363
        %vm366 = vcmask 329800
        %367 = vst.msk [vmem:[#allocation2 + $0x4] sm:$0x7] %vm366, %v364
        %368 = vrot.lane.b32.xlu0 %v338, 43
        %v369 = vpop.permute.xlu0 %368
        %v370 = vrot.slane %v369, 4
        %vm371 = vcmask 351232
        %v372 = vsel %vm371, %v369, %v370
        %vm374 = vcmask 608600
        %375 = vst.msk [vmem:[#allocation2 + $0x4] sm:$0x7] %vm374, %v372
        %376 = vrot.lane.b32.xlu0 %v338, 45
        %v377 = vpop.permute.xlu0 %376
        %v378 = vrot.slane %v377, 4
        %vm379 = vcmask 367616
        %v380 = vsel %vm379, %v377, %v378
        %vm382 = vcmask 887400
        %383 = vst.msk [vmem:[#allocation2 + $0x4] sm:$0x7] %vm382, %v380
        %384 = vrot.lane.b32.xlu0 %v338, 47
        %v385 = vpop.permute.xlu0 %384
        %v386 = vrot.slane %v385, 4
        %vm387 = vcmask 384000
        %v388 = vsel %vm387, %v385, %v386
        %vm390 = vcmask 1043320
        %vm391 = vcmask 120836
        %vm392 = vmor %vm391, %vm390
        %393 = vst.msk [vmem:[#allocation2 + $0x4] sm:$0x77] %vm392, %v388
        %394 = vrot.lane.b32.xlu0 %v338, 49
        %v395 = vpop.permute.xlu0 %394
        %v396 = vrot.slane %v395, 4
        %vm398 = vcmask 395400
        %399 = vst.msk [vmem:[#allocation2 + $0x8] sm:$0x7] %vm398, %v396
        %401 = vrot.lane.b32.xlu0 %v339, 51
        %v402 = vpop.permute.xlu0 %401
        %vm404 = vcmask 674200
        %405 = vst.msk [vmem:[#allocation2 + $0x8] sm:$0x7] %vm404, %v402
        %406 = vrot.lane.b32.xlu0 %v339, 53
        %v407 = vpop.permute.xlu0 %406
        %vm409 = vcmask 953000
        %410 = vst.msk [vmem:[#allocation2 + $0x8] sm:$0x7] %vm409, %v407
        %411 = vrot.lane.b32.xlu0 %v339, 55
        %v412 = vpop.permute.xlu0 %411
        %v413 = vrot.slane %v412, 4
        %vm414 = vcmask 449536
        %v415 = vsel %vm414, %v413, %v412
        %vm417 = vcmask 1043384
        %vm418 = vcmask 186372
        %vm419 = vmor %vm418, %vm417
        %420 = vst.msk [vmem:[#allocation2 + $0x8] sm:$0x77] %vm419, %v415
        %421 = vrot.lane.b32.xlu0 %v339, 57
        %v422 = vpop.permute.xlu0 %421
        %vm424 = vcmask 461000
        %425 = vst.msk [vmem:[#allocation2 + $0xc] sm:$0x7] %vm424, %v422
        %426 = vrot.lane.b32.xlu0 %v339, 59
        %v427 = vpop.permute.xlu0 %426
        %v428 = vrot.slane %v427, 4
        %vm429 = vcmask 482304
        %v430 = vsel %vm429, %v427, %v428
        %vm432 = vcmask 739800
        %433 = vst.msk [vmem:[#allocation2 + $0xc] sm:$0x7] %vm432, %v430
        %434 = vrot.lane.b32.xlu0 %v339, 61
        %v435 = vpop.permute.xlu0 %434
        %v436 = vrot.slane %v435, 4
        %vm437 = vcmask 498688
        %v438 = vsel %vm437, %v435, %v436
        %vm440 = vcmask 1018600
        %441 = vst.msk [vmem:[#allocation2 + $0xc] sm:$0x7] %vm440, %v438
        %442 = vrot.lane.b32.xlu0 %v339, 63
        %v443 = vpop.permute.xlu0 %442
        %v444 = vrot.slane %v443, 4
        %vm445 = vcmask 515072
        %v446 = vsel %vm445, %v443, %v444
        %vm448 = vcmask 1043448
        %vm449 = vcmask 251908
        %vm450 = vmor %vm449, %vm448
        %451 = vst.msk [vmem:[#allocation2 + $0xc] sm:$0x77] %vm450, %v446
        %452 = vrot.lane.b32.xlu0 %v339, 65
        %v453 = vpop.permute.xlu0 %452
        %v454 = vrot.slane %v453, 4
        %vm456 = vcmask 526600
        %457 = vst.msk [vmem:[#allocation2 + $0x10] sm:$0x7] %vm456, %v454
        %459 = vrot.lane.b32.xlu0 %v340, 67
        %v460 = vpop.permute.xlu0 %459
        %vm462 = vcmask 805400
        %463 = vst.msk [vmem:[#allocation2 + $0x10] sm:$0x7] %vm462, %v460
        %464 = vrot.lane.b32.xlu0 %v340, 69
        %v465 = vpop.permute.xlu0 %464
        %v466 = vrot.slane %v465, 4
        %vm467 = vcmask 564224
        %v468 = vsel %vm467, %v466, %v465
        %vm470 = vcmask 1043240
        %vm471 = vcmask 38916
        %vm472 = vmor %vm471, %vm470
        %473 = vst.msk [vmem:[#allocation2 + $0x10] sm:$0x77] %vm472, %v468
        %474 = vrot.lane.b32.xlu0 %v340, 71
        %v475 = vpop.permute.xlu0 %474
        %vm477 = vcmask 313400
        %478 = vst.msk [vmem:[#allocation2 + $0x14] sm:$0x7] %vm477, %v475
        %479 = vrot.lane.b32.xlu0 %v340, 73
        %v480 = vpop.permute.xlu0 %479
        %vm482 = vcmask 592200
        %483 = vst.msk [vmem:[#allocation2 + $0x14] sm:$0x7] %vm482, %v480
        %484 = vrot.lane.b32.xlu0 %v340, 75
        %v485 = vpop.permute.xlu0 %484
        %v486 = vrot.slane %v485, 4
        %vm487 = vcmask 613376
        %v488 = vsel %vm487, %v485, %v486
        %vm490 = vcmask 871000
        %491 = vst.msk [vmem:[#allocation2 + $0x14] sm:$0x7] %vm490, %v488
        %492 = vrot.lane.b32.xlu0 %v340, 77
        %v493 = vpop.permute.xlu0 %492
        %v494 = vrot.slane %v493, 4
        %vm495 = vcmask 629760
        %v496 = vsel %vm495, %v493, %v494
        %vm498 = vcmask 1043304
        %vm499 = vcmask 104452
        %vm500 = vmor %vm499, %vm498
        %501 = vst.msk [vmem:[#allocation2 + $0x14] sm:$0x77] %vm500, %v496
        %502 = vrot.lane.b32.xlu0 %v340, 79
        %v503 = vpop.permute.xlu0 %502
        %v504 = vrot.slane %v503, 4
        %vm506 = vcmask 379000
        %507 = vst.msk [vmem:[#allocation2 + $0x18] sm:$0x7] %vm506, %v504
        %508 = vrot.lane.b32.xlu0 %v340, 81
        %v509 = vpop.permute.xlu0 %508
        %v510 = vrot.slane %v509, 4
        %vm512 = vcmask 657800
        %513 = vst.msk [vmem:[#allocation2 + $0x18] sm:$0x7] %vm512, %v510
        %515 = vrot.lane.b32.xlu0 %v341, 83
        %v516 = vpop.permute.xlu0 %515
        %vm518 = vcmask 936600
        %519 = vst.msk [vmem:[#allocation2 + $0x18] sm:$0x7] %vm518, %v516
        %520 = vrot.lane.b32.xlu0 %v341, 85
        %v521 = vpop.permute.xlu0 %520
        %v522 = vrot.slane %v521, 4
        %vm523 = vcmask 695296
        %v524 = vsel %vm523, %v522, %v521
        %vm526 = vcmask 1043368
        %vm527 = vcmask 169988
        %vm528 = vmor %vm527, %vm526
        %529 = vst.msk [vmem:[#allocation2 + $0x18] sm:$0x77] %vm528, %v524
        %530 = vrot.lane.b32.xlu0 %v341, 87
        %v531 = vpop.permute.xlu0 %530
        %vm533 = vcmask 444600
        %534 = vst.msk [vmem:[#allocation2 + $0x1c] sm:$0x7] %vm533, %v531
        %535 = vrot.lane.b32.xlu0 %v341, 89
        %v536 = vpop.permute.xlu0 %535
        %vm538 = vcmask 723400
        %539 = vst.msk [vmem:[#allocation2 + $0x1c] sm:$0x7] %vm538, %v536
        %540 = vrot.lane.b32.xlu0 %v341, 91
        %v541 = vpop.permute.xlu0 %540
        %v542 = vrot.slane %v541, 4
        %vm543 = vcmask 744448
        %v544 = vsel %vm543, %v541, %v542
        %vm546 = vcmask 1002200
        %547 = vst.msk [vmem:[#allocation2 + $0x1c] sm:$0x7] %vm546, %v544
        %548 = vrot.lane.b32.xlu0 %v341, 93
        %v549 = vpop.permute.xlu0 %548
        %v550 = vrot.slane %v549, 4
        %vm551 = vcmask 760832
        %v552 = vsel %vm551, %v549, %v550
        %vm554 = vcmask 1043432
        %vm555 = vcmask 235524
        %vm556 = vmor %vm555, %vm554
        %557 = vst.msk [vmem:[#allocation2 + $0x1c] sm:$0x77] %vm556, %v552
        %558 = vrot.lane.b32.xlu0 %v341, 95
        %v559 = vpop.permute.xlu0 %558
        %v560 = vrot.slane %v559, 4
        %vm562 = vcmask 510200
        %563 = vst.msk [vmem:[#allocation2 + $0x20] sm:$0x7] %vm562, %v560
        %564 = vrot.lane.b32.xlu0 %v341, 97
        %v565 = vpop.permute.xlu0 %564
        %v566 = vrot.slane %v565, 4
        %vm568 = vcmask 789000
        %569 = vst.msk [vmem:[#allocation2 + $0x20] sm:$0x7] %vm568, %v566
        %v570 = vld [vmem:[#allocation2] sm:$0x77]
        %v571 = vld [vmem:[#allocation2 + $0x8] sm:$0x77]
        %v572 = vld [vmem:[#allocation2 + $0x10] sm:$0x77]
        %v573 = vld [vmem:[#allocation2 + $0x18] sm:$0x77]
        %v574 = vld [vmem:[#allocation2 + $0x20] sm:$0x7]
        %v579 = vcombine.high %v570, %v570
        %v580 = vcombine.high %v571, %v571
        %v581 = vcombine.high %v572, %v572
        %v582 = vcombine.high %v573, %v573
        %587 = vst [vmem:[#allocation3] sm:$0x7] %v570
        %588 = vst [vmem:[#allocation3 + $0x8] sm:$0x7] %v579
        %589 = vst [vmem:[#allocation3 + $0x10] sm:$0x7] %v571
        %590 = vst [vmem:[#allocation3 + $0x18] sm:$0x7] %v580
        %591 = vst [vmem:[#allocation3 + $0x20] sm:$0x7] %v572
        %592 = vst [vmem:[#allocation3 + $0x28] sm:$0x7] %v581
        %593 = vst [vmem:[#allocation3 + $0x30] sm:$0x7] %v573
        %594 = vst [vmem:[#allocation3 + $0x38] sm:$0x7] %v582
        %vm595 = vcmask 518144
        %596 = vst.msk [vmem:[#allocation3 + $0x40] sm:$0x7] %vm595, %v574
        %v597 = vld [vmem:[#allocation2] sm:$0x77]
        %v598 = vld [vmem:[#allocation2 + $0x8] sm:$0x77]
        %v599 = vld [vmem:[#allocation2 + $0x10] sm:$0x77]
        %v600 = vld [vmem:[#allocation2 + $0x18] sm:$0x77]
        %v601 = vld [vmem:[#allocation2 + $0x20] sm:$0x7]
        %v607 = vcombine.high %v597, %v597
        %v608 = vcombine.high %v598, %v598
        %v609 = vcombine.high %v599, %v599
        %v610 = vcombine.high %v600, %v600
        %v611 = vrot.slane %v597, 5
        %v612 = vrot.slane %v607, 5
        %v613 = vrot.slane %v598, 5
        %v614 = vrot.slane %v608, 5
        %v615 = vrot.slane %v599, 5
        %v616 = vrot.slane %v609, 5
        %v617 = vrot.slane %v600, 5
        %v618 = vrot.slane %v610, 5
        %v619 = vrot.slane %v601, 5
        %620 = vrot.lane.b32.xlu0 %v611, 127
        %v621 = vpop.permute.xlu0 %620
        %622 = vrot.lane.b32.xlu0 %v612, 127
        %v623 = vpop.permute.xlu0 %622
        %624 = vrot.lane.b32.xlu0 %v613, 127
        %v625 = vpop.permute.xlu0 %624
        %626 = vrot.lane.b32.xlu0 %v614, 127
        %v627 = vpop.permute.xlu0 %626
        %628 = vrot.lane.b32.xlu0 %v615, 127
        %v629 = vpop.permute.xlu0 %628
        %630 = vrot.lane.b32.xlu0 %v616, 127
        %v631 = vpop.permute.xlu0 %630
        %632 = vrot.lane.b32.xlu0 %v617, 127
        %v633 = vpop.permute.xlu0 %632
        %634 = vrot.lane.b32.xlu0 %v618, 127
        %v635 = vpop.permute.xlu0 %634
        %636 = vrot.lane.b32.xlu0 %v619, 127
        %v637 = vpop.permute.xlu0 %636
        %vm638 = vcmask 1039360
        %v639 = vsel %vm638, %v621, %v623
        %v640 = vsel %vm638, %v623, %v625
        %v641 = vsel %vm638, %v625, %v627
        %v642 = vsel %vm638, %v627, %v629
        %v643 = vsel %vm638, %v629, %v631
        %v644 = vsel %vm638, %v631, %v633
        %v645 = vsel %vm638, %v633, %v635
        %v646 = vsel %vm638, %v635, %v637
        %656 = vst [vmem:[#allocation3] sm:$0x38] %v639
        %657 = vst [vmem:[#allocation3 + $0x8] sm:$0x38] %v640
        %658 = vst [vmem:[#allocation3 + $0x10] sm:$0x38] %v641
        %659 = vst [vmem:[#allocation3 + $0x18] sm:$0x38] %v642
        %660 = vst [vmem:[#allocation3 + $0x20] sm:$0x38] %v643
        %661 = vst [vmem:[#allocation3 + $0x28] sm:$0x38] %v644
        %662 = vst [vmem:[#allocation3 + $0x30] sm:$0x38] %v645
        %663 = vst [vmem:[#allocation3 + $0x38] sm:$0x38] %v646
        %vm664 = vcmask 521219
        %665 = vst.msk [vmem:[#allocation3 + $0x40] sm:$0x38] %vm664, %v637
        %v666 = vld [vmem:[#allocation2] sm:$0x77]
        %v667 = vld [vmem:[#allocation2 + $0x8] sm:$0x77]
        %v668 = vld [vmem:[#allocation2 + $0x10] sm:$0x77]
        %v669 = vld [vmem:[#allocation2 + $0x18] sm:$0x77]
        %v670 = vld [vmem:[#allocation2 + $0x20] sm:$0x7]
        %v676 = vcombine.high %v666, %v666
        %v677 = vcombine.high %v667, %v667
        %v678 = vcombine.high %v668, %v668
        %v679 = vcombine.high %v669, %v669
        %v680 = vrot.slane %v666, 2
        %v681 = vrot.slane %v676, 2
        %v682 = vrot.slane %v667, 2
        %v683 = vrot.slane %v677, 2
        %v684 = vrot.slane %v668, 2
        %v685 = vrot.slane %v678, 2
        %v686 = vrot.slane %v669, 2
        %v687 = vrot.slane %v679, 2
        %v688 = vrot.slane %v670, 2
        %689 = vrot.lane.b32.xlu0 %v680, 126
        %v690 = vpop.permute.xlu0 %689
        %691 = vrot.lane.b32.xlu0 %v681, 126
        %v692 = vpop.permute.xlu0 %691
        %693 = vrot.lane.b32.xlu0 %v682, 126
        %v694 = vpop.permute.xlu0 %693
        %695 = vrot.lane.b32.xlu0 %v683, 126
        %v696 = vpop.permute.xlu0 %695
        %697 = vrot.lane.b32.xlu0 %v684, 126
        %v698 = vpop.permute.xlu0 %697
        %699 = vrot.lane.b32.xlu0 %v685, 126
        %v700 = vpop.permute.xlu0 %699
        %701 = vrot.lane.b32.xlu0 %v686, 126
        %v702 = vpop.permute.xlu0 %701
        %703 = vrot.lane.b32.xlu0 %v687, 126
        %v704 = vpop.permute.xlu0 %703
        %705 = vrot.lane.b32.xlu0 %v688, 126
        %v706 = vpop.permute.xlu0 %705
        %vm707 = vcmask 1031168
        %v708 = vsel %vm707, %v690, %v692
        %v709 = vsel %vm707, %v692, %v694
        %v710 = vsel %vm707, %v694, %v696
        %v711 = vsel %vm707, %v696, %v698
        %v712 = vsel %vm707, %v698, %v700
        %v713 = vsel %vm707, %v700, %v702
        %v714 = vsel %vm707, %v702, %v704
        %v715 = vsel %vm707, %v704, %v706
        %725 = vst [vmem:[#allocation3] sm:$0xc0] %v708
        %726 = vst [vmem:[#allocation3 + $0x8] sm:$0xc0] %v709
        %727 = vst [vmem:[#allocation3 + $0x10] sm:$0xc0] %v710
        %728 = vst [vmem:[#allocation3 + $0x18] sm:$0xc0] %v711
        %729 = vst [vmem:[#allocation3 + $0x20] sm:$0xc0] %v712
        %730 = vst [vmem:[#allocation3 + $0x28] sm:$0xc0] %v713
        %731 = vst [vmem:[#allocation3 + $0x30] sm:$0xc0] %v714
        %732 = vst [vmem:[#allocation3 + $0x38] sm:$0xc0] %v715
        %vm733 = vcmask 523270
        %734 = vst.msk [vmem:[#allocation3 + $0x40] sm:$0xc0] %vm733, %v706
        %735 = vst [vmem:[#allocation3 + $0x48] sm:$0x1] %v708
        %736 = vst [vmem:[#allocation3 + $0x50] sm:$0x1] %v709
        %737 = vst [vmem:[#allocation3 + $0x58] sm:$0x1] %v710
        %738 = vst [vmem:[#allocation3 + $0x60] sm:$0x1] %v711
        %739 = vst [vmem:[#allocation3 + $0x68] sm:$0x1] %v712
        %740 = vst [vmem:[#allocation3 + $0x70] sm:$0x1] %v713
        %741 = vst [vmem:[#allocation3 + $0x78] sm:$0x1] %v714
        %742 = vst [vmem:[#allocation3 + $0x80] sm:$0x1] %v715
        %vm743 = vcmask 516096
        %744 = vst.msk [vmem:[#allocation3 + $0x88] sm:$0x1] %vm743, %v706
        %v745 = vld [vmem:[#allocation2] sm:$0x77]
        %v746 = vld [vmem:[#allocation2 + $0x8] sm:$0x77]
        %v747 = vld [vmem:[#allocation2 + $0x10] sm:$0x77]
        %v748 = vld [vmem:[#allocation2 + $0x18] sm:$0x77]
        %v749 = vld [vmem:[#allocation2 + $0x20] sm:$0x7]
        %v755 = vcombine.high %v745, %v745
        %v756 = vcombine.high %v746, %v746
        %v757 = vcombine.high %v747, %v747
        %v758 = vcombine.high %v748, %v748
        %v759 = vrot.slane %v745, 7
        %v760 = vrot.slane %v755, 7
        %v761 = vrot.slane %v746, 7
        %v762 = vrot.slane %v756, 7
        %v763 = vrot.slane %v747, 7
        %v764 = vrot.slane %v757, 7
        %v765 = vrot.slane %v748, 7
        %v766 = vrot.slane %v758, 7
        %v767 = vrot.slane %v749, 7
        %768 = vrot.lane.b32.xlu0 %v759, 94
        %v769 = vpop.permute.xlu0 %768
        %770 = vrot.lane.b32.xlu0 %v760, 94
        %v771 = vpop.permute.xlu0 %770
        %772 = vrot.lane.b32.xlu0 %v761, 94
        %v773 = vpop.permute.xlu0 %772
        %774 = vrot.lane.b32.xlu0 %v762, 94
        %v775 = vpop.permute.xlu0 %774
        %776 = vrot.lane.b32.xlu0 %v763, 94
        %v777 = vpop.permute.xlu0 %776
        %778 = vrot.lane.b32.xlu0 %v764, 94
        %v779 = vpop.permute.xlu0 %778
        %780 = vrot.lane.b32.xlu0 %v765, 94
        %v781 = vpop.permute.xlu0 %780
        %782 = vrot.lane.b32.xlu0 %v766, 94
        %v783 = vpop.permute.xlu0 %782
        %784 = vrot.lane.b32.xlu0 %v767, 94
        %v785 = vpop.permute.xlu0 %784
        %vm786 = vcmask 769024
        %v787 = vsel %vm786, %v769, %v771
        %v788 = vsel %vm786, %v771, %v773
        %v789 = vsel %vm786, %v773, %v775
        %v790 = vsel %vm786, %v775, %v777
        %v791 = vsel %vm786, %v777, %v779
        %v792 = vsel %vm786, %v779, %v781
        %v793 = vsel %vm786, %v781, %v783
        %v794 = vsel %vm786, %v783, %v785
        %804 = vst [vmem:[#allocation3 + $0x48] sm:$0xe] %v787
        %805 = vst [vmem:[#allocation3 + $0x50] sm:$0xe] %v788
        %806 = vst [vmem:[#allocation3 + $0x58] sm:$0xe] %v789
        %807 = vst [vmem:[#allocation3 + $0x60] sm:$0xe] %v790
        %808 = vst [vmem:[#allocation3 + $0x68] sm:$0xe] %v791
        %809 = vst [vmem:[#allocation3 + $0x70] sm:$0xe] %v792
        %810 = vst [vmem:[#allocation3 + $0x78] sm:$0xe] %v793
        %811 = vst [vmem:[#allocation3 + $0x80] sm:$0xe] %v794
        %vm812 = vcmask 519169
        %813 = vst.msk [vmem:[#allocation3 + $0x88] sm:$0xe] %vm812, %v785
        %v814 = vld [vmem:[#allocation2] sm:$0x77]
        %v815 = vld [vmem:[#allocation2 + $0x8] sm:$0x77]
        %v816 = vld [vmem:[#allocation2 + $0x10] sm:$0x77]
        %v817 = vld [vmem:[#allocation2 + $0x18] sm:$0x77]
        %v818 = vld [vmem:[#allocation2 + $0x20] sm:$0x7]
        %v824 = vcombine.low %v814, %v814
        %v825 = vcombine.low %v815, %v815
        %v826 = vcombine.low %v816, %v816
        %v827 = vcombine.low %v817, %v817
        %v828 = vcombine.low %v818, %v818
        %829 = vrot.lane.b32.xlu0 %v824, 93
        %v830 = vpop.permute.xlu0 %829
        %831 = vrot.lane.b32.xlu0 %v814, 93
        %v832 = vpop.permute.xlu0 %831
        %833 = vrot.lane.b32.xlu0 %v825, 93
        %v834 = vpop.permute.xlu0 %833
        %835 = vrot.lane.b32.xlu0 %v815, 93
        %v836 = vpop.permute.xlu0 %835
        %837 = vrot.lane.b32.xlu0 %v826, 93
        %v838 = vpop.permute.xlu0 %837
        %839 = vrot.lane.b32.xlu0 %v816, 93
        %v840 = vpop.permute.xlu0 %839
        %841 = vrot.lane.b32.xlu0 %v827, 93
        %v842 = vpop.permute.xlu0 %841
        %843 = vrot.lane.b32.xlu0 %v817, 93
        %v844 = vpop.permute.xlu0 %843
        %845 = vrot.lane.b32.xlu0 %v828, 93
        %v846 = vpop.permute.xlu0 %845
        %v847 = vsel %vm551, %v830, %v832
        %v848 = vsel %vm551, %v832, %v834
        %v849 = vsel %vm551, %v834, %v836
        %v850 = vsel %vm551, %v836, %v838
        %v851 = vsel %vm551, %v838, %v840
        %v852 = vsel %vm551, %v840, %v842
        %v853 = vsel %vm551, %v842, %v844
        %v854 = vsel %vm551, %v844, %v846
        %864 = vst [vmem:[#allocation3 + $0x48] sm:$0x70] %v847
        %865 = vst [vmem:[#allocation3 + $0x50] sm:$0x70] %v848
        %866 = vst [vmem:[#allocation3 + $0x58] sm:$0x70] %v849
        %867 = vst [vmem:[#allocation3 + $0x60] sm:$0x70] %v850
        %868 = vst [vmem:[#allocation3 + $0x68] sm:$0x70] %v851
        %869 = vst [vmem:[#allocation3 + $0x70] sm:$0x70] %v852
        %870 = vst [vmem:[#allocation3 + $0x78] sm:$0x70] %v853
        %871 = vst [vmem:[#allocation3 + $0x80] sm:$0x70] %v854
        %vm872 = vcmask 522244
        %873 = vst.msk [vmem:[#allocation3 + $0x88] sm:$0x70] %vm872, %v846
        %v874 = vld [vmem:[#allocation2] sm:$0x77]
        %v875 = vld [vmem:[#allocation2 + $0x8] sm:$0x77]
        %v876 = vld [vmem:[#allocation2 + $0x10] sm:$0x77]
        %v877 = vld [vmem:[#allocation2 + $0x18] sm:$0x77]
        %v878 = vld [vmem:[#allocation2 + $0x20] sm:$0x7]
        %v884 = vcombine.high %v874, %v874
        %v885 = vcombine.high %v875, %v875
        %v886 = vcombine.high %v876, %v876
        %v887 = vcombine.high %v877, %v877
        %v888 = vrot.slane %v874, 1
        %v889 = vrot.slane %v884, 1
        %v890 = vrot.slane %v875, 1
        %v891 = vrot.slane %v885, 1
        %v892 = vrot.slane %v876, 1
        %v893 = vrot.slane %v886, 1
        %v894 = vrot.slane %v877, 1
        %v895 = vrot.slane %v887, 1
        %v896 = vrot.slane %v878, 1
        %897 = vrot.lane.b32.xlu0 %v888, 92
        %v898 = vpop.permute.xlu0 %897
        %899 = vrot.lane.b32.xlu0 %v889, 92
        %v900 = vpop.permute.xlu0 %899
        %901 = vrot.lane.b32.xlu0 %v890, 92
        %v902 = vpop.permute.xlu0 %901
        %903 = vrot.lane.b32.xlu0 %v891, 92
        %v904 = vpop.permute.xlu0 %903
        %905 = vrot.lane.b32.xlu0 %v892, 92
        %v906 = vpop.permute.xlu0 %905
        %907 = vrot.lane.b32.xlu0 %v893, 92
        %v908 = vpop.permute.xlu0 %907
        %909 = vrot.lane.b32.xlu0 %v894, 92
        %v910 = vpop.permute.xlu0 %909
        %911 = vrot.lane.b32.xlu0 %v895, 92
        %v912 = vpop.permute.xlu0 %911
        %913 = vrot.lane.b32.xlu0 %v896, 92
        %v914 = vpop.permute.xlu0 %913
        %vm915 = vcmask 752640
        %v916 = vsel %vm915, %v898, %v900
        %v917 = vsel %vm915, %v900, %v902
        %v918 = vsel %vm915, %v902, %v904
        %v919 = vsel %vm915, %v904, %v906
        %v920 = vsel %vm915, %v906, %v908
        %v921 = vsel %vm915, %v908, %v910
        %v922 = vsel %vm915, %v910, %v912
        %v923 = vsel %vm915, %v912, %v914
        %933 = vst [vmem:[#allocation3 + $0x48] sm:$0x80] %v916
        %934 = vst [vmem:[#allocation3 + $0x50] sm:$0x80] %v917
        %935 = vst [vmem:[#allocation3 + $0x58] sm:$0x80] %v918
        %936 = vst [vmem:[#allocation3 + $0x60] sm:$0x80] %v919
        %937 = vst [vmem:[#allocation3 + $0x68] sm:$0x80] %v920
        %938 = vst [vmem:[#allocation3 + $0x70] sm:$0x80] %v921
        %939 = vst [vmem:[#allocation3 + $0x78] sm:$0x80] %v922
        %940 = vst [vmem:[#allocation3 + $0x80] sm:$0x80] %v923
        %vm941 = vcmask 523271
        %942 = vst.msk [vmem:[#allocation3 + $0x88] sm:$0x80] %vm941, %v914
        %943 = vst [vmem:[#allocation3 + $0x90] sm:$0x3] %v916
        %944 = vst [vmem:[#allocation3 + $0x98] sm:$0x3] %v917
        %945 = vst [vmem:[#allocation3 + $0xa0] sm:$0x3] %v918
        %946 = vst [vmem:[#allocation3 + $0xa8] sm:$0x3] %v919
        %947 = vst [vmem:[#allocation3 + $0xb0] sm:$0x3] %v920
        %948 = vst [vmem:[#allocation3 + $0xb8] sm:$0x3] %v921
        %949 = vst [vmem:[#allocation3 + $0xc0] sm:$0x3] %v922
        %950 = vst [vmem:[#allocation3 + $0xc8] sm:$0x3] %v923
        %vm951 = vcmask 517120
        %952 = vst.msk [vmem:[#allocation3 + $0xd0] sm:$0x3] %vm951, %v914
        %v953 = vld [vmem:[#allocation2] sm:$0x77]
        %v954 = vld [vmem:[#allocation2 + $0x8] sm:$0x77]
        %v955 = vld [vmem:[#allocation2 + $0x10] sm:$0x77]
        %v956 = vld [vmem:[#allocation2 + $0x18] sm:$0x77]
        %v957 = vld [vmem:[#allocation2 + $0x20] sm:$0x77]
        %v963 = vcombine.high %v953, %v953
        %v964 = vcombine.high %v954, %v954
        %v965 = vcombine.high %v955, %v955
        %v966 = vcombine.high %v956, %v956
        %v967 = vcombine.high %v957, %v957
        %v968 = vrot.slane %v953, 6
        %v969 = vrot.slane %v963, 6
        %v970 = vrot.slane %v954, 6
        %v971 = vrot.slane %v964, 6
        %v972 = vrot.slane %v955, 6
        %v973 = vrot.slane %v965, 6
        %v974 = vrot.slane %v956, 6
        %v975 = vrot.slane %v966, 6
        %v976 = vrot.slane %v957, 6
        %v977 = vrot.slane %v967, 6
        %978 = vrot.lane.b32.xlu0 %v968, 60
        %v979 = vpop.permute.xlu0 %978
        %980 = vrot.lane.b32.xlu0 %v969, 60
        %v981 = vpop.permute.xlu0 %980
        %982 = vrot.lane.b32.xlu0 %v970, 60
        %v983 = vpop.permute.xlu0 %982
        %984 = vrot.lane.b32.xlu0 %v971, 60
        %v985 = vpop.permute.xlu0 %984
        %986 = vrot.lane.b32.xlu0 %v972, 60
        %v987 = vpop.permute.xlu0 %986
        %988 = vrot.lane.b32.xlu0 %v973, 60
        %v989 = vpop.permute.xlu0 %988
        %990 = vrot.lane.b32.xlu0 %v974, 60
        %v991 = vpop.permute.xlu0 %990
        %992 = vrot.lane.b32.xlu0 %v975, 60
        %v993 = vpop.permute.xlu0 %992
        %994 = vrot.lane.b32.xlu0 %v976, 60
        %v995 = vpop.permute.xlu0 %994
        %996 = vrot.lane.b32.xlu0 %v977, 60
        %v997 = vpop.permute.xlu0 %996
        %vm998 = vcmask 490496
        %v999 = vsel %vm998, %v979, %v981
        %v1000 = vsel %vm998, %v981, %v983
        %v1001 = vsel %vm998, %v983, %v985
        %v1002 = vsel %vm998, %v985, %v987
        %v1003 = vsel %vm998, %v987, %v989
        %v1004 = vsel %vm998, %v989, %v991
        %v1005 = vsel %vm998, %v991, %v993
        %v1006 = vsel %vm998, %v993, %v995
        %v1007 = vsel %vm998, %v995, %v997
        %1017 = vst [vmem:[#allocation3 + $0x90] sm:$0x1c] %v999
        %1018 = vst [vmem:[#allocation3 + $0x98] sm:$0x1c] %v1000
        %1019 = vst [vmem:[#allocation3 + $0xa0] sm:$0x1c] %v1001
        %1020 = vst [vmem:[#allocation3 + $0xa8] sm:$0x1c] %v1002
        %1021 = vst [vmem:[#allocation3 + $0xb0] sm:$0x1c] %v1003
        %1022 = vst [vmem:[#allocation3 + $0xb8] sm:$0x1c] %v1004
        %1023 = vst [vmem:[#allocation3 + $0xc0] sm:$0x1c] %v1005
        %1024 = vst [vmem:[#allocation3 + $0xc8] sm:$0x1c] %v1006
        %vm1025 = vcmask 520194
        %1026 = vst.msk [vmem:[#allocation3 + $0xd0] sm:$0x1c] %vm1025, %v1007
        %v1027 = vld [vmem:[#allocation2] sm:$0x77]
        %v1028 = vld [vmem:[#allocation2 + $0x8] sm:$0x77]
        %v1029 = vld [vmem:[#allocation2 + $0x10] sm:$0x77]
        %v1030 = vld [vmem:[#allocation2 + $0x18] sm:$0x77]
        %v1031 = vld [vmem:[#allocation2 + $0x20] sm:$0x77]
        %v1037 = vcombine.high %v1027, %v1027
        %v1038 = vcombine.high %v1028, %v1028
        %v1039 = vcombine.high %v1029, %v1029
        %v1040 = vcombine.high %v1030, %v1030
        %v1041 = vcombine.high %v1031, %v1031
        %v1042 = vrot.slane %v1027, 3
        %v1043 = vrot.slane %v1037, 3
        %v1044 = vrot.slane %v1028, 3
        %v1045 = vrot.slane %v1038, 3
        %v1046 = vrot.slane %v1029, 3
        %v1047 = vrot.slane %v1039, 3
        %v1048 = vrot.slane %v1030, 3
        %v1049 = vrot.slane %v1040, 3
        %v1050 = vrot.slane %v1031, 3
        %v1051 = vrot.slane %v1041, 3
        %1052 = vrot.lane.b32.xlu0 %v1042, 59
        %v1053 = vpop.permute.xlu0 %1052
        %1054 = vrot.lane.b32.xlu0 %v1043, 59
        %v1055 = vpop.permute.xlu0 %1054
        %1056 = vrot.lane.b32.xlu0 %v1044, 59
        %v1057 = vpop.permute.xlu0 %1056
        %1058 = vrot.lane.b32.xlu0 %v1045, 59
        %v1059 = vpop.permute.xlu0 %1058
        %1060 = vrot.lane.b32.xlu0 %v1046, 59
        %v1061 = vpop.permute.xlu0 %1060
        %1062 = vrot.lane.b32.xlu0 %v1047, 59
        %v1063 = vpop.permute.xlu0 %1062
        %1064 = vrot.lane.b32.xlu0 %v1048, 59
        %v1065 = vpop.permute.xlu0 %1064
        %1066 = vrot.lane.b32.xlu0 %v1049, 59
        %v1067 = vpop.permute.xlu0 %1066
        %1068 = vrot.lane.b32.xlu0 %v1050, 59
        %v1069 = vpop.permute.xlu0 %1068
        %1070 = vrot.lane.b32.xlu0 %v1051, 59
        %v1071 = vpop.permute.xlu0 %1070
        %v1072 = vsel %vm429, %v1053, %v1055
        %v1073 = vsel %vm429, %v1055, %v1057
        %v1074 = vsel %vm429, %v1057, %v1059
        %v1075 = vsel %vm429, %v1059, %v1061
        %v1076 = vsel %vm429, %v1061, %v1063
        %v1077 = vsel %vm429, %v1063, %v1065
        %v1078 = vsel %vm429, %v1065, %v1067
        %v1079 = vsel %vm429, %v1067, %v1069
        %v1080 = vsel %vm429, %v1069, %v1071
        %1090 = vst [vmem:[#allocation3 + $0x90] sm:$0xe0] %v1072
        %1091 = vst [vmem:[#allocation3 + $0x98] sm:$0xe0] %v1073
        %1092 = vst [vmem:[#allocation3 + $0xa0] sm:$0xe0] %v1074
        %1093 = vst [vmem:[#allocation3 + $0xa8] sm:$0xe0] %v1075
        %1094 = vst [vmem:[#allocation3 + $0xb0] sm:$0xe0] %v1076
        %1095 = vst [vmem:[#allocation3 + $0xb8] sm:$0xe0] %v1077
        %1096 = vst [vmem:[#allocation3 + $0xc0] sm:$0xe0] %v1078
        %1097 = vst [vmem:[#allocation3 + $0xc8] sm:$0xe0] %v1079
        %vm1098 = vcmask 523269
        %1099 = vst.msk [vmem:[#allocation3 + $0xd0] sm:$0xe0] %vm1098, %v1080
        %v1100 = vld [vmem:[#allocation2] sm:$0x77]
        %v1101 = vld [vmem:[#allocation2 + $0x8] sm:$0x77]
        %v1102 = vld [vmem:[#allocation2 + $0x10] sm:$0x77]
        %v1103 = vld [vmem:[#allocation2 + $0x18] sm:$0x77]
        %v1104 = vld [vmem:[#allocation2 + $0x20] sm:$0x77]
        %v1110 = vcombine.high %v1100, %v1100
        %v1111 = vcombine.high %v1101, %v1101
        %v1112 = vcombine.high %v1102, %v1102
        %v1113 = vcombine.high %v1103, %v1103
        %v1114 = vcombine.high %v1104, %v1104
        %1115 = vrot.lane.b32.xlu0 %v1100, 58
        %v1116 = vpop.permute.xlu0 %1115
        %1117 = vrot.lane.b32.xlu0 %v1110, 58
        %v1118 = vpop.permute.xlu0 %1117
        %1119 = vrot.lane.b32.xlu0 %v1101, 58
        %v1120 = vpop.permute.xlu0 %1119
        %1121 = vrot.lane.b32.xlu0 %v1111, 58
        %v1122 = vpop.permute.xlu0 %1121
        %1123 = vrot.lane.b32.xlu0 %v1102, 58
        %v1124 = vpop.permute.xlu0 %1123
        %1125 = vrot.lane.b32.xlu0 %v1112, 58
        %v1126 = vpop.permute.xlu0 %1125
        %1127 = vrot.lane.b32.xlu0 %v1103, 58
        %v1128 = vpop.permute.xlu0 %1127
        %1129 = vrot.lane.b32.xlu0 %v1113, 58
        %v1130 = vpop.permute.xlu0 %1129
        %1131 = vrot.lane.b32.xlu0 %v1104, 58
        %v1132 = vpop.permute.xlu0 %1131
        %1133 = vrot.lane.b32.xlu0 %v1114, 58
        %v1134 = vpop.permute.xlu0 %1133
        %vm1135 = vcmask 474112
        %v1136 = vsel %vm1135, %v1116, %v1118
        %v1137 = vsel %vm1135, %v1118, %v1120
        %v1138 = vsel %vm1135, %v1120, %v1122
        %v1139 = vsel %vm1135, %v1122, %v1124
        %v1140 = vsel %vm1135, %v1124, %v1126
        %v1141 = vsel %vm1135, %v1126, %v1128
        %v1142 = vsel %vm1135, %v1128, %v1130
        %v1143 = vsel %vm1135, %v1130, %v1132
        %v1144 = vsel %vm1135, %v1132, %v1134
        %1154 = vst [vmem:[#allocation3 + $0xd8] sm:$0x7] %v1136
        %1155 = vst [vmem:[#allocation3 + $0xe0] sm:$0x7] %v1137
        %1156 = vst [vmem:[#allocation3 + $0xe8] sm:$0x7] %v1138
        %1157 = vst [vmem:[#allocation3 + $0xf0] sm:$0x7] %v1139
        %1158 = vst [vmem:[#allocation3 + $0xf8] sm:$0x7] %v1140
        %1159 = vst [vmem:[#allocation3 + $0x100] sm:$0x7] %v1141
        %1160 = vst [vmem:[#allocation3 + $0x108] sm:$0x7] %v1142
        %1161 = vst [vmem:[#allocation3 + $0x110] sm:$0x7] %v1143
        %1162 = vst.msk [vmem:[#allocation3 + $0x118] sm:$0x7] %vm595, %v1144
        %v1163 = vld [vmem:[%s1] sm:$0xff]
        %v1164 = vld [vmem:[#allocation3] sm:$0xff]
        %v1165 = vld [vmem:[#allocation3 + $0x8] sm:$0xff]
        %v1166 = vld [vmem:[#allocation3 + $0x10] sm:$0xff]
        %v1167 = vld [vmem:[#allocation3 + $0x18] sm:$0xff]
        %v1168 = vld [vmem:[#allocation3 + $0x20] sm:$0xff]
        %v1169 = vld [vmem:[#allocation3 + $0x28] sm:$0xff]
        %v1170 = vld [vmem:[#allocation3 + $0x30] sm:$0xff]
        %v1171 = vld [vmem:[#allocation3 + $0x38] sm:$0xff]
        %v1172 = vld [vmem:[#allocation3 + $0x40] sm:$0xff]
        %v1173 = vld [vmem:[#allocation3 + $0x48] sm:$0xff]
        %v1174 = vld [vmem:[#allocation3 + $0x50] sm:$0xff]
        %v1175 = vld [vmem:[#allocation3 + $0x58] sm:$0xff]
        %v1176 = vld [vmem:[#allocation3 + $0x60] sm:$0xff]
        %v1177 = vld [vmem:[#allocation3 + $0x68] sm:$0xff]
        %v1178 = vld [vmem:[#allocation3 + $0x70] sm:$0xff]
        %v1179 = vld [vmem:[#allocation3 + $0x78] sm:$0xff]
        %v1180 = vld [vmem:[#allocation3 + $0x80] sm:$0xff]
        %v1181 = vld [vmem:[#allocation3 + $0x88] sm:$0xff]
        %v1182 = vld [vmem:[#allocation3 + $0x90] sm:$0xff]
        %v1183 = vld [vmem:[#allocation3 + $0x98] sm:$0xff]
        %v1184 = vld [vmem:[#allocation3 + $0xa0] sm:$0xff]
        %v1185 = vld [vmem:[#allocation3 + $0xa8] sm:$0xff]
        %v1186 = vld [vmem:[#allocation3 + $0xb0] sm:$0xff]
        %v1187 = vld [vmem:[#allocation3 + $0xb8] sm:$0xff]
        %v1188 = vld [vmem:[#allocation3 + $0xc0] sm:$0xff]
        %v1189 = vld [vmem:[#allocation3 + $0xc8] sm:$0xff]
        %v1190 = vld [vmem:[#allocation3 + $0xd0] sm:$0xff]
        %v1191 = vld [vmem:[#allocation3 + $0xd8] sm:$0x7]
        %v1192 = vld [vmem:[#allocation3 + $0xe0] sm:$0x7]
        %v1193 = vld [vmem:[#allocation3 + $0xe8] sm:$0x7]
        %v1194 = vld [vmem:[#allocation3 + $0xf0] sm:$0x7]
        %v1195 = vld [vmem:[#allocation3 + $0xf8] sm:$0x7]
        %v1196 = vld [vmem:[#allocation3 + $0x100] sm:$0x7]
        %v1197 = vld [vmem:[#allocation3 + $0x108] sm:$0x7]
        %v1198 = vld [vmem:[#allocation3 + $0x110] sm:$0x7]
        %v1199 = vld [vmem:[#allocation3 + $0x118] sm:$0x7]
        %v1200 = vld [vmem:[%s2] sm:$0xff]
        %1202 = vset.pattern.permute.xlu0 0
        %1203 = vperm.xlu0 %1202, %v1200
        %v1204 = vpop.permute.xlu0 %1203
        %vm1206 = vcmask 220160
        %v1208 = vsel %vm1206, %v1163, 0
        %v1211 = vsel %vm334, %v1191, 0
        %v1214 = vsel %vm334, %v1192, 0
        %v1217 = vsel %vm334, %v1193, 0
        %v1220 = vsel %vm334, %v1194, 0
        %v1223 = vsel %vm334, %v1195, 0
        %v1226 = vsel %vm334, %v1196, 0
        %v1229 = vsel %vm334, %v1197, 0
        %v1232 = vsel %vm334, %v1198, 0
        %v1235 = vsel %vm334, %v1199, 0
        %1237 = vmatprep.subr.mxu0 0.0
        %1238 = vmatpush1.msra.mxu0 0.0
        %1239 = vmatprep.subr.mxu0 0.0
        %1240 = vmatpush1.msra.mxu0 0.0
        %1241 = vmatprep.subr.mxu0 0.0
        %1242 = vmatpush1.msra.mxu0 0.0
        %1243 = vmatprep.subr.mxu0 0.0
        %1244 = vmatpush1.msra.mxu0 0.0
        %1245 = vmatprep.subr.mxu0 0.0
        %1246 = vmatpush1.msra.mxu0 0.0
        %1247 = vmatprep.subr.mxu0 0.0
        %1248 = vmatpush1.msra.mxu0 0.0
        %1249 = vmatprep.subr.mxu0 0.0
        %1250 = vmatpush1.msra.mxu0 0.0
        %1251 = vmatprep.subr.mxu0 0.0
        %1252 = vmatpush1.msra.mxu0 0.0
        %1253 = vmatprep.subr.mxu0 0.0
        %1254 = vmatpush1.msra.mxu0 0.0
        %1255 = vmatprep.subr.mxu0 0.0
        %1256 = vmatpush1.msra.mxu0 0.0
        %1257 = vmatprep.subr.mxu0 0.0
        %1258 = vmatpush1.msra.mxu0 0.0
        %1259 = vmatprep.subr.mxu0 0.0
        %1260 = vmatpush1.msra.mxu0 0.0
        %1261 = vmatprep.subr.mxu0 %v1214
        %1262 = vmatpush1.msra.mxu0 %v1211
        %1263 = vmatprep.subr.mxu0 %v1183
        %1264 = vmatpush1.msra.mxu0 %v1182
        %1265 = vmatprep.subr.mxu0 %v1174
        %1266 = vmatpush1.msra.mxu0 %v1173
        %1267 = vmatprep.subr.mxu0 %v1165
        %1268 = vmatpush1.msra.mxu0 %v1164
        %1269 = vmatprep.subr.mxu0 0.0
        %1270 = vmatpush2.msra.mxu0 0.0
        %1271 = vmatprep.subr.mxu0 0.0
        %1272 = vmatpush2.msra.mxu0 0.0
        %1273 = vmatprep.subr.mxu0 0.0
        %1274 = vmatpush2.msra.mxu0 0.0
        %1275 = vmatprep.subr.mxu0 0.0
        %1276 = vmatpush2.msra.mxu0 0.0
        %1277 = vmatprep.subr.mxu0 0.0
        %1278 = vmatpush2.msra.mxu0 0.0
        %1279 = vmatprep.subr.mxu0 0.0
        %1280 = vmatpush2.msra.mxu0 0.0
        %1281 = vmatprep.subr.mxu0 0.0
        %1282 = vmatpush2.msra.mxu0 0.0
        %1283 = vmatprep.subr.mxu0 0.0
        %1284 = vmatpush2.msra.mxu0 0.0
        %1285 = vmatprep.subr.mxu0 0.0
        %1286 = vmatpush2.msra.mxu0 0.0
        %1287 = vmatprep.subr.mxu0 0.0
        %1288 = vmatpush2.msra.mxu0 0.0
        %1289 = vmatprep.subr.mxu0 0.0
        %1290 = vmatpush2.msra.mxu0 0.0
        %1291 = vmatprep.subr.mxu0 0.0
        %1292 = vmatpush2.msra.mxu0 0.0
        %1293 = vmatprep.subr.mxu0 0.0
        %1294 = vmatpush2.msra.mxu0 0.0
        %1295 = vmatprep.subr.mxu0 0.0
        %1296 = vmatpush2.msra.mxu0 0.0
        %1297 = vmatprep.subr.mxu0 0.0
        %1298 = vmatpush2.msra.mxu0 0.0
        %1299 = vmatprep.subr.mxu0 0.0
        %1300 = vmatpush2.msra.mxu0 0.0
        %1301 = vmatprep.mubr.f32.mxu0 0.0
        %1302 = vmatmul.mubr.f32.gmra.mxu0 %v1208
        %v1303 = vpop.f32.mrf.mxu0
        %v1304 = vadd.f32 %v1204, %v1303
        %v1305 = vpop.f32.mrf.mxu0
        %v1306 = vadd.f32 %v1204, %v1305
        %1307 = vdwg.mxu0
        %1308 = vmatprep.subr.mxu0 0.0
        %1309 = vmatpush1.msra.mxu0 0.0
        %1310 = vmatprep.subr.mxu0 0.0
        %1311 = vmatpush1.msra.mxu0 0.0
        %1312 = vmatprep.subr.mxu0 0.0
        %1313 = vmatpush1.msra.mxu0 0.0
        %1314 = vmatprep.subr.mxu0 0.0
        %1315 = vmatpush1.msra.mxu0 0.0
        %1316 = vmatprep.subr.mxu0 0.0
        %1317 = vmatpush1.msra.mxu0 0.0
        %1318 = vmatprep.subr.mxu0 0.0
        %1319 = vmatpush1.msra.mxu0 0.0
        %1320 = vmatprep.subr.mxu0 0.0
        %1321 = vmatpush1.msra.mxu0 0.0
        %1322 = vmatprep.subr.mxu0 0.0
        %1323 = vmatpush1.msra.mxu0 0.0
        %1324 = vmatprep.subr.mxu0 0.0
        %1325 = vmatpush1.msra.mxu0 0.0
        %1326 = vmatprep.subr.mxu0 0.0
        %1327 = vmatpush1.msra.mxu0 0.0
        %1328 = vmatprep.subr.mxu0 0.0
        %1329 = vmatpush1.msra.mxu0 0.0
        %1330 = vmatprep.subr.mxu0 0.0
        %1331 = vmatpush1.msra.mxu0 0.0
        %1332 = vmatprep.subr.mxu0 %v1220
        %1333 = vmatpush1.msra.mxu0 %v1217
        %1334 = vmatprep.subr.mxu0 %v1185
        %1335 = vmatpush1.msra.mxu0 %v1184
        %1336 = vmatprep.subr.mxu0 %v1176
        %1337 = vmatpush1.msra.mxu0 %v1175
        %1338 = vmatprep.subr.mxu0 %v1167
        %1339 = vmatpush1.msra.mxu0 %v1166
        %1340 = vmatprep.subr.mxu0 0.0
        %1341 = vmatpush2.msra.mxu0 0.0
        %1342 = vmatprep.subr.mxu0 0.0
        %1343 = vmatpush2.msra.mxu0 0.0
        %1344 = vmatprep.subr.mxu0 0.0
        %1345 = vmatpush2.msra.mxu0 0.0
        %1346 = vmatprep.subr.mxu0 0.0
        %1347 = vmatpush2.msra.mxu0 0.0
        %1348 = vmatprep.subr.mxu0 0.0
        %1349 = vmatpush2.msra.mxu0 0.0
        %1350 = vmatprep.subr.mxu0 0.0
        %1351 = vmatpush2.msra.mxu0 0.0
        %1352 = vmatprep.subr.mxu0 0.0
        %1353 = vmatpush2.msra.mxu0 0.0
        %1354 = vmatprep.subr.mxu0 0.0
        %1355 = vmatpush2.msra.mxu0 0.0
        %1356 = vmatprep.subr.mxu0 0.0
        %1357 = vmatpush2.msra.mxu0 0.0
        %1358 = vmatprep.subr.mxu0 0.0
        %1359 = vmatpush2.msra.mxu0 0.0
        %1360 = vmatprep.subr.mxu0 0.0
        %1361 = vmatpush2.msra.mxu0 0.0
        %1362 = vmatprep.subr.mxu0 0.0
        %1363 = vmatpush2.msra.mxu0 0.0
        %1364 = vmatprep.subr.mxu0 0.0
        %1365 = vmatpush2.msra.mxu0 0.0
        %1366 = vmatprep.subr.mxu0 0.0
        %1367 = vmatpush2.msra.mxu0 0.0
        %1368 = vmatprep.subr.mxu0 0.0
        %1369 = vmatpush2.msra.mxu0 0.0
        %1370 = vmatprep.subr.mxu0 0.0
        %1371 = vmatpush2.msra.mxu0 0.0
        %1372 = vmatprep.mubr.f32.mxu0 0.0
        %1373 = vmatmul.mubr.f32.gmra.mxu0 %v1208
        %v1374 = vpop.f32.mrf.mxu0
        %v1375 = vadd.f32 %v1204, %v1374
        %v1376 = vpop.f32.mrf.mxu0
        %v1377 = vadd.f32 %v1204, %v1376
        %1378 = vdwg.mxu0
        %1379 = vmatprep.subr.mxu0 0.0
        %1380 = vmatpush1.msra.mxu0 0.0
        %1381 = vmatprep.subr.mxu0 0.0
        %1382 = vmatpush1.msra.mxu0 0.0
        %1383 = vmatprep.subr.mxu0 0.0
        %1384 = vmatpush1.msra.mxu0 0.0
        %1385 = vmatprep.subr.mxu0 0.0
        %1386 = vmatpush1.msra.mxu0 0.0
        %1387 = vmatprep.subr.mxu0 0.0
        %1388 = vmatpush1.msra.mxu0 0.0
        %1389 = vmatprep.subr.mxu0 0.0
        %1390 = vmatpush1.msra.mxu0 0.0
        %1391 = vmatprep.subr.mxu0 0.0
        %1392 = vmatpush1.msra.mxu0 0.0
        %1393 = vmatprep.subr.mxu0 0.0
        %1394 = vmatpush1.msra.mxu0 0.0
        %1395 = vmatprep.subr.mxu0 0.0
        %1396 = vmatpush1.msra.mxu0 0.0
        %1397 = vmatprep.subr.mxu0 0.0
        %1398 = vmatpush1.msra.mxu0 0.0
        %1399 = vmatprep.subr.mxu0 0.0
        %1400 = vmatpush1.msra.mxu0 0.0
        %1401 = vmatprep.subr.mxu0 0.0
        %1402 = vmatpush1.msra.mxu0 0.0
        %1403 = vmatprep.subr.mxu0 %v1226
        %1404 = vmatpush1.msra.mxu0 %v1223
        %1405 = vmatprep.subr.mxu0 %v1187
        %1406 = vmatpush1.msra.mxu0 %v1186
        %1407 = vmatprep.subr.mxu0 %v1178
        %1408 = vmatpush1.msra.mxu0 %v1177
        %1409 = vmatprep.subr.mxu0 %v1169
        %1410 = vmatpush1.msra.mxu0 %v1168
        %1411 = vmatprep.subr.mxu0 0.0
        %1412 = vmatpush2.msra.mxu0 0.0
        %1413 = vmatprep.subr.mxu0 0.0
        %1414 = vmatpush2.msra.mxu0 0.0
        %1415 = vmatprep.subr.mxu0 0.0
        %1416 = vmatpush2.msra.mxu0 0.0
        %1417 = vmatprep.subr.mxu0 0.0
        %1418 = vmatpush2.msra.mxu0 0.0
        %1419 = vmatprep.subr.mxu0 0.0
        %1420 = vmatpush2.msra.mxu0 0.0
        %1421 = vmatprep.subr.mxu0 0.0
        %1422 = vmatpush2.msra.mxu0 0.0
        %1423 = vmatprep.subr.mxu0 0.0
        %1424 = vmatpush2.msra.mxu0 0.0
        %1425 = vmatprep.subr.mxu0 0.0
        %1426 = vmatpush2.msra.mxu0 0.0
        %1427 = vmatprep.subr.mxu0 0.0
        %1428 = vmatpush2.msra.mxu0 0.0
        %1429 = vmatprep.subr.mxu0 0.0
        %1430 = vmatpush2.msra.mxu0 0.0
        %1431 = vmatprep.subr.mxu0 0.0
        %1432 = vmatpush2.msra.mxu0 0.0
        %1433 = vmatprep.subr.mxu0 0.0
        %1434 = vmatpush2.msra.mxu0 0.0
        %1435 = vmatprep.subr.mxu0 0.0
        %1436 = vmatpush2.msra.mxu0 0.0
        %1437 = vmatprep.subr.mxu0 0.0
        %1438 = vmatpush2.msra.mxu0 0.0
        %1439 = vmatprep.subr.mxu0 0.0
        %1440 = vmatpush2.msra.mxu0 0.0
        %1441 = vmatprep.subr.mxu0 0.0
        %1442 = vmatpush2.msra.mxu0 0.0
        %1443 = vmatprep.mubr.f32.mxu0 0.0
        %1444 = vmatmul.mubr.f32.gmra.mxu0 %v1208
        %v1445 = vpop.f32.mrf.mxu0
        %v1446 = vadd.f32 %v1204, %v1445
        %v1447 = vpop.f32.mrf.mxu0
        %v1448 = vadd.f32 %v1204, %v1447
        %1449 = vdwg.mxu0
        %1450 = vmatprep.subr.mxu0 0.0
        %1451 = vmatpush1.msra.mxu0 0.0
        %1452 = vmatprep.subr.mxu0 0.0
        %1453 = vmatpush1.msra.mxu0 0.0
        %1454 = vmatprep.subr.mxu0 0.0
        %1455 = vmatpush1.msra.mxu0 0.0
        %1456 = vmatprep.subr.mxu0 0.0
        %1457 = vmatpush1.msra.mxu0 0.0
        %1458 = vmatprep.subr.mxu0 0.0
        %1459 = vmatpush1.msra.mxu0 0.0
        %1460 = vmatprep.subr.mxu0 0.0
        %1461 = vmatpush1.msra.mxu0 0.0
        %1462 = vmatprep.subr.mxu0 0.0
        %1463 = vmatpush1.msra.mxu0 0.0
        %1464 = vmatprep.subr.mxu0 0.0
        %1465 = vmatpush1.msra.mxu0 0.0
        %1466 = vmatprep.subr.mxu0 0.0
        %1467 = vmatpush1.msra.mxu0 0.0
        %1468 = vmatprep.subr.mxu0 0.0
        %1469 = vmatpush1.msra.mxu0 0.0
        %1470 = vmatprep.subr.mxu0 0.0
        %1471 = vmatpush1.msra.mxu0 0.0
        %1472 = vmatprep.subr.mxu0 0.0
        %1473 = vmatpush1.msra.mxu0 0.0
        %1474 = vmatprep.subr.mxu0 %v1232
        %1475 = vmatpush1.msra.mxu0 %v1229
        %1476 = vmatprep.subr.mxu0 %v1189
        %1477 = vmatpush1.msra.mxu0 %v1188
        %1478 = vmatprep.subr.mxu0 %v1180
        %1479 = vmatpush1.msra.mxu0 %v1179
        %1480 = vmatprep.subr.mxu0 %v1171
        %1481 = vmatpush1.msra.mxu0 %v1170
        %1482 = vmatprep.subr.mxu0 0.0
        %1483 = vmatpush2.msra.mxu0 0.0
        %1484 = vmatprep.subr.mxu0 0.0
        %1485 = vmatpush2.msra.mxu0 0.0
        %1486 = vmatprep.subr.mxu0 0.0
        %1487 = vmatpush2.msra.mxu0 0.0
        %1488 = vmatprep.subr.mxu0 0.0
        %1489 = vmatpush2.msra.mxu0 0.0
        %1490 = vmatprep.subr.mxu0 0.0
        %1491 = vmatpush2.msra.mxu0 0.0
        %1492 = vmatprep.subr.mxu0 0.0
        %1493 = vmatpush2.msra.mxu0 0.0
        %1494 = vmatprep.subr.mxu0 0.0
        %1495 = vmatpush2.msra.mxu0 0.0
        %1496 = vmatprep.subr.mxu0 0.0
        %1497 = vmatpush2.msra.mxu0 0.0
        %1498 = vmatprep.subr.mxu0 0.0
        %1499 = vmatpush2.msra.mxu0 0.0
        %1500 = vmatprep.subr.mxu0 0.0
        %1501 = vmatpush2.msra.mxu0 0.0
        %1502 = vmatprep.subr.mxu0 0.0
        %1503 = vmatpush2.msra.mxu0 0.0
        %1504 = vmatprep.subr.mxu0 0.0
        %1505 = vmatpush2.msra.mxu0 0.0
        %1506 = vmatprep.subr.mxu0 0.0
        %1507 = vmatpush2.msra.mxu0 0.0
        %1508 = vmatprep.subr.mxu0 0.0
        %1509 = vmatpush2.msra.mxu0 0.0
        %1510 = vmatprep.subr.mxu0 0.0
        %1511 = vmatpush2.msra.mxu0 0.0
        %1512 = vmatprep.subr.mxu0 0.0
        %1513 = vmatpush2.msra.mxu0 0.0
        %1514 = vmatprep.mubr.f32.mxu0 0.0
        %1515 = vmatmul.mubr.f32.gmra.mxu0 %v1208
        %v1516 = vpop.f32.mrf.mxu0
        %v1517 = vadd.f32 %v1204, %v1516
        %v1518 = vpop.f32.mrf.mxu0
        %v1519 = vadd.f32 %v1204, %v1518
        %1520 = vdwg.mxu0
        %1521 = vmatprep.subr.mxu0 0.0
        %1522 = vmatpush1.msra.mxu0 0.0
        %1523 = vmatprep.subr.mxu0 0.0
        %1524 = vmatpush1.msra.mxu0 0.0
        %1525 = vmatprep.subr.mxu0 0.0
        %1526 = vmatpush1.msra.mxu0 0.0
        %1527 = vmatprep.subr.mxu0 0.0
        %1528 = vmatpush1.msra.mxu0 0.0
        %1529 = vmatprep.subr.mxu0 0.0
        %1530 = vmatpush1.msra.mxu0 0.0
        %1531 = vmatprep.subr.mxu0 0.0
        %1532 = vmatpush1.msra.mxu0 0.0
        %1533 = vmatprep.subr.mxu0 0.0
        %1534 = vmatpush1.msra.mxu0 0.0
        %1535 = vmatprep.subr.mxu0 0.0
        %1536 = vmatpush1.msra.mxu0 0.0
        %1537 = vmatprep.subr.mxu0 0.0
        %1538 = vmatpush1.msra.mxu0 0.0
        %1539 = vmatprep.subr.mxu0 0.0
        %1540 = vmatpush1.msra.mxu0 0.0
        %1541 = vmatprep.subr.mxu0 0.0
        %1542 = vmatpush1.msra.mxu0 0.0
        %1543 = vmatprep.subr.mxu0 0.0
        %1544 = vmatpush1.msra.mxu0 0.0
        %1545 = vmatprep.subr.mxu0 0.0
        %1546 = vmatpush1.msra.mxu0 %v1235
        %1547 = vmatprep.subr.mxu0 0.0
        %1548 = vmatpush1.msra.mxu0 %v1190
        %1549 = vmatprep.subr.mxu0 0.0
        %1550 = vmatpush1.msra.mxu0 %v1181
        %1551 = vmatprep.subr.mxu0 0.0
        %1552 = vmatpush1.msra.mxu0 %v1172
        %1553 = vmatprep.subr.mxu0 0.0
        %1554 = vmatpush2.msra.mxu0 0.0
        %1555 = vmatprep.subr.mxu0 0.0
        %1556 = vmatpush2.msra.mxu0 0.0
        %1557 = vmatprep.subr.mxu0 0.0
        %1558 = vmatpush2.msra.mxu0 0.0
        %1559 = vmatprep.subr.mxu0 0.0
        %1560 = vmatpush2.msra.mxu0 0.0
        %1561 = vmatprep.subr.mxu0 0.0
        %1562 = vmatpush2.msra.mxu0 0.0
        %1563 = vmatprep.subr.mxu0 0.0
        %1564 = vmatpush2.msra.mxu0 0.0
        %1565 = vmatprep.subr.mxu0 0.0
        %1566 = vmatpush2.msra.mxu0 0.0
        %1567 = vmatprep.subr.mxu0 0.0
        %1568 = vmatpush2.msra.mxu0 0.0
        %1569 = vmatprep.subr.mxu0 0.0
        %1570 = vmatpush2.msra.mxu0 0.0
        %1571 = vmatprep.subr.mxu0 0.0
        %1572 = vmatpush2.msra.mxu0 0.0
        %1573 = vmatprep.subr.mxu0 0.0
        %1574 = vmatpush2.msra.mxu0 0.0
        %1575 = vmatprep.subr.mxu0 0.0
        %1576 = vmatpush2.msra.mxu0 0.0
        %1577 = vmatprep.subr.mxu0 0.0
        %1578 = vmatpush2.msra.mxu0 0.0
        %1579 = vmatprep.subr.mxu0 0.0
        %1580 = vmatpush2.msra.mxu0 0.0
        %1581 = vmatprep.subr.mxu0 0.0
        %1582 = vmatpush2.msra.mxu0 0.0
        %1583 = vmatprep.subr.mxu0 0.0
        %1584 = vmatpush2.msra.mxu0 0.0
        %1585 = vmatprep.mubr.f32.mxu0 0.0
        %1586 = vmatmul.mubr.f32.gmra.mxu0 %v1208
        %v1587 = vpop.f32.mrf.mxu0
        %v1588 = vadd.f32 %v1204, %v1587
        %v1589 = vpop.f32.mrf.mxu0
        %1590 = vdwg.mxu0
        %v1591 = vmax.f32 %v1304, 0.0
        %v1592 = vmax.f32 %v1306, 0.0
        %v1593 = vmax.f32 %v1375, 0.0
        %v1594 = vmax.f32 %v1377, 0.0
        %v1595 = vmax.f32 %v1446, 0.0
        %v1596 = vmax.f32 %v1448, 0.0
        %v1597 = vmax.f32 %v1517, 0.0
        %v1598 = vmax.f32 %v1519, 0.0
        %v1599 = vmax.f32 %v1588, 0.0
        %1600 = vst [vmem:[#allocation4] sm:$0xff] %v1591
        %1601 = vst [vmem:[#allocation4 + $0x8] sm:$0xff] %v1592
        %1602 = vst [vmem:[#allocation4 + $0x10] sm:$0xff] %v1593
        %1603 = vst [vmem:[#allocation4 + $0x18] sm:$0xff] %v1594
        %1604 = vst [vmem:[#allocation4 + $0x20] sm:$0xff] %v1595
        %1605 = vst [vmem:[#allocation4 + $0x28] sm:$0xff] %v1596
        %1606 = vst [vmem:[#allocation4 + $0x30] sm:$0xff] %v1597
        %1607 = vst [vmem:[#allocation4 + $0x38] sm:$0xff] %v1598
        %vm1608 = vcmask 523264
        %1609 = vst.msk [vmem:[#allocation4 + $0x40] sm:$0xff] %vm1608, %v1599
        %vm1610 = vcmask 818688
        %1611 = vst.msk [vmem:[#allocation4 + $0x40] sm:$0xff] %vm1610, 0.0
        %v1612 = vld [vmem:[#allocation4] sm:$0xff]
        %v1613 = vld [vmem:[#allocation4 + $0x8] sm:$0xff]
        %v1614 = vld [vmem:[#allocation4 + $0x10] sm:$0xff]
        %v1615 = vld [vmem:[#allocation4 + $0x18] sm:$0xff]
        %v1616 = vld [vmem:[#allocation4 + $0x20] sm:$0xff]
        %v1617 = vld [vmem:[#allocation4 + $0x28] sm:$0xff]
        %v1618 = vld [vmem:[#allocation4 + $0x30] sm:$0xff]
        %v1619 = vld [vmem:[#allocation4 + $0x38] sm:$0xff]
        %v1620 = vld [vmem:[#allocation4 + $0x40] sm:$0xff]
        %1630 = vrot.lane.b32.xlu0 %v1612, 127
        %v1631 = vpop.permute.xlu0 %1630
        %1632 = vrot.lane.b32.xlu0 %v1613, 127
        %v1633 = vpop.permute.xlu0 %1632
        %1634 = vrot.lane.b32.xlu0 %v1614, 127
        %v1635 = vpop.permute.xlu0 %1634
        %1636 = vrot.lane.b32.xlu0 %v1615, 127
        %v1637 = vpop.permute.xlu0 %1636
        %1638 = vrot.lane.b32.xlu0 %v1616, 127
        %v1639 = vpop.permute.xlu0 %1638
        %1640 = vrot.lane.b32.xlu0 %v1617, 127
        %v1641 = vpop.permute.xlu0 %1640
        %1642 = vrot.lane.b32.xlu0 %v1618, 127
        %v1643 = vpop.permute.xlu0 %1642
        %1644 = vrot.lane.b32.xlu0 %v1619, 127
        %v1645 = vpop.permute.xlu0 %1644
        %1646 = vrot.lane.b32.xlu0 %v1620, 127
        %v1647 = vpop.permute.xlu0 %1646
        %v1648 = vsel %vm638, %v1631, %v1633
        %v1649 = vsel %vm638, %v1633, %v1635
        %v1650 = vsel %vm638, %v1635, %v1637
        %v1651 = vsel %vm638, %v1637, %v1639
        %v1652 = vsel %vm638, %v1639, %v1641
        %v1653 = vsel %vm638, %v1641, %v1643
        %v1654 = vsel %vm638, %v1643, %v1645
        %v1655 = vsel %vm638, %v1645, %v1647
        %v1665 = vmax.f32 %v1612, %v1648
        %v1666 = vmax.f32 %v1613, %v1649
        %v1667 = vmax.f32 %v1614, %v1650
        %v1668 = vmax.f32 %v1615, %v1651
        %v1669 = vmax.f32 %v1616, %v1652
        %v1670 = vmax.f32 %v1617, %v1653
        %v1671 = vmax.f32 %v1618, %v1654
        %v1672 = vmax.f32 %v1619, %v1655
        %v1673 = vmax.f32 %v1620, %v1647
        %1683 = vrot.lane.b32.xlu0 %v1665, 94
        %v1684 = vpop.permute.xlu0 %1683
        %1685 = vrot.lane.b32.xlu0 %v1666, 94
        %v1686 = vpop.permute.xlu0 %1685
        %1687 = vrot.lane.b32.xlu0 %v1667, 94
        %v1688 = vpop.permute.xlu0 %1687
        %1689 = vrot.lane.b32.xlu0 %v1668, 94
        %v1690 = vpop.permute.xlu0 %1689
        %1691 = vrot.lane.b32.xlu0 %v1669, 94
        %v1692 = vpop.permute.xlu0 %1691
        %1693 = vrot.lane.b32.xlu0 %v1670, 94
        %v1694 = vpop.permute.xlu0 %1693
        %1695 = vrot.lane.b32.xlu0 %v1671, 94
        %v1696 = vpop.permute.xlu0 %1695
        %1697 = vrot.lane.b32.xlu0 %v1672, 94
        %v1698 = vpop.permute.xlu0 %1697
        %1699 = vrot.lane.b32.xlu0 %v1673, 94
        %v1700 = vpop.permute.xlu0 %1699
        %v1701 = vsel %vm786, %v1684, %v1686
        %v1702 = vsel %vm786, %v1686, %v1688
        %v1703 = vsel %vm786, %v1688, %v1690
        %v1704 = vsel %vm786, %v1690, %v1692
        %v1705 = vsel %vm786, %v1692, %v1694
        %v1706 = vsel %vm786, %v1694, %v1696
        %v1707 = vsel %vm786, %v1696, %v1698
        %v1708 = vsel %vm786, %v1698, %v1700
        %v1718 = vmax.f32 %v1665, %v1701
        %v1719 = vmax.f32 %v1666, %v1702
        %v1720 = vmax.f32 %v1667, %v1703
        %v1721 = vmax.f32 %v1668, %v1704
        %v1722 = vmax.f32 %v1669, %v1705
        %v1723 = vmax.f32 %v1670, %v1706
        %v1724 = vmax.f32 %v1671, %v1707
        %v1725 = vmax.f32 %v1672, %v1708
        %v1726 = vmax.f32 %v1673, %v1700
        %v1727 = vld [vmem:[%s7] sm:$0xff]
        %v1728 = vld [vmem:[%s7 + $0x8] sm:$0x1]
        %vm1729 = vcmp.gt.f32.partialorder %v1727, 0.5
        %vm1730 = vcmp.gt.f32.partialorder %v1728, 0.5
        %v1731 = vsel %vm1729, 1, 0
        %v1732 = vsel %vm1730, 1, 0
        %v1733 = vlaneseq
        %v1734 = vshrl.u32 %v1733, 7
        %v1735 = vsub.s32 0, %v1734
        %v1736 = vrot.slane %v1731, %v1735
        %v1737 = vlaneseq
        %v1738 = vshrl.u32 %v1737, 7
        %v1739 = vsub.s32 1, %v1738
        %v1740 = vrot.slane %v1731, %v1739
        %v1741 = vlaneseq
        %v1742 = vshrl.u32 %v1741, 7
        %v1743 = vsub.s32 2, %v1742
        %v1744 = vrot.slane %v1731, %v1743
        %v1745 = vlaneseq
        %v1746 = vshrl.u32 %v1745, 7
        %v1747 = vsub.s32 3, %v1746
        %v1748 = vrot.slane %v1731, %v1747
        %v1749 = vlaneseq
        %v1750 = vshrl.u32 %v1749, 7
        %v1751 = vsub.s32 4, %v1750
        %v1752 = vrot.slane %v1731, %v1751
        %v1753 = vlaneseq
        %v1754 = vshrl.u32 %v1753, 7
        %v1755 = vsub.s32 5, %v1754
        %v1756 = vrot.slane %v1731, %v1755
        %v1757 = vlaneseq
        %v1758 = vshrl.u32 %v1757, 7
        %v1759 = vsub.s32 6, %v1758
        %v1760 = vrot.slane %v1731, %v1759
        %v1761 = vlaneseq
        %v1762 = vshrl.u32 %v1761, 7
        %v1763 = vsub.s32 7, %v1762
        %v1764 = vrot.slane %v1731, %v1763
        %v1765 = vlaneseq
        %v1766 = vshrl.u32 %v1765, 7
        %v1767 = vsub.s32 0, %v1766
        %v1768 = vrot.slane %v1732, %v1767
        %vm1769 = vcmp.eq.s32.totalorder %v1736, 1
        %vm1770 = vcmp.eq.s32.totalorder %v1740, 1
        %vm1771 = vcmp.eq.s32.totalorder %v1744, 1
        %vm1772 = vcmp.eq.s32.totalorder %v1748, 1
        %vm1773 = vcmp.eq.s32.totalorder %v1752, 1
        %vm1774 = vcmp.eq.s32.totalorder %v1756, 1
        %vm1775 = vcmp.eq.s32.totalorder %v1760, 1
        %vm1776 = vcmp.eq.s32.totalorder %v1764, 1
        %vm1777 = vcmp.eq.s32.totalorder %v1768, 1
        %v1778 = vsel %vm1769, %v1718, 0.0
        %v1779 = vsel %vm1770, %v1719, 0.0
        %v1780 = vsel %vm1771, %v1720, 0.0
        %v1781 = vsel %vm1772, %v1721, 0.0
        %v1782 = vsel %vm1773, %v1722, 0.0
        %v1783 = vsel %vm1774, %v1723, 0.0
        %v1784 = vsel %vm1775, %v1724, 0.0
        %v1785 = vsel %vm1776, %v1725, 0.0
        %v1786 = vsel %vm1777, %v1726, 0.0
        %vm1787 = vcmask 572416
        %1788 = vst.msk [vmem:[#allocation5] sm:$0xff] %vm1787, 0.0
        %1798 = vrot.lane.b32.xlu0 %v1778, 70
        %v1799 = vpop.permute.xlu0 %1798
        %1800 = vrot.lane.b32.xlu0 %v1779, 70
        %v1801 = vpop.permute.xlu0 %1800
        %1802 = vrot.lane.b32.xlu0 %v1780, 70
        %v1803 = vpop.permute.xlu0 %1802
        %1804 = vrot.lane.b32.xlu0 %v1781, 70
        %v1805 = vpop.permute.xlu0 %1804
        %1806 = vrot.lane.b32.xlu0 %v1782, 70
        %v1807 = vpop.permute.xlu0 %1806
        %1808 = vrot.lane.b32.xlu0 %v1783, 70
        %v1809 = vpop.permute.xlu0 %1808
        %1810 = vrot.lane.b32.xlu0 %v1784, 70
        %v1811 = vpop.permute.xlu0 %1810
        %1812 = vrot.lane.b32.xlu0 %v1785, 70
        %v1813 = vpop.permute.xlu0 %1812
        %1814 = vrot.lane.b32.xlu0 %v1786, 70
        %v1815 = vpop.permute.xlu0 %1814
        %v1816 = vsel %vm1787, %v1799, %v1801
        %v1817 = vsel %vm1787, %v1801, %v1803
        %v1818 = vsel %vm1787, %v1803, %v1805
        %v1819 = vsel %vm1787, %v1805, %v1807
        %v1820 = vsel %vm1787, %v1807, %v1809
        %v1821 = vsel %vm1787, %v1809, %v1811
        %v1822 = vsel %vm1787, %v1811, %v1813
        %v1823 = vsel %vm1787, %v1813, %v1815
        %vm1834 = vcmask 1048112
        %1835 = vst.msk [vmem:[#allocation5] sm:$0xff] %vm1834, %v1799
        %1836 = vst [vmem:[#allocation5 + $0x8] sm:$0xff] %v1816
        %1837 = vst [vmem:[#allocation5 + $0x10] sm:$0xff] %v1817
        %1838 = vst [vmem:[#allocation5 + $0x18] sm:$0xff] %v1818
        %1839 = vst [vmem:[#allocation5 + $0x20] sm:$0xff] %v1819
        %1840 = vst [vmem:[#allocation5 + $0x28] sm:$0xff] %v1820
        %1841 = vst [vmem:[#allocation5 + $0x30] sm:$0xff] %v1821
        %1842 = vst [vmem:[#allocation5 + $0x38] sm:$0xff] %v1822
        %1843 = vst [vmem:[#allocation5 + $0x40] sm:$0xff] %v1823
        %vm1844 = vcmask 48128
        %1845 = vst.msk [vmem:[#allocation5 + $0x48] sm:$0xff] %vm1844, %v1815
        %vm1846 = vcmask 621616
        %1847 = vst.msk [vmem:[#allocation5 + $0x48] sm:$0xff] %vm1846, 0.0
        %v1848 = vld [vmem:[#allocation5] sm:$0xff]
        %v1849 = vld [vmem:[#allocation5 + $0x8] sm:$0xff]
        %v1850 = vld [vmem:[#allocation5 + $0x10] sm:$0xff]
        %v1851 = vld [vmem:[#allocation5 + $0x18] sm:$0xff]
        %v1852 = vld [vmem:[#allocation5 + $0x20] sm:$0xff]
        %v1853 = vld [vmem:[#allocation5 + $0x28] sm:$0xff]
        %v1854 = vld [vmem:[#allocation5 + $0x30] sm:$0xff]
        %v1855 = vld [vmem:[#allocation5 + $0x38] sm:$0xff]
        %v1856 = vld [vmem:[#allocation5 + $0x40] sm:$0xff]
        %1857 = vst [vmem:[#allocation6] sm:$0xff] %v1848
        %1858 = vst [vmem:[#allocation6 + $0x8] sm:$0xff] %v1849
        %1859 = vst [vmem:[#allocation6 + $0x10] sm:$0xff] %v1850
        %1860 = vst [vmem:[#allocation6 + $0x18] sm:$0xff] %v1851
        %1861 = vst [vmem:[#allocation6 + $0x20] sm:$0xff] %v1852
        %1862 = vst [vmem:[#allocation6 + $0x28] sm:$0xff] %v1853
        %1863 = vst [vmem:[#allocation6 + $0x30] sm:$0xff] %v1854
        %1864 = vst [vmem:[#allocation6 + $0x38] sm:$0xff] %v1855
        %1865 = vst.msk [vmem:[#allocation6 + $0x40] sm:$0xff] %vm1608, %v1856
        %v1866 = vld [vmem:[#allocation5] sm:$0xff]
        %v1867 = vld [vmem:[#allocation5 + $0x8] sm:$0xff]
        %v1868 = vld [vmem:[#allocation5 + $0x10] sm:$0xff]
        %v1869 = vld [vmem:[#allocation5 + $0x18] sm:$0xff]
        %v1870 = vld [vmem:[#allocation5 + $0x20] sm:$0xff]
        %v1871 = vld [vmem:[#allocation5 + $0x28] sm:$0xff]
        %v1872 = vld [vmem:[#allocation5 + $0x30] sm:$0xff]
        %v1873 = vld [vmem:[#allocation5 + $0x38] sm:$0xff]
        %v1874 = vld [vmem:[#allocation5 + $0x40] sm:$0xff]
        %1884 = vrot.lane.b32.xlu0 %v1866, 126
        %v1885 = vpop.permute.xlu0 %1884
        %1886 = vrot.lane.b32.xlu0 %v1867, 126
        %v1887 = vpop.permute.xlu0 %1886
        %1888 = vrot.lane.b32.xlu0 %v1868, 126
        %v1889 = vpop.permute.xlu0 %1888
        %1890 = vrot.lane.b32.xlu0 %v1869, 126
        %v1891 = vpop.permute.xlu0 %1890
        %1892 = vrot.lane.b32.xlu0 %v1870, 126
        %v1893 = vpop.permute.xlu0 %1892
        %1894 = vrot.lane.b32.xlu0 %v1871, 126
        %v1895 = vpop.permute.xlu0 %1894
        %1896 = vrot.lane.b32.xlu0 %v1872, 126
        %v1897 = vpop.permute.xlu0 %1896
        %1898 = vrot.lane.b32.xlu0 %v1873, 126
        %v1899 = vpop.permute.xlu0 %1898
        %1900 = vrot.lane.b32.xlu0 %v1874, 126
        %v1901 = vpop.permute.xlu0 %1900
        %v1902 = vsel %vm707, %v1885, %v1887
        %v1903 = vsel %vm707, %v1887, %v1889
        %v1904 = vsel %vm707, %v1889, %v1891
        %v1905 = vsel %vm707, %v1891, %v1893
        %v1906 = vsel %vm707, %v1893, %v1895
        %v1907 = vsel %vm707, %v1895, %v1897
        %v1908 = vsel %vm707, %v1897, %v1899
        %v1909 = vsel %vm707, %v1899, %v1901
        %1919 = vst [vmem:[#allocation6 + $0x48] sm:$0xff] %v1902
        %1920 = vst [vmem:[#allocation6 + $0x50] sm:$0xff] %v1903
        %1921 = vst [vmem:[#allocation6 + $0x58] sm:$0xff] %v1904
        %1922 = vst [vmem:[#allocation6 + $0x60] sm:$0xff] %v1905
        %1923 = vst [vmem:[#allocation6 + $0x68] sm:$0xff] %v1906
        %1924 = vst [vmem:[#allocation6 + $0x70] sm:$0xff] %v1907
        %1925 = vst [vmem:[#allocation6 + $0x78] sm:$0xff] %v1908
        %1926 = vst [vmem:[#allocation6 + $0x80] sm:$0xff] %v1909
        %1927 = vst.msk [vmem:[#allocation6 + $0x88] sm:$0xff] %vm1608, %v1901
        %v1928 = vld [vmem:[#allocation5] sm:$0xff]
        %v1929 = vld [vmem:[#allocation5 + $0x8] sm:$0xff]
        %v1930 = vld [vmem:[#allocation5 + $0x10] sm:$0xff]
        %v1931 = vld [vmem:[#allocation5 + $0x18] sm:$0xff]
        %v1932 = vld [vmem:[#allocation5 + $0x20] sm:$0xff]
        %v1933 = vld [vmem:[#allocation5 + $0x28] sm:$0xff]
        %v1934 = vld [vmem:[#allocation5 + $0x30] sm:$0xff]
        %v1935 = vld [vmem:[#allocation5 + $0x38] sm:$0xff]
        %v1936 = vld [vmem:[#allocation5 + $0x40] sm:$0xff]
        %1946 = vrot.lane.b32.xlu0 %v1928, 124
        %v1947 = vpop.permute.xlu0 %1946
        %1948 = vrot.lane.b32.xlu0 %v1929, 124
        %v1949 = vpop.permute.xlu0 %1948
        %1950 = vrot.lane.b32.xlu0 %v1930, 124
        %v1951 = vpop.permute.xlu0 %1950
        %1952 = vrot.lane.b32.xlu0 %v1931, 124
        %v1953 = vpop.permute.xlu0 %1952
        %1954 = vrot.lane.b32.xlu0 %v1932, 124
        %v1955 = vpop.permute.xlu0 %1954
        %1956 = vrot.lane.b32.xlu0 %v1933, 124
        %v1957 = vpop.permute.xlu0 %1956
        %1958 = vrot.lane.b32.xlu0 %v1934, 124
        %v1959 = vpop.permute.xlu0 %1958
        %1960 = vrot.lane.b32.xlu0 %v1935, 124
        %v1961 = vpop.permute.xlu0 %1960
        %1962 = vrot.lane.b32.xlu0 %v1936, 124
        %v1963 = vpop.permute.xlu0 %1962
        %vm1964 = vcmask 1014784
        %v1965 = vsel %vm1964, %v1947, %v1949
        %v1966 = vsel %vm1964, %v1949, %v1951
        %v1967 = vsel %vm1964, %v1951, %v1953
        %v1968 = vsel %vm1964, %v1953, %v1955
        %v1969 = vsel %vm1964, %v1955, %v1957
        %v1970 = vsel %vm1964, %v1957, %v1959
        %v1971 = vsel %vm1964, %v1959, %v1961
        %v1972 = vsel %vm1964, %v1961, %v1963
        %1982 = vst [vmem:[#allocation6 + $0x90] sm:$0xff] %v1965
        %1983 = vst [vmem:[#allocation6 + $0x98] sm:$0xff] %v1966
        %1984 = vst [vmem:[#allocation6 + $0xa0] sm:$0xff] %v1967
        %1985 = vst [vmem:[#allocation6 + $0xa8] sm:$0xff] %v1968
        %1986 = vst [vmem:[#allocation6 + $0xb0] sm:$0xff] %v1969
        %1987 = vst [vmem:[#allocation6 + $0xb8] sm:$0xff] %v1970
        %1988 = vst [vmem:[#allocation6 + $0xc0] sm:$0xff] %v1971
        %1989 = vst [vmem:[#allocation6 + $0xc8] sm:$0xff] %v1972
        %1990 = vst.msk [vmem:[#allocation6 + $0xd0] sm:$0xff] %vm1608, %v1963
        %v1991 = vld [vmem:[#allocation5] sm:$0xff]
        %v1992 = vld [vmem:[#allocation5 + $0x8] sm:$0xff]
        %v1993 = vld [vmem:[#allocation5 + $0x10] sm:$0xff]
        %v1994 = vld [vmem:[#allocation5 + $0x18] sm:$0xff]
        %v1995 = vld [vmem:[#allocation5 + $0x20] sm:$0xff]
        %v1996 = vld [vmem:[#allocation5 + $0x28] sm:$0xff]
        %v1997 = vld [vmem:[#allocation5 + $0x30] sm:$0xff]
        %v1998 = vld [vmem:[#allocation5 + $0x38] sm:$0xff]
        %v1999 = vld [vmem:[#allocation5 + $0x40] sm:$0xff]
        %v2000 = vld [vmem:[#allocation5 + $0x48] sm:$0xff]
        %2011 = vrot.lane.b32.xlu0 %v1991, 60
        %v2012 = vpop.permute.xlu0 %2011
        %2013 = vrot.lane.b32.xlu0 %v1992, 60
        %v2014 = vpop.permute.xlu0 %2013
        %2015 = vrot.lane.b32.xlu0 %v1993, 60
        %v2016 = vpop.permute.xlu0 %2015
        %2017 = vrot.lane.b32.xlu0 %v1994, 60
        %v2018 = vpop.permute.xlu0 %2017
        %2019 = vrot.lane.b32.xlu0 %v1995, 60
        %v2020 = vpop.permute.xlu0 %2019
        %2021 = vrot.lane.b32.xlu0 %v1996, 60
        %v2022 = vpop.permute.xlu0 %2021
        %2023 = vrot.lane.b32.xlu0 %v1997, 60
        %v2024 = vpop.permute.xlu0 %2023
        %2025 = vrot.lane.b32.xlu0 %v1998, 60
        %v2026 = vpop.permute.xlu0 %2025
        %2027 = vrot.lane.b32.xlu0 %v1999, 60
        %v2028 = vpop.permute.xlu0 %2027
        %2029 = vrot.lane.b32.xlu0 %v2000, 60
        %v2030 = vpop.permute.xlu0 %2029
        %v2031 = vsel %vm998, %v2012, %v2014
        %v2032 = vsel %vm998, %v2014, %v2016
        %v2033 = vsel %vm998, %v2016, %v2018
        %v2034 = vsel %vm998, %v2018, %v2020
        %v2035 = vsel %vm998, %v2020, %v2022
        %v2036 = vsel %vm998, %v2022, %v2024
        %v2037 = vsel %vm998, %v2024, %v2026
        %v2038 = vsel %vm998, %v2026, %v2028
        %v2039 = vsel %vm998, %v2028, %v2030
        %2049 = vst [vmem:[#allocation6 + $0xd8] sm:$0xff] %v2031
        %2050 = vst [vmem:[#allocation6 + $0xe0] sm:$0xff] %v2032
        %2051 = vst [vmem:[#allocation6 + $0xe8] sm:$0xff] %v2033
        %2052 = vst [vmem:[#allocation6 + $0xf0] sm:$0xff] %v2034
        %2053 = vst [vmem:[#allocation6 + $0xf8] sm:$0xff] %v2035
        %2054 = vst [vmem:[#allocation6 + $0x100] sm:$0xff] %v2036
        %2055 = vst [vmem:[#allocation6 + $0x108] sm:$0xff] %v2037
        %2056 = vst [vmem:[#allocation6 + $0x110] sm:$0xff] %v2038
        %2057 = vst.msk [vmem:[#allocation6 + $0x118] sm:$0xff] %vm1608, %v2039
        %v2058 = vld [vmem:[#allocation5] sm:$0xff]
        %v2059 = vld [vmem:[#allocation5 + $0x8] sm:$0xff]
        %v2060 = vld [vmem:[#allocation5 + $0x10] sm:$0xff]
        %v2061 = vld [vmem:[#allocation5 + $0x18] sm:$0xff]
        %v2062 = vld [vmem:[#allocation5 + $0x20] sm:$0xff]
        %v2063 = vld [vmem:[#allocation5 + $0x28] sm:$0xff]
        %v2064 = vld [vmem:[#allocation5 + $0x30] sm:$0xff]
        %v2065 = vld [vmem:[#allocation5 + $0x38] sm:$0xff]
        %v2066 = vld [vmem:[#allocation5 + $0x40] sm:$0xff]
        %v2067 = vld [vmem:[#allocation5 + $0x48] sm:$0xff]
        %2078 = vrot.lane.b32.xlu0 %v2058, 58
        %v2079 = vpop.permute.xlu0 %2078
        %2080 = vrot.lane.b32.xlu0 %v2059, 58
        %v2081 = vpop.permute.xlu0 %2080
        %2082 = vrot.lane.b32.xlu0 %v2060, 58
        %v2083 = vpop.permute.xlu0 %2082
        %2084 = vrot.lane.b32.xlu0 %v2061, 58
        %v2085 = vpop.permute.xlu0 %2084
        %2086 = vrot.lane.b32.xlu0 %v2062, 58
        %v2087 = vpop.permute.xlu0 %2086
        %2088 = vrot.lane.b32.xlu0 %v2063, 58
        %v2089 = vpop.permute.xlu0 %2088
        %2090 = vrot.lane.b32.xlu0 %v2064, 58
        %v2091 = vpop.permute.xlu0 %2090
        %2092 = vrot.lane.b32.xlu0 %v2065, 58
        %v2093 = vpop.permute.xlu0 %2092
        %2094 = vrot.lane.b32.xlu0 %v2066, 58
        %v2095 = vpop.permute.xlu0 %2094
        %2096 = vrot.lane.b32.xlu0 %v2067, 58
        %v2097 = vpop.permute.xlu0 %2096
        %v2098 = vsel %vm1135, %v2079, %v2081
        %v2099 = vsel %vm1135, %v2081, %v2083
        %v2100 = vsel %vm1135, %v2083, %v2085
        %v2101 = vsel %vm1135, %v2085, %v2087
        %v2102 = vsel %vm1135, %v2087, %v2089
        %v2103 = vsel %vm1135, %v2089, %v2091
        %v2104 = vsel %vm1135, %v2091, %v2093
        %v2105 = vsel %vm1135, %v2093, %v2095
        %v2106 = vsel %vm1135, %v2095, %v2097
        %2116 = vst [vmem:[#allocation6 + $0x120] sm:$0xff] %v2098
        %2117 = vst [vmem:[#allocation6 + $0x128] sm:$0xff] %v2099
        %2118 = vst [vmem:[#allocation6 + $0x130] sm:$0xff] %v2100
        %2119 = vst [vmem:[#allocation6 + $0x138] sm:$0xff] %v2101
        %2120 = vst [vmem:[#allocation6 + $0x140] sm:$0xff] %v2102
        %2121 = vst [vmem:[#allocation6 + $0x148] sm:$0xff] %v2103
        %2122 = vst [vmem:[#allocation6 + $0x150] sm:$0xff] %v2104
        %2123 = vst [vmem:[#allocation6 + $0x158] sm:$0xff] %v2105
        %2124 = vst.msk [vmem:[#allocation6 + $0x160] sm:$0xff] %vm1608, %v2106
        %v2125 = vld [vmem:[#allocation5] sm:$0xff]
        %v2126 = vld [vmem:[#allocation5 + $0x8] sm:$0xff]
        %v2127 = vld [vmem:[#allocation5 + $0x10] sm:$0xff]
        %v2128 = vld [vmem:[#allocation5 + $0x18] sm:$0xff]
        %v2129 = vld [vmem:[#allocation5 + $0x20] sm:$0xff]
        %v2130 = vld [vmem:[#allocation5 + $0x28] sm:$0xff]
        %v2131 = vld [vmem:[#allocation5 + $0x30] sm:$0xff]
        %v2132 = vld [vmem:[#allocation5 + $0x38] sm:$0xff]
        %v2133 = vld [vmem:[#allocation5 + $0x40] sm:$0xff]
        %v2134 = vld [vmem:[#allocation5 + $0x48] sm:$0xff]
        %2145 = vrot.lane.b32.xlu0 %v2125, 56
        %v2146 = vpop.permute.xlu0 %2145
        %2147 = vrot.lane.b32.xlu0 %v2126, 56
        %v2148 = vpop.permute.xlu0 %2147
        %2149 = vrot.lane.b32.xlu0 %v2127, 56
        %v2150 = vpop.permute.xlu0 %2149
        %2151 = vrot.lane.b32.xlu0 %v2128, 56
        %v2152 = vpop.permute.xlu0 %2151
        %2153 = vrot.lane.b32.xlu0 %v2129, 56
        %v2154 = vpop.permute.xlu0 %2153
        %2155 = vrot.lane.b32.xlu0 %v2130, 56
        %v2156 = vpop.permute.xlu0 %2155
        %2157 = vrot.lane.b32.xlu0 %v2131, 56
        %v2158 = vpop.permute.xlu0 %2157
        %2159 = vrot.lane.b32.xlu0 %v2132, 56
        %v2160 = vpop.permute.xlu0 %2159
        %2161 = vrot.lane.b32.xlu0 %v2133, 56
        %v2162 = vpop.permute.xlu0 %2161
        %2163 = vrot.lane.b32.xlu0 %v2134, 56
        %v2164 = vpop.permute.xlu0 %2163
        %vm2165 = vcmask 457728
        %v2166 = vsel %vm2165, %v2146, %v2148
        %v2167 = vsel %vm2165, %v2148, %v2150
        %v2168 = vsel %vm2165, %v2150, %v2152
        %v2169 = vsel %vm2165, %v2152, %v2154
        %v2170 = vsel %vm2165, %v2154, %v2156
        %v2171 = vsel %vm2165, %v2156, %v2158
        %v2172 = vsel %vm2165, %v2158, %v2160
        %v2173 = vsel %vm2165, %v2160, %v2162
        %v2174 = vsel %vm2165, %v2162, %v2164
        %2184 = vst [vmem:[#allocation6 + $0x168] sm:$0xff] %v2166
        %2185 = vst [vmem:[#allocation6 + $0x170] sm:$0xff] %v2167
        %2186 = vst [vmem:[#allocation6 + $0x178] sm:$0xff] %v2168
        %2187 = vst [vmem:[#allocation6 + $0x180] sm:$0xff] %v2169
        %2188 = vst [vmem:[#allocation6 + $0x188] sm:$0xff] %v2170
        %2189 = vst [vmem:[#allocation6 + $0x190] sm:$0xff] %v2171
        %2190 = vst [vmem:[#allocation6 + $0x198] sm:$0xff] %v2172
        %2191 = vst [vmem:[#allocation6 + $0x1a0] sm:$0xff] %v2173
        %2192 = vst.msk [vmem:[#allocation6 + $0x1a8] sm:$0xff] %vm1608, %v2174
        %v2193 = vld [vmem:[#allocation5 + $0x8] sm:$0xff]
        %v2194 = vld [vmem:[#allocation5 + $0x10] sm:$0xff]
        %v2195 = vld [vmem:[#allocation5 + $0x18] sm:$0xff]
        %v2196 = vld [vmem:[#allocation5 + $0x20] sm:$0xff]
        %v2197 = vld [vmem:[#allocation5 + $0x28] sm:$0xff]
        %v2198 = vld [vmem:[#allocation5 + $0x30] sm:$0xff]
        %v2199 = vld [vmem:[#allocation5 + $0x38] sm:$0xff]
        %v2200 = vld [vmem:[#allocation5 + $0x40] sm:$0xff]
        %v2201 = vld [vmem:[#allocation5 + $0x48] sm:$0xff]
        %2211 = vrot.lane.b32.xlu0 %v2193, 120
        %v2212 = vpop.permute.xlu0 %2211
        %2213 = vrot.lane.b32.xlu0 %v2194, 120
        %v2214 = vpop.permute.xlu0 %2213
        %2215 = vrot.lane.b32.xlu0 %v2195, 120
        %v2216 = vpop.permute.xlu0 %2215
        %2217 = vrot.lane.b32.xlu0 %v2196, 120
        %v2218 = vpop.permute.xlu0 %2217
        %2219 = vrot.lane.b32.xlu0 %v2197, 120
        %v2220 = vpop.permute.xlu0 %2219
        %2221 = vrot.lane.b32.xlu0 %v2198, 120
        %v2222 = vpop.permute.xlu0 %2221
        %2223 = vrot.lane.b32.xlu0 %v2199, 120
        %v2224 = vpop.permute.xlu0 %2223
        %2225 = vrot.lane.b32.xlu0 %v2200, 120
        %v2226 = vpop.permute.xlu0 %2225
        %2227 = vrot.lane.b32.xlu0 %v2201, 120
        %v2228 = vpop.permute.xlu0 %2227
        %vm2229 = vcmask 982016
        %v2230 = vsel %vm2229, %v2212, %v2214
        %v2231 = vsel %vm2229, %v2214, %v2216
        %v2232 = vsel %vm2229, %v2216, %v2218
        %v2233 = vsel %vm2229, %v2218, %v2220
        %v2234 = vsel %vm2229, %v2220, %v2222
        %v2235 = vsel %vm2229, %v2222, %v2224
        %v2236 = vsel %vm2229, %v2224, %v2226
        %v2237 = vsel %vm2229, %v2226, %v2228
        %2247 = vst [vmem:[#allocation6 + $0x1b0] sm:$0xff] %v2230
        %2248 = vst [vmem:[#allocation6 + $0x1b8] sm:$0xff] %v2231
        %2249 = vst [vmem:[#allocation6 + $0x1c0] sm:$0xff] %v2232
        %2250 = vst [vmem:[#allocation6 + $0x1c8] sm:$0xff] %v2233
        %2251 = vst [vmem:[#allocation6 + $0x1d0] sm:$0xff] %v2234
        %2252 = vst [vmem:[#allocation6 + $0x1d8] sm:$0xff] %v2235
        %2253 = vst [vmem:[#allocation6 + $0x1e0] sm:$0xff] %v2236
        %2254 = vst [vmem:[#allocation6 + $0x1e8] sm:$0xff] %v2237
        %2255 = vst.msk [vmem:[#allocation6 + $0x1f0] sm:$0xff] %vm1608, %v2228
        %v2256 = vld [vmem:[#allocation5 + $0x8] sm:$0xff]
        %v2257 = vld [vmem:[#allocation5 + $0x10] sm:$0xff]
        %v2258 = vld [vmem:[#allocation5 + $0x18] sm:$0xff]
        %v2259 = vld [vmem:[#allocation5 + $0x20] sm:$0xff]
        %v2260 = vld [vmem:[#allocation5 + $0x28] sm:$0xff]
        %v2261 = vld [vmem:[#allocation5 + $0x30] sm:$0xff]
        %v2262 = vld [vmem:[#allocation5 + $0x38] sm:$0xff]
        %v2263 = vld [vmem:[#allocation5 + $0x40] sm:$0xff]
        %v2264 = vld [vmem:[#allocation5 + $0x48] sm:$0xff]
        %2274 = vrot.lane.b32.xlu0 %v2256, 118
        %v2275 = vpop.permute.xlu0 %2274
        %2276 = vrot.lane.b32.xlu0 %v2257, 118
        %v2277 = vpop.permute.xlu0 %2276
        %2278 = vrot.lane.b32.xlu0 %v2258, 118
        %v2279 = vpop.permute.xlu0 %2278
        %2280 = vrot.lane.b32.xlu0 %v2259, 118
        %v2281 = vpop.permute.xlu0 %2280
        %2282 = vrot.lane.b32.xlu0 %v2260, 118
        %v2283 = vpop.permute.xlu0 %2282
        %2284 = vrot.lane.b32.xlu0 %v2261, 118
        %v2285 = vpop.permute.xlu0 %2284
        %2286 = vrot.lane.b32.xlu0 %v2262, 118
        %v2287 = vpop.permute.xlu0 %2286
        %2288 = vrot.lane.b32.xlu0 %v2263, 118
        %v2289 = vpop.permute.xlu0 %2288
        %2290 = vrot.lane.b32.xlu0 %v2264, 118
        %v2291 = vpop.permute.xlu0 %2290
        %vm2292 = vcmask 965632
        %v2293 = vsel %vm2292, %v2275, %v2277
        %v2294 = vsel %vm2292, %v2277, %v2279
        %v2295 = vsel %vm2292, %v2279, %v2281
        %v2296 = vsel %vm2292, %v2281, %v2283
        %v2297 = vsel %vm2292, %v2283, %v2285
        %v2298 = vsel %vm2292, %v2285, %v2287
        %v2299 = vsel %vm2292, %v2287, %v2289
        %v2300 = vsel %vm2292, %v2289, %v2291
        %2310 = vst [vmem:[#allocation6 + $0x1f8] sm:$0xff] %v2293
        %2311 = vst [vmem:[#allocation6 + $0x200] sm:$0xff] %v2294
        %2312 = vst [vmem:[#allocation6 + $0x208] sm:$0xff] %v2295
        %2313 = vst [vmem:[#allocation6 + $0x210] sm:$0xff] %v2296
        %2314 = vst [vmem:[#allocation6 + $0x218] sm:$0xff] %v2297
        %2315 = vst [vmem:[#allocation6 + $0x220] sm:$0xff] %v2298
        %2316 = vst [vmem:[#allocation6 + $0x228] sm:$0xff] %v2299
        %2317 = vst [vmem:[#allocation6 + $0x230] sm:$0xff] %v2300
        %2318 = vst.msk [vmem:[#allocation6 + $0x238] sm:$0xff] %vm1608, %v2291
        %v2319 = vld [vmem:[#allocation5 + $0x8] sm:$0xff]
        %v2320 = vld [vmem:[#allocation5 + $0x10] sm:$0xff]
        %v2321 = vld [vmem:[#allocation5 + $0x18] sm:$0xff]
        %v2322 = vld [vmem:[#allocation5 + $0x20] sm:$0xff]
        %v2323 = vld [vmem:[#allocation5 + $0x28] sm:$0xff]
        %v2324 = vld [vmem:[#allocation5 + $0x30] sm:$0xff]
        %v2325 = vld [vmem:[#allocation5 + $0x38] sm:$0xff]
        %v2326 = vld [vmem:[#allocation5 + $0x40] sm:$0xff]
        %v2327 = vld [vmem:[#allocation5 + $0x48] sm:$0xff]
        %2337 = vrot.lane.b32.xlu0 %v2319, 116
        %v2338 = vpop.permute.xlu0 %2337
        %2339 = vrot.lane.b32.xlu0 %v2320, 116
        %v2340 = vpop.permute.xlu0 %2339
        %2341 = vrot.lane.b32.xlu0 %v2321, 116
        %v2342 = vpop.permute.xlu0 %2341
        %2343 = vrot.lane.b32.xlu0 %v2322, 116
        %v2344 = vpop.permute.xlu0 %2343
        %2345 = vrot.lane.b32.xlu0 %v2323, 116
        %v2346 = vpop.permute.xlu0 %2345
        %2347 = vrot.lane.b32.xlu0 %v2324, 116
        %v2348 = vpop.permute.xlu0 %2347
        %2349 = vrot.lane.b32.xlu0 %v2325, 116
        %v2350 = vpop.permute.xlu0 %2349
        %2351 = vrot.lane.b32.xlu0 %v2326, 116
        %v2352 = vpop.permute.xlu0 %2351
        %2353 = vrot.lane.b32.xlu0 %v2327, 116
        %v2354 = vpop.permute.xlu0 %2353
        %vm2355 = vcmask 949248
        %v2356 = vsel %vm2355, %v2338, %v2340
        %v2357 = vsel %vm2355, %v2340, %v2342
        %v2358 = vsel %vm2355, %v2342, %v2344
        %v2359 = vsel %vm2355, %v2344, %v2346
        %v2360 = vsel %vm2355, %v2346, %v2348
        %v2361 = vsel %vm2355, %v2348, %v2350
        %v2362 = vsel %vm2355, %v2350, %v2352
        %v2363 = vsel %vm2355, %v2352, %v2354
        %2373 = vst [vmem:[#allocation6 + $0x240] sm:$0xff] %v2356
        %2374 = vst [vmem:[#allocation6 + $0x248] sm:$0xff] %v2357
        %2375 = vst [vmem:[#allocation6 + $0x250] sm:$0xff] %v2358
        %2376 = vst [vmem:[#allocation6 + $0x258] sm:$0xff] %v2359
        %2377 = vst [vmem:[#allocation6 + $0x260] sm:$0xff] %v2360
        %2378 = vst [vmem:[#allocation6 + $0x268] sm:$0xff] %v2361
        %2379 = vst [vmem:[#allocation6 + $0x270] sm:$0xff] %v2362
        %2380 = vst [vmem:[#allocation6 + $0x278] sm:$0xff] %v2363
        %2381 = vst.msk [vmem:[#allocation6 + $0x280] sm:$0xff] %vm1608, %v2354
        %v2382 = vld [vmem:[%s3] sm:$0xff]
        %v2383 = vld [vmem:[%s3 + $0x8] sm:$0xff]
        %v2384 = vld [vmem:[#allocation6] sm:$0xff]
        %v2385 = vld [vmem:[#allocation6 + $0x8] sm:$0xff]
        %v2386 = vld [vmem:[#allocation6 + $0x10] sm:$0xff]
        %v2387 = vld [vmem:[#allocation6 + $0x18] sm:$0xff]
        %v2388 = vld [vmem:[#allocation6 + $0x20] sm:$0xff]
        %v2389 = vld [vmem:[#allocation6 + $0x28] sm:$0xff]
        %v2390 = vld [vmem:[#allocation6 + $0x30] sm:$0xff]
        %v2391 = vld [vmem:[#allocation6 + $0x38] sm:$0xff]
        %v2392 = vld [vmem:[#allocation6 + $0x40] sm:$0xff]
        %v2393 = vld [vmem:[#allocation6 + $0x48] sm:$0xff]
        %v2394 = vld [vmem:[#allocation6 + $0x50] sm:$0xff]
        %v2395 = vld [vmem:[#allocation6 + $0x58] sm:$0xff]
        %v2396 = vld [vmem:[#allocation6 + $0x60] sm:$0xff]
        %v2397 = vld [vmem:[#allocation6 + $0x68] sm:$0xff]
        %v2398 = vld [vmem:[#allocation6 + $0x70] sm:$0xff]
        %v2399 = vld [vmem:[#allocation6 + $0x78] sm:$0xff]
        %v2400 = vld [vmem:[#allocation6 + $0x80] sm:$0xff]
        %v2401 = vld [vmem:[#allocation6 + $0x88] sm:$0xff]
        %v2402 = vld [vmem:[#allocation6 + $0x90] sm:$0xff]
        %v2403 = vld [vmem:[#allocation6 + $0x98] sm:$0xff]
        %v2404 = vld [vmem:[#allocation6 + $0xa0] sm:$0xff]
        %v2405 = vld [vmem:[#allocation6 + $0xa8] sm:$0xff]
        %v2406 = vld [vmem:[#allocation6 + $0xb0] sm:$0xff]
        %v2407 = vld [vmem:[#allocation6 + $0xb8] sm:$0xff]
        %v2408 = vld [vmem:[#allocation6 + $0xc0] sm:$0xff]
        %v2409 = vld [vmem:[#allocation6 + $0xc8] sm:$0xff]
        %v2410 = vld [vmem:[#allocation6 + $0xd0] sm:$0xff]
        %v2411 = vld [vmem:[#allocation6 + $0xd8] sm:$0xff]
        %v2412 = vld [vmem:[#allocation6 + $0xe0] sm:$0xff]
        %v2413 = vld [vmem:[#allocation6 + $0xe8] sm:$0xff]
        %v2414 = vld [vmem:[#allocation6 + $0xf0] sm:$0xff]
        %v2415 = vld [vmem:[#allocation6 + $0xf8] sm:$0xff]
        %v2416 = vld [vmem:[#allocation6 + $0x100] sm:$0xff]
        %v2417 = vld [vmem:[#allocation6 + $0x108] sm:$0xff]
        %v2418 = vld [vmem:[#allocation6 + $0x110] sm:$0xff]
        %v2419 = vld [vmem:[#allocation6 + $0x118] sm:$0xff]
        %v2420 = vld [vmem:[#allocation6 + $0x120] sm:$0xff]
        %v2421 = vld [vmem:[#allocation6 + $0x128] sm:$0xff]
        %v2422 = vld [vmem:[#allocation6 + $0x130] sm:$0xff]
        %v2423 = vld [vmem:[#allocation6 + $0x138] sm:$0xff]
        %v2424 = vld [vmem:[#allocation6 + $0x140] sm:$0xff]
        %v2425 = vld [vmem:[#allocation6 + $0x148] sm:$0xff]
        %v2426 = vld [vmem:[#allocation6 + $0x150] sm:$0xff]
        %v2427 = vld [vmem:[#allocation6 + $0x158] sm:$0xff]
        %v2428 = vld [vmem:[#allocation6 + $0x160] sm:$0xff]
        %v2429 = vld [vmem:[#allocation6 + $0x168] sm:$0xff]
        %v2430 = vld [vmem:[#allocation6 + $0x170] sm:$0xff]
        %v2431 = vld [vmem:[#allocation6 + $0x178] sm:$0xff]
        %v2432 = vld [vmem:[#allocation6 + $0x180] sm:$0xff]
        %v2433 = vld [vmem:[#allocation6 + $0x188] sm:$0xff]
        %v2434 = vld [vmem:[#allocation6 + $0x190] sm:$0xff]
        %v2435 = vld [vmem:[#allocation6 + $0x198] sm:$0xff]
        %v2436 = vld [vmem:[#allocation6 + $0x1a0] sm:$0xff]
        %v2437 = vld [vmem:[#allocation6 + $0x1a8] sm:$0xff]
        %v2438 = vld [vmem:[#allocation6 + $0x1b0] sm:$0xff]
        %v2439 = vld [vmem:[#allocation6 + $0x1b8] sm:$0xff]
        %v2440 = vld [vmem:[#allocation6 + $0x1c0] sm:$0xff]
        %v2441 = vld [vmem:[#allocation6 + $0x1c8] sm:$0xff]
        %v2442 = vld [vmem:[#allocation6 + $0x1d0] sm:$0xff]
        %v2443 = vld [vmem:[#allocation6 + $0x1d8] sm:$0xff]
        %v2444 = vld [vmem:[#allocation6 + $0x1e0] sm:$0xff]
        %v2445 = vld [vmem:[#allocation6 + $0x1e8] sm:$0xff]
        %v2446 = vld [vmem:[#allocation6 + $0x1f0] sm:$0xff]
        %v2447 = vld [vmem:[#allocation6 + $0x1f8] sm:$0xff]
        %v2448 = vld [vmem:[#allocation6 + $0x200] sm:$0xff]
        %v2449 = vld [vmem:[#allocation6 + $0x208] sm:$0xff]
        %v2450 = vld [vmem:[#allocation6 + $0x210] sm:$0xff]
        %v2451 = vld [vmem:[#allocation6 + $0x218] sm:$0xff]
        %v2452 = vld [vmem:[#allocation6 + $0x220] sm:$0xff]
        %v2453 = vld [vmem:[#allocation6 + $0x228] sm:$0xff]
        %v2454 = vld [vmem:[#allocation6 + $0x230] sm:$0xff]
        %v2455 = vld [vmem:[#allocation6 + $0x238] sm:$0xff]
        %v2456 = vld [vmem:[#allocation6 + $0x240] sm:$0xff]
        %v2457 = vld [vmem:[#allocation6 + $0x248] sm:$0xff]
        %v2458 = vld [vmem:[#allocation6 + $0x250] sm:$0xff]
        %v2459 = vld [vmem:[#allocation6 + $0x258] sm:$0xff]
        %v2460 = vld [vmem:[#allocation6 + $0x260] sm:$0xff]
        %v2461 = vld [vmem:[#allocation6 + $0x268] sm:$0xff]
        %v2462 = vld [vmem:[#allocation6 + $0x270] sm:$0xff]
        %v2463 = vld [vmem:[#allocation6 + $0x278] sm:$0xff]
        %v2464 = vld [vmem:[#allocation6 + $0x280] sm:$0xff]
        %v2465 = vld [vmem:[%s4] sm:$0xff]
        %v2466 = vld [vmem:[%s4 + $0x8] sm:$0xff]
        %2468 = vset.pattern.permute.xlu0 0
        %2469 = vperm.xlu0 %2468, %v2465
        %v2470 = vpop.permute.xlu0 %2469
        %2473 = vset.pattern.permute.xlu0 0
        %2474 = vperm.xlu0 %2473, %v2466
        %v2475 = vpop.permute.xlu0 %2474
        %vm2477 = vcmask 588800
        %v2479 = vsel %vm2477, %v2382, 0
        %v2482 = vsel %vm2477, %v2383, 0
        %2484 = vmatprep.subr.mxu0 0.0
        %2485 = vmatpush1.msra.mxu0 0.0
        %2486 = vmatprep.subr.mxu0 0.0
        %2487 = vmatpush1.msra.mxu0 0.0
        %2488 = vmatprep.subr.mxu0 0.0
        %2489 = vmatpush1.msra.mxu0 0.0
        %2490 = vmatprep.subr.mxu0 0.0
        %2491 = vmatpush1.msra.mxu0 0.0
        %2492 = vmatprep.subr.mxu0 0.0
        %2493 = vmatpush1.msra.mxu0 0.0
        %2494 = vmatprep.subr.mxu0 0.0
        %2495 = vmatpush1.msra.mxu0 0.0
        %2496 = vmatprep.subr.mxu0 0.0
        %2497 = vmatpush1.msra.mxu0 0.0
        %2498 = vmatprep.subr.mxu0 %v2457
        %2499 = vmatpush1.msra.mxu0 %v2456
        %2500 = vmatprep.subr.mxu0 %v2448
        %2501 = vmatpush1.msra.mxu0 %v2447
        %2502 = vmatprep.subr.mxu0 %v2439
        %2503 = vmatpush1.msra.mxu0 %v2438
        %2504 = vmatprep.subr.mxu0 %v2430
        %2505 = vmatpush1.msra.mxu0 %v2429
        %2506 = vmatprep.subr.mxu0 %v2421
        %2507 = vmatpush1.msra.mxu0 %v2420
        %2508 = vmatprep.subr.mxu0 %v2412
        %2509 = vmatpush1.msra.mxu0 %v2411
        %2510 = vmatprep.subr.mxu0 %v2403
        %2511 = vmatpush1.msra.mxu0 %v2402
        %2512 = vmatprep.subr.mxu0 %v2394
        %2513 = vmatpush1.msra.mxu0 %v2393
        %2514 = vmatprep.subr.mxu0 %v2385
        %2515 = vmatpush1.msra.mxu0 %v2384
        %2516 = vmatprep.subr.mxu0 0.0
        %2517 = vmatpush2.msra.mxu0 0.0
        %2518 = vmatprep.subr.mxu0 0.0
        %2519 = vmatpush2.msra.mxu0 0.0
        %2520 = vmatprep.subr.mxu0 0.0
        %2521 = vmatpush2.msra.mxu0 0.0
        %2522 = vmatprep.subr.mxu0 0.0
        %2523 = vmatpush2.msra.mxu0 0.0
        %2524 = vmatprep.subr.mxu0 0.0
        %2525 = vmatpush2.msra.mxu0 0.0
        %2526 = vmatprep.subr.mxu0 0.0
        %2527 = vmatpush2.msra.mxu0 0.0
        %2528 = vmatprep.subr.mxu0 0.0
        %2529 = vmatpush2.msra.mxu0 0.0
        %2530 = vmatprep.subr.mxu0 0.0
        %2531 = vmatpush2.msra.mxu0 0.0
        %2532 = vmatprep.subr.mxu0 0.0
        %2533 = vmatpush2.msra.mxu0 0.0
        %2534 = vmatprep.subr.mxu0 0.0
        %2535 = vmatpush2.msra.mxu0 0.0
        %2536 = vmatprep.subr.mxu0 0.0
        %2537 = vmatpush2.msra.mxu0 0.0
        %2538 = vmatprep.subr.mxu0 0.0
        %2539 = vmatpush2.msra.mxu0 0.0
        %2540 = vmatprep.subr.mxu0 0.0
        %2541 = vmatpush2.msra.mxu0 0.0
        %2542 = vmatprep.subr.mxu0 0.0
        %2543 = vmatpush2.msra.mxu0 0.0
        %2544 = vmatprep.subr.mxu0 0.0
        %2545 = vmatpush2.msra.mxu0 0.0
        %2546 = vmatprep.subr.mxu0 0.0
        %2547 = vmatpush2.msra.mxu0 0.0
        %2548 = vmatprep.mubr.f32.mxu0 0.0
        %2549 = vmatmul.mubr.f32.gmra.mxu0 %v2479
        %v2550 = vpop.f32.mrf.mxu0
        %v2551 = vadd.f32 %v2470, %v2550
        %v2552 = vpop.f32.mrf.mxu0
        %v2553 = vadd.f32 %v2470, %v2552
        %2554 = vmatprep.mubr.f32.mxu0 0.0
        %2555 = vmatmul.mubr.f32.gmra.mxu0 %v2482
        %v2556 = vpop.f32.mrf.mxu0
        %v2557 = vadd.f32 %v2475, %v2556
        %v2558 = vpop.f32.mrf.mxu0
        %v2559 = vadd.f32 %v2475, %v2558
        %2560 = vdwg.mxu0
        %2561 = vmatprep.subr.mxu0 0.0
        %2562 = vmatpush1.msra.mxu0 0.0
        %2563 = vmatprep.subr.mxu0 0.0
        %2564 = vmatpush1.msra.mxu0 0.0
        %2565 = vmatprep.subr.mxu0 0.0
        %2566 = vmatpush1.msra.mxu0 0.0
        %2567 = vmatprep.subr.mxu0 0.0
        %2568 = vmatpush1.msra.mxu0 0.0
        %2569 = vmatprep.subr.mxu0 0.0
        %2570 = vmatpush1.msra.mxu0 0.0
        %2571 = vmatprep.subr.mxu0 0.0
        %2572 = vmatpush1.msra.mxu0 0.0
        %2573 = vmatprep.subr.mxu0 0.0
        %2574 = vmatpush1.msra.mxu0 0.0
        %2575 = vmatprep.subr.mxu0 %v2459
        %2576 = vmatpush1.msra.mxu0 %v2458
        %2577 = vmatprep.subr.mxu0 %v2450
        %2578 = vmatpush1.msra.mxu0 %v2449
        %2579 = vmatprep.subr.mxu0 %v2441
        %2580 = vmatpush1.msra.mxu0 %v2440
        %2581 = vmatprep.subr.mxu0 %v2432
        %2582 = vmatpush1.msra.mxu0 %v2431
        %2583 = vmatprep.subr.mxu0 %v2423
        %2584 = vmatpush1.msra.mxu0 %v2422
        %2585 = vmatprep.subr.mxu0 %v2414
        %2586 = vmatpush1.msra.mxu0 %v2413
        %2587 = vmatprep.subr.mxu0 %v2405
        %2588 = vmatpush1.msra.mxu0 %v2404
        %2589 = vmatprep.subr.mxu0 %v2396
        %2590 = vmatpush1.msra.mxu0 %v2395
        %2591 = vmatprep.subr.mxu0 %v2387
        %2592 = vmatpush1.msra.mxu0 %v2386
        %2593 = vmatprep.subr.mxu0 0.0
        %2594 = vmatpush2.msra.mxu0 0.0
        %2595 = vmatprep.subr.mxu0 0.0
        %2596 = vmatpush2.msra.mxu0 0.0
        %2597 = vmatprep.subr.mxu0 0.0
        %2598 = vmatpush2.msra.mxu0 0.0
        %2599 = vmatprep.subr.mxu0 0.0
        %2600 = vmatpush2.msra.mxu0 0.0
        %2601 = vmatprep.subr.mxu0 0.0
        %2602 = vmatpush2.msra.mxu0 0.0
        %2603 = vmatprep.subr.mxu0 0.0
        %2604 = vmatpush2.msra.mxu0 0.0
        %2605 = vmatprep.subr.mxu0 0.0
        %2606 = vmatpush2.msra.mxu0 0.0
        %2607 = vmatprep.subr.mxu0 0.0
        %2608 = vmatpush2.msra.mxu0 0.0
        %2609 = vmatprep.subr.mxu0 0.0
        %2610 = vmatpush2.msra.mxu0 0.0
        %2611 = vmatprep.subr.mxu0 0.0
        %2612 = vmatpush2.msra.mxu0 0.0
        %2613 = vmatprep.subr.mxu0 0.0
        %2614 = vmatpush2.msra.mxu0 0.0
        %2615 = vmatprep.subr.mxu0 0.0
        %2616 = vmatpush2.msra.mxu0 0.0
        %2617 = vmatprep.subr.mxu0 0.0
        %2618 = vmatpush2.msra.mxu0 0.0
        %2619 = vmatprep.subr.mxu0 0.0
        %2620 = vmatpush2.msra.mxu0 0.0
        %2621 = vmatprep.subr.mxu0 0.0
        %2622 = vmatpush2.msra.mxu0 0.0
        %2623 = vmatprep.subr.mxu0 0.0
        %2624 = vmatpush2.msra.mxu0 0.0
        %2625 = vmatprep.mubr.f32.mxu0 0.0
        %2626 = vmatmul.mubr.f32.gmra.mxu0 %v2479
        %v2627 = vpop.f32.mrf.mxu0
        %v2628 = vadd.f32 %v2470, %v2627
        %v2629 = vpop.f32.mrf.mxu0
        %v2630 = vadd.f32 %v2470, %v2629
        %2631 = vmatprep.mubr.f32.mxu0 0.0
        %2632 = vmatmul.mubr.f32.gmra.mxu0 %v2482
        %v2633 = vpop.f32.mrf.mxu0
        %v2634 = vadd.f32 %v2475, %v2633
        %v2635 = vpop.f32.mrf.mxu0
        %v2636 = vadd.f32 %v2475, %v2635
        %2637 = vdwg.mxu0
        %2638 = vmatprep.subr.mxu0 0.0
        %2639 = vmatpush1.msra.mxu0 0.0
        %2640 = vmatprep.subr.mxu0 0.0
        %2641 = vmatpush1.msra.mxu0 0.0
        %2642 = vmatprep.subr.mxu0 0.0
        %2643 = vmatpush1.msra.mxu0 0.0
        %2644 = vmatprep.subr.mxu0 0.0
        %2645 = vmatpush1.msra.mxu0 0.0
        %2646 = vmatprep.subr.mxu0 0.0
        %2647 = vmatpush1.msra.mxu0 0.0
        %2648 = vmatprep.subr.mxu0 0.0
        %2649 = vmatpush1.msra.mxu0 0.0
        %2650 = vmatprep.subr.mxu0 0.0
        %2651 = vmatpush1.msra.mxu0 0.0
        %2652 = vmatprep.subr.mxu0 %v2461
        %2653 = vmatpush1.msra.mxu0 %v2460
        %2654 = vmatprep.subr.mxu0 %v2452
        %2655 = vmatpush1.msra.mxu0 %v2451
        %2656 = vmatprep.subr.mxu0 %v2443
        %2657 = vmatpush1.msra.mxu0 %v2442
        %2658 = vmatprep.subr.mxu0 %v2434
        %2659 = vmatpush1.msra.mxu0 %v2433
        %2660 = vmatprep.subr.mxu0 %v2425
        %2661 = vmatpush1.msra.mxu0 %v2424
        %2662 = vmatprep.subr.mxu0 %v2416
        %2663 = vmatpush1.msra.mxu0 %v2415
        %2664 = vmatprep.subr.mxu0 %v2407
        %2665 = vmatpush1.msra.mxu0 %v2406
        %2666 = vmatprep.subr.mxu0 %v2398
        %2667 = vmatpush1.msra.mxu0 %v2397
        %2668 = vmatprep.subr.mxu0 %v2389
        %2669 = vmatpush1.msra.mxu0 %v2388
        %2670 = vmatprep.subr.mxu0 0.0
        %2671 = vmatpush2.msra.mxu0 0.0
        %2672 = vmatprep.subr.mxu0 0.0
        %2673 = vmatpush2.msra.mxu0 0.0
        %2674 = vmatprep.subr.mxu0 0.0
        %2675 = vmatpush2.msra.mxu0 0.0
        %2676 = vmatprep.subr.mxu0 0.0
        %2677 = vmatpush2.msra.mxu0 0.0
        %2678 = vmatprep.subr.mxu0 0.0
        %2679 = vmatpush2.msra.mxu0 0.0
        %2680 = vmatprep.subr.mxu0 0.0
        %2681 = vmatpush2.msra.mxu0 0.0
        %2682 = vmatprep.subr.mxu0 0.0
        %2683 = vmatpush2.msra.mxu0 0.0
        %2684 = vmatprep.subr.mxu0 0.0
        %2685 = vmatpush2.msra.mxu0 0.0
        %2686 = vmatprep.subr.mxu0 0.0
        %2687 = vmatpush2.msra.mxu0 0.0
        %2688 = vmatprep.subr.mxu0 0.0
        %2689 = vmatpush2.msra.mxu0 0.0
        %2690 = vmatprep.subr.mxu0 0.0
        %2691 = vmatpush2.msra.mxu0 0.0
        %2692 = vmatprep.subr.mxu0 0.0
        %2693 = vmatpush2.msra.mxu0 0.0
        %2694 = vmatprep.subr.mxu0 0.0
        %2695 = vmatpush2.msra.mxu0 0.0
        %2696 = vmatprep.subr.mxu0 0.0
        %2697 = vmatpush2.msra.mxu0 0.0
        %2698 = vmatprep.subr.mxu0 0.0
        %2699 = vmatpush2.msra.mxu0 0.0
        %2700 = vmatprep.subr.mxu0 0.0
        %2701 = vmatpush2.msra.mxu0 0.0
        %2702 = vmatprep.mubr.f32.mxu0 0.0
        %2703 = vmatmul.mubr.f32.gmra.mxu0 %v2479
        %v2704 = vpop.f32.mrf.mxu0
        %v2705 = vadd.f32 %v2470, %v2704
        %v2706 = vpop.f32.mrf.mxu0
        %v2707 = vadd.f32 %v2470, %v2706
        %2708 = vmatprep.mubr.f32.mxu0 0.0
        %2709 = vmatmul.mubr.f32.gmra.mxu0 %v2482
        %v2710 = vpop.f32.mrf.mxu0
        %v2711 = vadd.f32 %v2475, %v2710
        %v2712 = vpop.f32.mrf.mxu0
        %v2713 = vadd.f32 %v2475, %v2712
        %2714 = vdwg.mxu0
        %2715 = vmatprep.subr.mxu0 0.0
        %2716 = vmatpush1.msra.mxu0 0.0
        %2717 = vmatprep.subr.mxu0 0.0
        %2718 = vmatpush1.msra.mxu0 0.0
        %2719 = vmatprep.subr.mxu0 0.0
        %2720 = vmatpush1.msra.mxu0 0.0
        %2721 = vmatprep.subr.mxu0 0.0
        %2722 = vmatpush1.msra.mxu0 0.0
        %2723 = vmatprep.subr.mxu0 0.0
        %2724 = vmatpush1.msra.mxu0 0.0
        %2725 = vmatprep.subr.mxu0 0.0
        %2726 = vmatpush1.msra.mxu0 0.0
        %2727 = vmatprep.subr.mxu0 0.0
        %2728 = vmatpush1.msra.mxu0 0.0
        %2729 = vmatprep.subr.mxu0 %v2463
        %2730 = vmatpush1.msra.mxu0 %v2462
        %2731 = vmatprep.subr.mxu0 %v2454
        %2732 = vmatpush1.msra.mxu0 %v2453
        %2733 = vmatprep.subr.mxu0 %v2445
        %2734 = vmatpush1.msra.mxu0 %v2444
        %2735 = vmatprep.subr.mxu0 %v2436
        %2736 = vmatpush1.msra.mxu0 %v2435
        %2737 = vmatprep.subr.mxu0 %v2427
        %2738 = vmatpush1.msra.mxu0 %v2426
        %2739 = vmatprep.subr.mxu0 %v2418
        %2740 = vmatpush1.msra.mxu0 %v2417
        %2741 = vmatprep.subr.mxu0 %v2409
        %2742 = vmatpush1.msra.mxu0 %v2408
        %2743 = vmatprep.subr.mxu0 %v2400
        %2744 = vmatpush1.msra.mxu0 %v2399
        %2745 = vmatprep.subr.mxu0 %v2391
        %2746 = vmatpush1.msra.mxu0 %v2390
        %2747 = vmatprep.subr.mxu0 0.0
        %2748 = vmatpush2.msra.mxu0 0.0
        %2749 = vmatprep.subr.mxu0 0.0
        %2750 = vmatpush2.msra.mxu0 0.0
        %2751 = vmatprep.subr.mxu0 0.0
        %2752 = vmatpush2.msra.mxu0 0.0
        %2753 = vmatprep.subr.mxu0 0.0
        %2754 = vmatpush2.msra.mxu0 0.0
        %2755 = vmatprep.subr.mxu0 0.0
        %2756 = vmatpush2.msra.mxu0 0.0
        %2757 = vmatprep.subr.mxu0 0.0
        %2758 = vmatpush2.msra.mxu0 0.0
        %2759 = vmatprep.subr.mxu0 0.0
        %2760 = vmatpush2.msra.mxu0 0.0
        %2761 = vmatprep.subr.mxu0 0.0
        %2762 = vmatpush2.msra.mxu0 0.0
        %2763 = vmatprep.subr.mxu0 0.0
        %2764 = vmatpush2.msra.mxu0 0.0
        %2765 = vmatprep.subr.mxu0 0.0
        %2766 = vmatpush2.msra.mxu0 0.0
        %2767 = vmatprep.subr.mxu0 0.0
        %2768 = vmatpush2.msra.mxu0 0.0
        %2769 = vmatprep.subr.mxu0 0.0
        %2770 = vmatpush2.msra.mxu0 0.0
        %2771 = vmatprep.subr.mxu0 0.0
        %2772 = vmatpush2.msra.mxu0 0.0
        %2773 = vmatprep.subr.mxu0 0.0
        %2774 = vmatpush2.msra.mxu0 0.0
        %2775 = vmatprep.subr.mxu0 0.0
        %2776 = vmatpush2.msra.mxu0 0.0
        %2777 = vmatprep.subr.mxu0 0.0
        %2778 = vmatpush2.msra.mxu0 0.0
        %2779 = vmatprep.mubr.f32.mxu0 0.0
        %2780 = vmatmul.mubr.f32.gmra.mxu0 %v2479
        %v2781 = vpop.f32.mrf.mxu0
        %v2782 = vadd.f32 %v2470, %v2781
        %v2783 = vpop.f32.mrf.mxu0
        %v2784 = vadd.f32 %v2470, %v2783
        %2785 = vmatprep.mubr.f32.mxu0 0.0
        %2786 = vmatmul.mubr.f32.gmra.mxu0 %v2482
        %v2787 = vpop.f32.mrf.mxu0
        %v2788 = vadd.f32 %v2475, %v2787
        %v2789 = vpop.f32.mrf.mxu0
        %v2790 = vadd.f32 %v2475, %v2789
        %2791 = vdwg.mxu0
        %2792 = vmatprep.subr.mxu0 0.0
        %2793 = vmatpush1.msra.mxu0 0.0
        %2794 = vmatprep.subr.mxu0 0.0
        %2795 = vmatpush1.msra.mxu0 0.0
        %2796 = vmatprep.subr.mxu0 0.0
        %2797 = vmatpush1.msra.mxu0 0.0
        %2798 = vmatprep.subr.mxu0 0.0
        %2799 = vmatpush1.msra.mxu0 0.0
        %2800 = vmatprep.subr.mxu0 0.0
        %2801 = vmatpush1.msra.mxu0 0.0
        %2802 = vmatprep.subr.mxu0 0.0
        %2803 = vmatpush1.msra.mxu0 0.0
        %2804 = vmatprep.subr.mxu0 0.0
        %2805 = vmatpush1.msra.mxu0 0.0
        %2806 = vmatprep.subr.mxu0 0.0
        %2807 = vmatpush1.msra.mxu0 %v2464
        %2808 = vmatprep.subr.mxu0 0.0
        %2809 = vmatpush1.msra.mxu0 %v2455
        %2810 = vmatprep.subr.mxu0 0.0
        %2811 = vmatpush1.msra.mxu0 %v2446
        %2812 = vmatprep.subr.mxu0 0.0
        %2813 = vmatpush1.msra.mxu0 %v2437
        %2814 = vmatprep.subr.mxu0 0.0
        %2815 = vmatpush1.msra.mxu0 %v2428
        %2816 = vmatprep.subr.mxu0 0.0
        %2817 = vmatpush1.msra.mxu0 %v2419
        %2818 = vmatprep.subr.mxu0 0.0
        %2819 = vmatpush1.msra.mxu0 %v2410
        %2820 = vmatprep.subr.mxu0 0.0
        %2821 = vmatpush1.msra.mxu0 %v2401
        %2822 = vmatprep.subr.mxu0 0.0
        %2823 = vmatpush1.msra.mxu0 %v2392
        %2824 = vmatprep.subr.mxu0 0.0
        %2825 = vmatpush2.msra.mxu0 0.0
        %2826 = vmatprep.subr.mxu0 0.0
        %2827 = vmatpush2.msra.mxu0 0.0
        %2828 = vmatprep.subr.mxu0 0.0
        %2829 = vmatpush2.msra.mxu0 0.0
        %2830 = vmatprep.subr.mxu0 0.0
        %2831 = vmatpush2.msra.mxu0 0.0
        %2832 = vmatprep.subr.mxu0 0.0
        %2833 = vmatpush2.msra.mxu0 0.0
        %2834 = vmatprep.subr.mxu0 0.0
        %2835 = vmatpush2.msra.mxu0 0.0
        %2836 = vmatprep.subr.mxu0 0.0
        %2837 = vmatpush2.msra.mxu0 0.0
        %2838 = vmatprep.subr.mxu0 0.0
        %2839 = vmatpush2.msra.mxu0 0.0
        %2840 = vmatprep.subr.mxu0 0.0
        %2841 = vmatpush2.msra.mxu0 0.0
        %2842 = vmatprep.subr.mxu0 0.0
        %2843 = vmatpush2.msra.mxu0 0.0
        %2844 = vmatprep.subr.mxu0 0.0
        %2845 = vmatpush2.msra.mxu0 0.0
        %2846 = vmatprep.subr.mxu0 0.0
        %2847 = vmatpush2.msra.mxu0 0.0
        %2848 = vmatprep.subr.mxu0 0.0
        %2849 = vmatpush2.msra.mxu0 0.0
        %2850 = vmatprep.subr.mxu0 0.0
        %2851 = vmatpush2.msra.mxu0 0.0
        %2852 = vmatprep.subr.mxu0 0.0
        %2853 = vmatpush2.msra.mxu0 0.0
        %2854 = vmatprep.subr.mxu0 0.0
        %2855 = vmatpush2.msra.mxu0 0.0
        %2856 = vmatprep.mubr.f32.mxu0 0.0
        %2857 = vmatmul.mubr.f32.gmra.mxu0 %v2479
        %v2858 = vpop.f32.mrf.mxu0
        %v2859 = vadd.f32 %v2470, %v2858
        %v2860 = vpop.f32.mrf.mxu0
        %2861 = vmatprep.mubr.f32.mxu0 0.0
        %2862 = vmatmul.mubr.f32.gmra.mxu0 %v2482
        %v2863 = vpop.f32.mrf.mxu0
        %v2864 = vadd.f32 %v2475, %v2863
        %v2865 = vpop.f32.mrf.mxu0
        %2866 = vdwg.mxu0
        %v2867 = vmax.f32 %v2551, 0.0
        %v2868 = vmax.f32 %v2553, 0.0
        %v2869 = vmax.f32 %v2628, 0.0
        %v2870 = vmax.f32 %v2630, 0.0
        %v2871 = vmax.f32 %v2705, 0.0
        %v2872 = vmax.f32 %v2707, 0.0
        %v2873 = vmax.f32 %v2782, 0.0
        %v2874 = vmax.f32 %v2784, 0.0
        %v2875 = vmax.f32 %v2859, 0.0
        %v2876 = vmax.f32 %v2557, 0.0
        %v2877 = vmax.f32 %v2559, 0.0
        %v2878 = vmax.f32 %v2634, 0.0
        %v2879 = vmax.f32 %v2636, 0.0
        %v2880 = vmax.f32 %v2711, 0.0
        %v2881 = vmax.f32 %v2713, 0.0
        %v2882 = vmax.f32 %v2788, 0.0
        %v2883 = vmax.f32 %v2790, 0.0
        %v2884 = vmax.f32 %v2864, 0.0
        %2885 = vst [vmem:[#allocation7] sm:$0xff] %v2867
        %2886 = vst [vmem:[#allocation7 + $0x8] sm:$0xff] %v2868
        %2887 = vst [vmem:[#allocation7 + $0x10] sm:$0xff] %v2869
        %2888 = vst [vmem:[#allocation7 + $0x18] sm:$0xff] %v2870
        %2889 = vst [vmem:[#allocation7 + $0x20] sm:$0xff] %v2871
        %2890 = vst [vmem:[#allocation7 + $0x28] sm:$0xff] %v2872
        %2891 = vst [vmem:[#allocation7 + $0x30] sm:$0xff] %v2873
        %2892 = vst [vmem:[#allocation7 + $0x38] sm:$0xff] %v2874
        %2893 = vst.msk [vmem:[#allocation7 + $0x40] sm:$0xff] %vm1608, %v2875
        %2894 = vst [vmem:[#allocation7 + $0x50] sm:$0xff] %v2876
        %2895 = vst [vmem:[#allocation7 + $0x58] sm:$0xff] %v2877
        %2896 = vst [vmem:[#allocation7 + $0x60] sm:$0xff] %v2878
        %2897 = vst [vmem:[#allocation7 + $0x68] sm:$0xff] %v2879
        %2898 = vst [vmem:[#allocation7 + $0x70] sm:$0xff] %v2880
        %2899 = vst [vmem:[#allocation7 + $0x78] sm:$0xff] %v2881
        %2900 = vst [vmem:[#allocation7 + $0x80] sm:$0xff] %v2882
        %2901 = vst [vmem:[#allocation7 + $0x88] sm:$0xff] %v2883
        %2902 = vst.msk [vmem:[#allocation7 + $0x90] sm:$0xff] %vm1608, %v2884
        %vm2903 = vcmask 1048064
        %2904 = vst.msk [vmem:[#allocation7 + $0x40] sm:$0xff] %vm2903, 0.0
        %2905 = vst.msk [vmem:[#allocation7 + $0x48] sm:$0xff] %vm1844, 0.0
        %2906 = vst.msk [vmem:[#allocation7 + $0x90] sm:$0xff] %vm2903, 0.0
        %2907 = vst.msk [vmem:[#allocation7 + $0x98] sm:$0xff] %vm1844, 0.0
        %v2908 = vld [vmem:[#allocation7] sm:$0xff]
        %v2909 = vld [vmem:[#allocation7 + $0x8] sm:$0xff]
        %v2910 = vld [vmem:[#allocation7 + $0x10] sm:$0xff]
        %v2911 = vld [vmem:[#allocation7 + $0x18] sm:$0xff]
        %v2912 = vld [vmem:[#allocation7 + $0x20] sm:$0xff]
        %v2913 = vld [vmem:[#allocation7 + $0x28] sm:$0xff]
        %v2914 = vld [vmem:[#allocation7 + $0x30] sm:$0xff]
        %v2915 = vld [vmem:[#allocation7 + $0x38] sm:$0xff]
        %v2916 = vld [vmem:[#allocation7 + $0x50] sm:$0xff]
        %v2917 = vld [vmem:[#allocation7 + $0x58] sm:$0xff]
        %v2918 = vld [vmem:[#allocation7 + $0x60] sm:$0xff]
        %v2919 = vld [vmem:[#allocation7 + $0x68] sm:$0xff]
        %v2920 = vld [vmem:[#allocation7 + $0x70] sm:$0xff]
        %v2921 = vld [vmem:[#allocation7 + $0x78] sm:$0xff]
        %v2922 = vld [vmem:[#allocation7 + $0x80] sm:$0xff]
        %v2923 = vld [vmem:[#allocation7 + $0x88] sm:$0xff]
        %2940 = vrot.lane.b32.xlu0 %v2908, 126
        %v2941 = vpop.permute.xlu0 %2940
        %2942 = vrot.lane.b32.xlu0 %v2909, 126
        %v2943 = vpop.permute.xlu0 %2942
        %2944 = vrot.lane.b32.xlu0 %v2910, 126
        %v2945 = vpop.permute.xlu0 %2944
        %2946 = vrot.lane.b32.xlu0 %v2911, 126
        %v2947 = vpop.permute.xlu0 %2946
        %2948 = vrot.lane.b32.xlu0 %v2912, 126
        %v2949 = vpop.permute.xlu0 %2948
        %2950 = vrot.lane.b32.xlu0 %v2913, 126
        %v2951 = vpop.permute.xlu0 %2950
        %2952 = vrot.lane.b32.xlu0 %v2914, 126
        %v2953 = vpop.permute.xlu0 %2952
        %2954 = vrot.lane.b32.xlu0 %v2915, 126
        %v2955 = vpop.permute.xlu0 %2954
        %2956 = vrot.lane.b32.xlu0 %v2916, 126
        %v2957 = vpop.permute.xlu0 %2956
        %2958 = vrot.lane.b32.xlu0 %v2917, 126
        %v2959 = vpop.permute.xlu0 %2958
        %2960 = vrot.lane.b32.xlu0 %v2918, 126
        %v2961 = vpop.permute.xlu0 %2960
        %2962 = vrot.lane.b32.xlu0 %v2919, 126
        %v2963 = vpop.permute.xlu0 %2962
        %2964 = vrot.lane.b32.xlu0 %v2920, 126
        %v2965 = vpop.permute.xlu0 %2964
        %2966 = vrot.lane.b32.xlu0 %v2921, 126
        %v2967 = vpop.permute.xlu0 %2966
        %2968 = vrot.lane.b32.xlu0 %v2922, 126
        %v2969 = vpop.permute.xlu0 %2968
        %2970 = vrot.lane.b32.xlu0 %v2923, 126
        %v2971 = vpop.permute.xlu0 %2970
        %v2972 = vsel %vm707, %v2941, %v2943
        %v2973 = vsel %vm707, %v2943, %v2945
        %v2974 = vsel %vm707, %v2945, %v2947
        %v2975 = vsel %vm707, %v2947, %v2949
        %v2976 = vsel %vm707, %v2949, %v2951
        %v2977 = vsel %vm707, %v2951, %v2953
        %v2978 = vsel %vm707, %v2953, %v2955
        %v2979 = vsel %vm707, %v2957, %v2959
        %v2980 = vsel %vm707, %v2959, %v2961
        %v2981 = vsel %vm707, %v2961, %v2963
        %v2982 = vsel %vm707, %v2963, %v2965
        %v2983 = vsel %vm707, %v2965, %v2967
        %v2984 = vsel %vm707, %v2967, %v2969
        %v2985 = vsel %vm707, %v2969, %v2971
        %v3002 = vmax.f32 %v2908, %v2972
        %v3003 = vmax.f32 %v2909, %v2973
        %v3004 = vmax.f32 %v2910, %v2974
        %v3005 = vmax.f32 %v2911, %v2975
        %v3006 = vmax.f32 %v2912, %v2976
        %v3007 = vmax.f32 %v2913, %v2977
        %v3008 = vmax.f32 %v2914, %v2978
        %v3009 = vmax.f32 %v2915, %v2955
        %v3010 = vmax.f32 %v2916, %v2979
        %v3011 = vmax.f32 %v2917, %v2980
        %v3012 = vmax.f32 %v2918, %v2981
        %v3013 = vmax.f32 %v2919, %v2982
        %v3014 = vmax.f32 %v2920, %v2983
        %v3015 = vmax.f32 %v2921, %v2984
        %v3016 = vmax.f32 %v2922, %v2985
        %v3017 = vmax.f32 %v2923, %v2971
        %v3018 = vld [vmem:[#allocation7 + $0x40] sm:$0xff]
        %v3019 = vld [vmem:[#allocation7 + $0x90] sm:$0xff]
        %3022 = vrot.lane.b32.xlu0 %v3018, 126
        %v3023 = vpop.permute.xlu0 %3022
        %3024 = vrot.lane.b32.xlu0 %v3019, 126
        %v3025 = vpop.permute.xlu0 %3024
        %v3026 = vsel %vm707, %v2955, %v3023
        %v3027 = vsel %vm707, %v2971, %v3025
        %v3032 = vmax.f32 %v2915, %v3026
        %v3033 = vmax.f32 %v3018, %v3023
        %v3034 = vmax.f32 %v2923, %v3027
        %v3035 = vmax.f32 %v3019, %v3025
        %3054 = vrot.lane.b32.xlu0 %v3002, 60
        %v3055 = vpop.permute.xlu0 %3054
        %3056 = vrot.lane.b32.xlu0 %v3003, 60
        %v3057 = vpop.permute.xlu0 %3056
        %3058 = vrot.lane.b32.xlu0 %v3004, 60
        %v3059 = vpop.permute.xlu0 %3058
        %3060 = vrot.lane.b32.xlu0 %v3005, 60
        %v3061 = vpop.permute.xlu0 %3060
        %3062 = vrot.lane.b32.xlu0 %v3006, 60
        %v3063 = vpop.permute.xlu0 %3062
        %3064 = vrot.lane.b32.xlu0 %v3007, 60
        %v3065 = vpop.permute.xlu0 %3064
        %3066 = vrot.lane.b32.xlu0 %v3008, 60
        %v3067 = vpop.permute.xlu0 %3066
        %3068 = vrot.lane.b32.xlu0 %v3032, 60
        %v3069 = vpop.permute.xlu0 %3068
        %3070 = vrot.lane.b32.xlu0 %v3033, 60
        %v3071 = vpop.permute.xlu0 %3070
        %3072 = vrot.lane.b32.xlu0 %v3010, 60
        %v3073 = vpop.permute.xlu0 %3072
        %3074 = vrot.lane.b32.xlu0 %v3011, 60
        %v3075 = vpop.permute.xlu0 %3074
        %3076 = vrot.lane.b32.xlu0 %v3012, 60
        %v3077 = vpop.permute.xlu0 %3076
        %3078 = vrot.lane.b32.xlu0 %v3013, 60
        %v3079 = vpop.permute.xlu0 %3078
        %3080 = vrot.lane.b32.xlu0 %v3014, 60
        %v3081 = vpop.permute.xlu0 %3080
        %3082 = vrot.lane.b32.xlu0 %v3015, 60
        %v3083 = vpop.permute.xlu0 %3082
        %3084 = vrot.lane.b32.xlu0 %v3016, 60
        %v3085 = vpop.permute.xlu0 %3084
        %3086 = vrot.lane.b32.xlu0 %v3034, 60
        %v3087 = vpop.permute.xlu0 %3086
        %3088 = vrot.lane.b32.xlu0 %v3035, 60
        %v3089 = vpop.permute.xlu0 %3088
        %v3090 = vsel %vm998, %v3055, %v3057
        %v3091 = vsel %vm998, %v3057, %v3059
        %v3092 = vsel %vm998, %v3059, %v3061
        %v3093 = vsel %vm998, %v3061, %v3063
        %v3094 = vsel %vm998, %v3063, %v3065
        %v3095 = vsel %vm998, %v3065, %v3067
        %v3096 = vsel %vm998, %v3067, %v3069
        %v3097 = vsel %vm998, %v3069, %v3071
        %v3098 = vsel %vm998, %v3073, %v3075
        %v3099 = vsel %vm998, %v3075, %v3077
        %v3100 = vsel %vm998, %v3077, %v3079
        %v3101 = vsel %vm998, %v3079, %v3081
        %v3102 = vsel %vm998, %v3081, %v3083
        %v3103 = vsel %vm998, %v3083, %v3085
        %v3104 = vsel %vm998, %v3085, %v3087
        %v3105 = vsel %vm998, %v3087, %v3089
        %v3122 = vmax.f32 %v3002, %v3090
        %v3123 = vmax.f32 %v3003, %v3091
        %v3124 = vmax.f32 %v3004, %v3092
        %v3125 = vmax.f32 %v3005, %v3093
        %v3126 = vmax.f32 %v3006, %v3094
        %v3127 = vmax.f32 %v3007, %v3095
        %v3128 = vmax.f32 %v3008, %v3096
        %v3129 = vmax.f32 %v3009, %v3097
        %v3130 = vmax.f32 %v3010, %v3098
        %v3131 = vmax.f32 %v3011, %v3099
        %v3132 = vmax.f32 %v3012, %v3100
        %v3133 = vmax.f32 %v3013, %v3101
        %v3134 = vmax.f32 %v3014, %v3102
        %v3135 = vmax.f32 %v3015, %v3103
        %v3136 = vmax.f32 %v3016, %v3104
        %v3137 = vmax.f32 %v3017, %v3105
        %v3138 = vld [vmem:[%s8] sm:$0xff]
        %v3139 = vld [vmem:[%s8 + $0x8] sm:$0xff]
        %v3140 = vld [vmem:[%s8 + $0x10] sm:$0xff]
        %v3141 = vld [vmem:[%s8 + $0x18] sm:$0xff]
        %v3142 = vld [vmem:[%s8 + $0x20] sm:$0xff]
        %v3143 = vld [vmem:[%s8 + $0x28] sm:$0xff]
        %v3144 = vld [vmem:[%s8 + $0x30] sm:$0xff]
        %v3145 = vld [vmem:[%s8 + $0x38] sm:$0xff]
        %v3146 = vld [vmem:[%s8 + $0x40] sm:$0xff]
        %v3147 = vld [vmem:[%s8 + $0x48] sm:$0xff]
        %v3148 = vld [vmem:[%s8 + $0x50] sm:$0xff]
        %v3149 = vld [vmem:[%s8 + $0x58] sm:$0xff]
        %v3150 = vld [vmem:[%s8 + $0x60] sm:$0xff]
        %v3151 = vld [vmem:[%s8 + $0x68] sm:$0xff]
        %v3152 = vld [vmem:[%s8 + $0x70] sm:$0xff]
        %v3153 = vld [vmem:[%s8 + $0x78] sm:$0xff]
        %v3154 = vld [vmem:[%s8 + $0x80] sm:$0xff]
        %v3155 = vld [vmem:[%s8 + $0x88] sm:$0xff]
        %v3156 = vld [vmem:[%s8 + $0x90] sm:$0xff]
        %v3157 = vld [vmem:[%s8 + $0x98] sm:$0xff]
        %v3158 = vld [vmem:[%s8 + $0xa0] sm:$0xff]
        %v3159 = vld [vmem:[%s8 + $0xa8] sm:$0xff]
        %v3160 = vld [vmem:[%s8 + $0xb0] sm:$0xff]
        %v3161 = vld [vmem:[%s8 + $0xb8] sm:$0xff]
        %v3162 = vld [vmem:[%s8 + $0xc0] sm:$0xff]
        %v3163 = vld [vmem:[%s8 + $0xc8] sm:$0xff]
        %v3164 = vld [vmem:[%s8 + $0xd0] sm:$0xff]
        %v3165 = vld [vmem:[%s8 + $0xd8] sm:$0xff]
        %v3166 = vld [vmem:[%s8 + $0xe0] sm:$0xff]
        %v3167 = vld [vmem:[%s8 + $0xe8] sm:$0xff]
        %v3168 = vld [vmem:[%s8 + $0xf0] sm:$0xff]
        %v3169 = vld [vmem:[%s8 + $0xf8] sm:$0xff]
        %v3170 = vld [vmem:[%s8 + $0x100] sm:$0xff]
        %v3171 = vld [vmem:[%s8 + $0x108] sm:$0xff]
        %v3172 = vld [vmem:[%s8 + $0x110] sm:$0xff]
        %v3173 = vld [vmem:[%s8 + $0x118] sm:$0xff]
        %v3174 = vld [vmem:[%s8 + $0x120] sm:$0xff]
        %v3175 = vld [vmem:[%s8 + $0x128] sm:$0xff]
        %v3176 = vld [vmem:[%s8 + $0x130] sm:$0xff]
        %v3177 = vld [vmem:[%s8 + $0x138] sm:$0xff]
        %v3178 = vld [vmem:[%s8 + $0x140] sm:$0xff]
        %v3179 = vld [vmem:[%s8 + $0x148] sm:$0xff]
        %v3180 = vld [vmem:[%s8 + $0x150] sm:$0xff]
        %v3181 = vld [vmem:[%s8 + $0x158] sm:$0xff]
        %v3182 = vld [vmem:[%s8 + $0x160] sm:$0xff]
        %v3183 = vld [vmem:[%s8 + $0x168] sm:$0xff]
        %v3184 = vld [vmem:[%s8 + $0x170] sm:$0xff]
        %v3185 = vld [vmem:[%s8 + $0x178] sm:$0xff]
        %v3186 = vld [vmem:[%s8 + $0x180] sm:$0xff]
        %v3187 = vld [vmem:[%s8 + $0x188] sm:$0xff]
        %v3188 = vld [vmem:[%s8 + $0x190] sm:$0xff]
        %v3189 = vld [vmem:[%s8 + $0x198] sm:$0xff]
        %v3190 = vld [vmem:[%s8 + $0x1a0] sm:$0xff]
        %v3191 = vld [vmem:[%s8 + $0x1a8] sm:$0xff]
        %v3192 = vld [vmem:[%s8 + $0x1b0] sm:$0xff]
        %v3193 = vld [vmem:[%s8 + $0x1b8] sm:$0xff]
        %v3194 = vld [vmem:[%s8 + $0x1c0] sm:$0xff]
        %v3195 = vld [vmem:[%s8 + $0x1c8] sm:$0xff]
        %v3196 = vld [vmem:[%s8 + $0x1d0] sm:$0xff]
        %v3197 = vld [vmem:[%s8 + $0x1d8] sm:$0xff]
        %v3198 = vld [vmem:[%s8 + $0x1e0] sm:$0xff]
        %v3199 = vld [vmem:[%s8 + $0x1e8] sm:$0xff]
        %v3200 = vld [vmem:[%s8 + $0x1f0] sm:$0xff]
        %v3201 = vld [vmem:[%s8 + $0x1f8] sm:$0xff]
        %v3202 = vld [vmem:[%s8 + $0x200] sm:$0xff]
        %v3203 = vld [vmem:[%s8 + $0x208] sm:$0xff]
        %v3204 = vld [vmem:[%s8 + $0x210] sm:$0xff]
        %v3205 = vld [vmem:[%s8 + $0x218] sm:$0xff]
        %v3206 = vld [vmem:[%s8 + $0x220] sm:$0xff]
        %v3207 = vld [vmem:[%s8 + $0x228] sm:$0xff]
        %v3208 = vld [vmem:[%s8 + $0x230] sm:$0xff]
        %v3209 = vld [vmem:[%s8 + $0x238] sm:$0xff]
        %v3210 = vld [vmem:[%s8 + $0x240] sm:$0xff]
        %v3211 = vld [vmem:[%s8 + $0x248] sm:$0xff]
        %v3212 = vld [vmem:[%s8 + $0x250] sm:$0xff]
        %v3213 = vld [vmem:[%s8 + $0x258] sm:$0xff]
        %v3214 = vld [vmem:[%s8 + $0x260] sm:$0xff]
        %v3215 = vld [vmem:[%s8 + $0x268] sm:$0xff]
        %v3216 = vld [vmem:[%s8 + $0x270] sm:$0xff]
        %v3217 = vld [vmem:[%s8 + $0x278] sm:$0xff]
        %v3218 = vld [vmem:[%s8 + $0x280] sm:$0xff]
        %v3219 = vld [vmem:[%s8 + $0x288] sm:$0xff]
        %v3220 = vld [vmem:[%s8 + $0x290] sm:$0xff]
        %v3221 = vld [vmem:[%s8 + $0x298] sm:$0xff]
        %v3222 = vld [vmem:[%s8 + $0x2a0] sm:$0xff]
        %v3223 = vld [vmem:[%s8 + $0x2a8] sm:$0xff]
        %v3224 = vld [vmem:[%s8 + $0x2b0] sm:$0xff]
        %v3225 = vld [vmem:[%s8 + $0x2b8] sm:$0xff]
        %v3226 = vld [vmem:[%s8 + $0x2c0] sm:$0xff]
        %v3227 = vld [vmem:[%s8 + $0x2c8] sm:$0xff]
        %v3228 = vld [vmem:[%s8 + $0x2d0] sm:$0xff]
        %v3229 = vld [vmem:[%s8 + $0x2d8] sm:$0xff]
        %v3230 = vld [vmem:[%s8 + $0x2e0] sm:$0xff]
        %v3231 = vld [vmem:[%s8 + $0x2e8] sm:$0xff]
        %v3232 = vld [vmem:[%s8 + $0x2f0] sm:$0xff]
        %v3233 = vld [vmem:[%s8 + $0x2f8] sm:$0xff]
        %v3234 = vld [vmem:[%s8 + $0x300] sm:$0xff]
        %v3235 = vld [vmem:[%s8 + $0x308] sm:$0xff]
        %v3236 = vld [vmem:[%s8 + $0x310] sm:$0xff]
        %v3237 = vld [vmem:[%s8 + $0x318] sm:$0xff]
        %v3238 = vld [vmem:[%s8 + $0x320] sm:$0xff]
        %v3239 = vld [vmem:[%s8 + $0x328] sm:$0xff]
        %v3240 = vld [vmem:[%s8 + $0x330] sm:$0xff]
        %v3241 = vld [vmem:[%s8 + $0x338] sm:$0xff]
        %v3242 = vld [vmem:[%s8 + $0x340] sm:$0xff]
        %v3243 = vld [vmem:[%s8 + $0x348] sm:$0xff]
        %v3244 = vld [vmem:[%s8 + $0x350] sm:$0xff]
        %v3245 = vld [vmem:[%s8 + $0x358] sm:$0xff]
        %v3246 = vld [vmem:[%s8 + $0x360] sm:$0xff]
        %v3247 = vld [vmem:[%s8 + $0x368] sm:$0xff]
        %v3248 = vld [vmem:[%s8 + $0x370] sm:$0xff]
        %v3249 = vld [vmem:[%s8 + $0x378] sm:$0xff]
        %v3250 = vld [vmem:[%s8 + $0x380] sm:$0xff]
        %v3251 = vld [vmem:[%s8 + $0x388] sm:$0xff]
        %v3252 = vld [vmem:[%s8 + $0x390] sm:$0xff]
        %v3253 = vld [vmem:[%s8 + $0x398] sm:$0xff]
        %v3254 = vld [vmem:[%s8 + $0x3a0] sm:$0xff]
        %v3255 = vld [vmem:[%s8 + $0x3a8] sm:$0xff]
        %v3256 = vld [vmem:[%s8 + $0x3b0] sm:$0xff]
        %v3257 = vld [vmem:[%s8 + $0x3b8] sm:$0xff]
        %v3258 = vld [vmem:[%s8 + $0x3c0] sm:$0xff]
        %v3259 = vld [vmem:[%s8 + $0x3c8] sm:$0xff]
        %v3260 = vld [vmem:[%s8 + $0x3d0] sm:$0xff]
        %vm3261 = vcmask 719872
        %v3263 = vsel %vm3261, %v3129, 0
        %v3266 = vsel %vm3261, %v3137, 0
        %3268 = vmatprep.subr.mxu0 0.0
        %3269 = vmatpush1.msra.mxu0 %v3153
        %3270 = vmatprep.subr.mxu0 0.0
        %3271 = vmatpush1.msra.mxu0 %v3152
        %3272 = vmatprep.subr.mxu0 0.0
        %3273 = vmatpush1.msra.mxu0 %v3151
        %3274 = vmatprep.subr.mxu0 0.0
        %3275 = vmatpush1.msra.mxu0 %v3150
        %3276 = vmatprep.subr.mxu0 0.0
        %3277 = vmatpush1.msra.mxu0 %v3149
        %3278 = vmatprep.subr.mxu0 0.0
        %3279 = vmatpush1.msra.mxu0 %v3148
        %3280 = vmatprep.subr.mxu0 0.0
        %3281 = vmatpush1.msra.mxu0 %v3147
        %3282 = vmatprep.subr.mxu0 0.0
        %3283 = vmatpush1.msra.mxu0 %v3146
        %3284 = vmatprep.subr.mxu0 0.0
        %3285 = vmatpush1.msra.mxu0 %v3145
        %3286 = vmatprep.subr.mxu0 0.0
        %3287 = vmatpush1.msra.mxu0 %v3144
        %3288 = vmatprep.subr.mxu0 0.0
        %3289 = vmatpush1.msra.mxu0 %v3143
        %3290 = vmatprep.subr.mxu0 0.0
        %3291 = vmatpush1.msra.mxu0 %v3142
        %3292 = vmatprep.subr.mxu0 0.0
        %3293 = vmatpush1.msra.mxu0 %v3141
        %3294 = vmatprep.subr.mxu0 0.0
        %3295 = vmatpush1.msra.mxu0 %v3140
        %3296 = vmatprep.subr.mxu0 0.0
        %3297 = vmatpush1.msra.mxu0 %v3139
        %3298 = vmatprep.subr.mxu0 0.0
        %3299 = vmatpush1.msra.mxu0 %v3138
        %3300 = vmatprep.subr.mxu0 0.0
        %3301 = vmatpush2.msra.mxu0 %v3169
        %3302 = vmatprep.subr.mxu0 0.0
        %3303 = vmatpush2.msra.mxu0 %v3168
        %3304 = vmatprep.subr.mxu0 0.0
        %3305 = vmatpush2.msra.mxu0 %v3167
        %3306 = vmatprep.subr.mxu0 0.0
        %3307 = vmatpush2.msra.mxu0 %v3166
        %3308 = vmatprep.subr.mxu0 0.0
        %3309 = vmatpush2.msra.mxu0 %v3165
        %3310 = vmatprep.subr.mxu0 0.0
        %3311 = vmatpush2.msra.mxu0 %v3164
        %3312 = vmatprep.subr.mxu0 0.0
        %3313 = vmatpush2.msra.mxu0 %v3163
        %3314 = vmatprep.subr.mxu0 0.0
        %3315 = vmatpush2.msra.mxu0 %v3162
        %3316 = vmatprep.subr.mxu0 0.0
        %3317 = vmatpush2.msra.mxu0 %v3161
        %3318 = vmatprep.subr.mxu0 0.0
        %3319 = vmatpush2.msra.mxu0 %v3160
        %3320 = vmatprep.subr.mxu0 0.0
        %3321 = vmatpush2.msra.mxu0 %v3159
        %3322 = vmatprep.subr.mxu0 0.0
        %3323 = vmatpush2.msra.mxu0 %v3158
        %3324 = vmatprep.subr.mxu0 0.0
        %3325 = vmatpush2.msra.mxu0 %v3157
        %3326 = vmatprep.subr.mxu0 0.0
        %3327 = vmatpush2.msra.mxu0 %v3156
        %3328 = vmatprep.subr.mxu0 0.0
        %3329 = vmatpush2.msra.mxu0 %v3155
        %3330 = vmatprep.subr.mxu0 0.0
        %3331 = vmatpush2.msra.mxu0 %v3154
        %3332 = vmatprep.mubr.f32.mxu0 %v3123
        %3333 = vmatmul.mubr.f32.gmra.mxu0 %v3122
        %v3334 = vpop.f32.mrf.mxu0
        %v3335 = vadd.f32 0.0, %v3334
        %v3336 = vpop.f32.mrf.mxu0
        %3337 = vmatprep.mubr.f32.mxu0 %v3131
        %3338 = vmatmul.mubr.f32.gmra.mxu0 %v3130
        %v3339 = vpop.f32.mrf.mxu0
        %v3340 = vadd.f32 0.0, %v3339
        %v3341 = vpop.f32.mrf.mxu0
        %3342 = vdwg.mxu0
        %3343 = vmatprep.subr.mxu0 0.0
        %3344 = vmatpush1.msra.mxu0 %v3185
        %3345 = vmatprep.subr.mxu0 0.0
        %3346 = vmatpush1.msra.mxu0 %v3184
        %3347 = vmatprep.subr.mxu0 0.0
        %3348 = vmatpush1.msra.mxu0 %v3183
        %3349 = vmatprep.subr.mxu0 0.0
        %3350 = vmatpush1.msra.mxu0 %v3182
        %3351 = vmatprep.subr.mxu0 0.0
        %3352 = vmatpush1.msra.mxu0 %v3181
        %3353 = vmatprep.subr.mxu0 0.0
        %3354 = vmatpush1.msra.mxu0 %v3180
        %3355 = vmatprep.subr.mxu0 0.0
        %3356 = vmatpush1.msra.mxu0 %v3179
        %3357 = vmatprep.subr.mxu0 0.0
        %3358 = vmatpush1.msra.mxu0 %v3178
        %3359 = vmatprep.subr.mxu0 0.0
        %3360 = vmatpush1.msra.mxu0 %v3177
        %3361 = vmatprep.subr.mxu0 0.0
        %3362 = vmatpush1.msra.mxu0 %v3176
        %3363 = vmatprep.subr.mxu0 0.0
        %3364 = vmatpush1.msra.mxu0 %v3175
        %3365 = vmatprep.subr.mxu0 0.0
        %3366 = vmatpush1.msra.mxu0 %v3174
        %3367 = vmatprep.subr.mxu0 0.0
        %3368 = vmatpush1.msra.mxu0 %v3173
        %3369 = vmatprep.subr.mxu0 0.0
        %3370 = vmatpush1.msra.mxu0 %v3172
        %3371 = vmatprep.subr.mxu0 0.0
        %3372 = vmatpush1.msra.mxu0 %v3171
        %3373 = vmatprep.subr.mxu0 0.0
        %3374 = vmatpush1.msra.mxu0 %v3170
        %3375 = vmatprep.subr.mxu0 0.0
        %3376 = vmatpush2.msra.mxu0 %v3201
        %3377 = vmatprep.subr.mxu0 0.0
        %3378 = vmatpush2.msra.mxu0 %v3200
        %3379 = vmatprep.subr.mxu0 0.0
        %3380 = vmatpush2.msra.mxu0 %v3199
        %3381 = vmatprep.subr.mxu0 0.0
        %3382 = vmatpush2.msra.mxu0 %v3198
        %3383 = vmatprep.subr.mxu0 0.0
        %3384 = vmatpush2.msra.mxu0 %v3197
        %3385 = vmatprep.subr.mxu0 0.0
        %3386 = vmatpush2.msra.mxu0 %v3196
        %3387 = vmatprep.subr.mxu0 0.0
        %3388 = vmatpush2.msra.mxu0 %v3195
        %3389 = vmatprep.subr.mxu0 0.0
        %3390 = vmatpush2.msra.mxu0 %v3194
        %3391 = vmatprep.subr.mxu0 0.0
        %3392 = vmatpush2.msra.mxu0 %v3193
        %3393 = vmatprep.subr.mxu0 0.0
        %3394 = vmatpush2.msra.mxu0 %v3192
        %3395 = vmatprep.subr.mxu0 0.0
        %3396 = vmatpush2.msra.mxu0 %v3191
        %3397 = vmatprep.subr.mxu0 0.0
        %3398 = vmatpush2.msra.mxu0 %v3190
        %3399 = vmatprep.subr.mxu0 0.0
        %3400 = vmatpush2.msra.mxu0 %v3189
        %3401 = vmatprep.subr.mxu0 0.0
        %3402 = vmatpush2.msra.mxu0 %v3188
        %3403 = vmatprep.subr.mxu0 0.0
        %3404 = vmatpush2.msra.mxu0 %v3187
        %3405 = vmatprep.subr.mxu0 0.0
        %3406 = vmatpush2.msra.mxu0 %v3186
        %3407 = vmatprep.mubr.f32.mxu0 %v3125
        %3408 = vmatmul.mubr.f32.gmra.mxu0 %v3124
        %v3409 = vpop.f32.mrf.mxu0
        %v3410 = vadd.f32 %v3335, %v3409
        %v3411 = vpop.f32.mrf.mxu0
        %3412 = vmatprep.mubr.f32.mxu0 %v3133
        %3413 = vmatmul.mubr.f32.gmra.mxu0 %v3132
        %v3414 = vpop.f32.mrf.mxu0
        %v3415 = vadd.f32 %v3340, %v3414
        %v3416 = vpop.f32.mrf.mxu0
        %3417 = vdwg.mxu0
        %3418 = vmatprep.subr.mxu0 0.0
        %3419 = vmatpush1.msra.mxu0 %v3217
        %3420 = vmatprep.subr.mxu0 0.0
        %3421 = vmatpush1.msra.mxu0 %v3216
        %3422 = vmatprep.subr.mxu0 0.0
        %3423 = vmatpush1.msra.mxu0 %v3215
        %3424 = vmatprep.subr.mxu0 0.0
        %3425 = vmatpush1.msra.mxu0 %v3214
        %3426 = vmatprep.subr.mxu0 0.0
        %3427 = vmatpush1.msra.mxu0 %v3213
        %3428 = vmatprep.subr.mxu0 0.0
        %3429 = vmatpush1.msra.mxu0 %v3212
        %3430 = vmatprep.subr.mxu0 0.0
        %3431 = vmatpush1.msra.mxu0 %v3211
        %3432 = vmatprep.subr.mxu0 0.0
        %3433 = vmatpush1.msra.mxu0 %v3210
        %3434 = vmatprep.subr.mxu0 0.0
        %3435 = vmatpush1.msra.mxu0 %v3209
        %3436 = vmatprep.subr.mxu0 0.0
        %3437 = vmatpush1.msra.mxu0 %v3208
        %3438 = vmatprep.subr.mxu0 0.0
        %3439 = vmatpush1.msra.mxu0 %v3207
        %3440 = vmatprep.subr.mxu0 0.0
        %3441 = vmatpush1.msra.mxu0 %v3206
        %3442 = vmatprep.subr.mxu0 0.0
        %3443 = vmatpush1.msra.mxu0 %v3205
        %3444 = vmatprep.subr.mxu0 0.0
        %3445 = vmatpush1.msra.mxu0 %v3204
        %3446 = vmatprep.subr.mxu0 0.0
        %3447 = vmatpush1.msra.mxu0 %v3203
        %3448 = vmatprep.subr.mxu0 0.0
        %3449 = vmatpush1.msra.mxu0 %v3202
        %3450 = vmatprep.subr.mxu0 0.0
        %3451 = vmatpush2.msra.mxu0 %v3233
        %3452 = vmatprep.subr.mxu0 0.0
        %3453 = vmatpush2.msra.mxu0 %v3232
        %3454 = vmatprep.subr.mxu0 0.0
        %3455 = vmatpush2.msra.mxu0 %v3231
        %3456 = vmatprep.subr.mxu0 0.0
        %3457 = vmatpush2.msra.mxu0 %v3230
        %3458 = vmatprep.subr.mxu0 0.0
        %3459 = vmatpush2.msra.mxu0 %v3229
        %3460 = vmatprep.subr.mxu0 0.0
        %3461 = vmatpush2.msra.mxu0 %v3228
        %3462 = vmatprep.subr.mxu0 0.0
        %3463 = vmatpush2.msra.mxu0 %v3227
        %3464 = vmatprep.subr.mxu0 0.0
        %3465 = vmatpush2.msra.mxu0 %v3226
        %3466 = vmatprep.subr.mxu0 0.0
        %3467 = vmatpush2.msra.mxu0 %v3225
        %3468 = vmatprep.subr.mxu0 0.0
        %3469 = vmatpush2.msra.mxu0 %v3224
        %3470 = vmatprep.subr.mxu0 0.0
        %3471 = vmatpush2.msra.mxu0 %v3223
        %3472 = vmatprep.subr.mxu0 0.0
        %3473 = vmatpush2.msra.mxu0 %v3222
        %3474 = vmatprep.subr.mxu0 0.0
        %3475 = vmatpush2.msra.mxu0 %v3221
        %3476 = vmatprep.subr.mxu0 0.0
        %3477 = vmatpush2.msra.mxu0 %v3220
        %3478 = vmatprep.subr.mxu0 0.0
        %3479 = vmatpush2.msra.mxu0 %v3219
        %3480 = vmatprep.subr.mxu0 0.0
        %3481 = vmatpush2.msra.mxu0 %v3218
        %3482 = vmatprep.mubr.f32.mxu0 %v3127
        %3483 = vmatmul.mubr.f32.gmra.mxu0 %v3126
        %v3484 = vpop.f32.mrf.mxu0
        %v3485 = vadd.f32 %v3410, %v3484
        %v3486 = vpop.f32.mrf.mxu0
        %3487 = vmatprep.mubr.f32.mxu0 %v3135
        %3488 = vmatmul.mubr.f32.gmra.mxu0 %v3134
        %v3489 = vpop.f32.mrf.mxu0
        %v3490 = vadd.f32 %v3415, %v3489
        %v3491 = vpop.f32.mrf.mxu0
        %3492 = vdwg.mxu0
        %3493 = vmatprep.subr.mxu0 0.0
        %3494 = vmatpush1.msra.mxu0 %v3249
        %3495 = vmatprep.subr.mxu0 0.0
        %3496 = vmatpush1.msra.mxu0 %v3248
        %3497 = vmatprep.subr.mxu0 0.0
        %3498 = vmatpush1.msra.mxu0 %v3247
        %3499 = vmatprep.subr.mxu0 0.0
        %3500 = vmatpush1.msra.mxu0 %v3246
        %3501 = vmatprep.subr.mxu0 0.0
        %3502 = vmatpush1.msra.mxu0 %v3245
        %3503 = vmatprep.subr.mxu0 0.0
        %3504 = vmatpush1.msra.mxu0 %v3244
        %3505 = vmatprep.subr.mxu0 0.0
        %3506 = vmatpush1.msra.mxu0 %v3243
        %3507 = vmatprep.subr.mxu0 0.0
        %3508 = vmatpush1.msra.mxu0 %v3242
        %3509 = vmatprep.subr.mxu0 0.0
        %3510 = vmatpush1.msra.mxu0 %v3241
        %3511 = vmatprep.subr.mxu0 0.0
        %3512 = vmatpush1.msra.mxu0 %v3240
        %3513 = vmatprep.subr.mxu0 0.0
        %3514 = vmatpush1.msra.mxu0 %v3239
        %3515 = vmatprep.subr.mxu0 0.0
        %3516 = vmatpush1.msra.mxu0 %v3238
        %3517 = vmatprep.subr.mxu0 0.0
        %3518 = vmatpush1.msra.mxu0 %v3237
        %3519 = vmatprep.subr.mxu0 0.0
        %3520 = vmatpush1.msra.mxu0 %v3236
        %3521 = vmatprep.subr.mxu0 0.0
        %3522 = vmatpush1.msra.mxu0 %v3235
        %3523 = vmatprep.subr.mxu0 0.0
        %3524 = vmatpush1.msra.mxu0 %v3234
        %3525 = vmatprep.subr.mxu0 0.0
        %3526 = vmatpush2.msra.mxu0 0.0
        %3527 = vmatprep.subr.mxu0 0.0
        %3528 = vmatpush2.msra.mxu0 0.0
        %3529 = vmatprep.subr.mxu0 0.0
        %3530 = vmatpush2.msra.mxu0 0.0
        %3531 = vmatprep.subr.mxu0 0.0
        %3532 = vmatpush2.msra.mxu0 0.0
        %3533 = vmatprep.subr.mxu0 0.0
        %3534 = vmatpush2.msra.mxu0 0.0
        %3535 = vmatprep.subr.mxu0 0.0
        %3536 = vmatpush2.msra.mxu0 %v3260
        %3537 = vmatprep.subr.mxu0 0.0
        %3538 = vmatpush2.msra.mxu0 %v3259
        %3539 = vmatprep.subr.mxu0 0.0
        %3540 = vmatpush2.msra.mxu0 %v3258
        %3541 = vmatprep.subr.mxu0 0.0
        %3542 = vmatpush2.msra.mxu0 %v3257
        %3543 = vmatprep.subr.mxu0 0.0
        %3544 = vmatpush2.msra.mxu0 %v3256
        %3545 = vmatprep.subr.mxu0 0.0
        %3546 = vmatpush2.msra.mxu0 %v3255
        %3547 = vmatprep.subr.mxu0 0.0
        %3548 = vmatpush2.msra.mxu0 %v3254
        %3549 = vmatprep.subr.mxu0 0.0
        %3550 = vmatpush2.msra.mxu0 %v3253
        %3551 = vmatprep.subr.mxu0 0.0
        %3552 = vmatpush2.msra.mxu0 %v3252
        %3553 = vmatprep.subr.mxu0 0.0
        %3554 = vmatpush2.msra.mxu0 %v3251
        %3555 = vmatprep.subr.mxu0 0.0
        %3556 = vmatpush2.msra.mxu0 %v3250
        %3557 = vmatprep.mubr.f32.mxu0 %v3263
        %3558 = vmatmul.mubr.f32.gmra.mxu0 %v3128
        %v3559 = vpop.f32.mrf.mxu0
        %v3560 = vadd.f32 %v3485, %v3559
        %v3561 = vpop.f32.mrf.mxu0
        %3562 = vmatprep.mubr.f32.mxu0 %v3266
        %3563 = vmatmul.mubr.f32.gmra.mxu0 %v3136
        %v3564 = vpop.f32.mrf.mxu0
        %v3565 = vadd.f32 %v3490, %v3564
        %v3566 = vpop.f32.mrf.mxu0
        %3567 = vdwg.mxu0
        %v3568 = vlaneseq
        %vm3569 = vcmp.ge.s32.totalorder %v3568, 0
        %vm3570 = vcmp.lt.s32.totalorder %v3568, 64
        %vm3571 = vmand %vm3569, %vm3570
        %3572 = vst.msk [vmem:[#allocation8] sm:$0x1] %vm3571, %v3560
        %v3575 = vunpack.c.l.s4 1966171168
        %v3576 = vunpack.c.0.s8 %v3575
        %v3577 = vlaneseq
        %v3578 = vshrl.u32 %v3577, 7
        %v3579 = vsub.s32 %v3576, %v3578
        %v3580 = vrot.slane %v3560, %v3579
        %v3581 = vcombine.high %v3580, %v3580
        %v3583 = vunpack.c.l.s4 1966171168
        %v3584 = vunpack.c.0.s8 %v3583
        %v3585 = vlaneseq
        %v3586 = vshrl.u32 %v3585, 7
        %v3587 = vsub.s32 %v3584, %v3586
        %v3588 = vrot.slane %v3580, %v3587
        %v3590 = vunpack.c.l.s4 1966171168
        %v3591 = vunpack.c.0.s8 %v3590
        %v3592 = vlaneseq
        %v3593 = vshrl.u32 %v3592, 7
        %v3594 = vsub.s32 %v3591, %v3593
        %v3595 = vrot.slane %v3581, %v3594
        %3596 = vrot.lane.b32.xlu0 %v3595, 64
        %v3597 = vpop.permute.xlu0 %3596
        %vm3599 = vcmp.ge.s32.totalorder %v3568, 64
        %vm3600 = vcmp.lt.s32.totalorder %v3568, 128
        %vm3601 = vmand %vm3599, %vm3600
        %3602 = vst.msk [vmem:[#allocation8] sm:$0x1] %vm3601, %v3597
        %v3603 = vcombine.high %v3588, %v3588
        %3605 = vst.msk [vmem:[#allocation8 + $0x1] sm:$0x1] %vm3571, %v3603
        %v3606 = vcombine.high %v3595, %v3595
        %3607 = vrot.lane.b32.xlu0 %v3606, 64
        %v3608 = vpop.permute.xlu0 %3607
        %3610 = vst.msk [vmem:[#allocation8 + $0x1] sm:$0x1] %vm3601, %v3608
        %v3611 = vcombine.high %v3560, %v3560
        %v3613 = vunpack.c.l.s4 1966171168
        %v3614 = vunpack.c.0.s8 %v3613
        %v3615 = vlaneseq
        %v3616 = vshrl.u32 %v3615, 7
        %v3617 = vsub.s32 %v3614, %v3616
        %v3618 = vrot.slane %v3611, %v3617
        %v3620 = vunpack.c.l.s4 1966171168
        %v3621 = vunpack.c.0.s8 %v3620
        %v3622 = vlaneseq
        %v3623 = vshrl.u32 %v3622, 7
        %v3624 = vsub.s32 %v3621, %v3623
        %v3625 = vrot.slane %v3618, %v3624
        %3627 = vst.msk [vmem:[#allocation8 + $0x2] sm:$0x1] %vm3571, %v3625
        %v3628 = vcombine.high %v3618, %v3618
        %v3630 = vunpack.c.l.s4 1966171168
        %v3631 = vunpack.c.0.s8 %v3630
        %v3632 = vlaneseq
        %v3633 = vshrl.u32 %v3632, 7
        %v3634 = vsub.s32 %v3631, %v3633
        %v3635 = vrot.slane %v3628, %v3634
        %3636 = vrot.lane.b32.xlu0 %v3635, 64
        %v3637 = vpop.permute.xlu0 %3636
        %3639 = vst.msk [vmem:[#allocation8 + $0x2] sm:$0x1] %vm3601, %v3637
        %v3640 = vcombine.high %v3625, %v3625
        %3642 = vst.msk [vmem:[#allocation8 + $0x3] sm:$0x1] %vm3571, %v3640
        %v3643 = vcombine.high %v3635, %v3635
        %3644 = vrot.lane.b32.xlu0 %v3643, 64
        %v3645 = vpop.permute.xlu0 %3644
        %3647 = vst.msk [vmem:[#allocation8 + $0x3] sm:$0x1] %vm3601, %v3645
        %3648 = vst.msk [vmem:[#allocation8 + $0x4] sm:$0x1] %vm3571, %v3565
        %v3651 = vunpack.c.l.s4 1966171168
        %v3652 = vunpack.c.0.s8 %v3651
        %v3653 = vlaneseq
        %v3654 = vshrl.u32 %v3653, 7
        %v3655 = vsub.s32 %v3652, %v3654
        %v3656 = vrot.slane %v3565, %v3655
        %v3657 = vcombine.high %v3656, %v3656
        %v3659 = vunpack.c.l.s4 1966171168
        %v3660 = vunpack.c.0.s8 %v3659
        %v3661 = vlaneseq
        %v3662 = vshrl.u32 %v3661, 7
        %v3663 = vsub.s32 %v3660, %v3662
        %v3664 = vrot.slane %v3656, %v3663
        %v3666 = vunpack.c.l.s4 1966171168
        %v3667 = vunpack.c.0.s8 %v3666
        %v3668 = vlaneseq
        %v3669 = vshrl.u32 %v3668, 7
        %v3670 = vsub.s32 %v3667, %v3669
        %v3671 = vrot.slane %v3657, %v3670
        %3672 = vrot.lane.b32.xlu0 %v3671, 64
        %v3673 = vpop.permute.xlu0 %3672
        %3675 = vst.msk [vmem:[#allocation8 + $0x4] sm:$0x1] %vm3601, %v3673
        %v3676 = vcombine.high %v3664, %v3664
        %3678 = vst.msk [vmem:[#allocation8 + $0x5] sm:$0x1] %vm3571, %v3676
        %v3679 = vcombine.high %v3671, %v3671
        %3680 = vrot.lane.b32.xlu0 %v3679, 64
        %v3681 = vpop.permute.xlu0 %3680
        %3683 = vst.msk [vmem:[#allocation8 + $0x5] sm:$0x1] %vm3601, %v3681
        %v3684 = vcombine.high %v3565, %v3565
        %v3686 = vunpack.c.l.s4 1966171168
        %v3687 = vunpack.c.0.s8 %v3686
        %v3688 = vlaneseq
        %v3689 = vshrl.u32 %v3688, 7
        %v3690 = vsub.s32 %v3687, %v3689
        %v3691 = vrot.slane %v3684, %v3690
        %v3693 = vunpack.c.l.s4 1966171168
        %v3694 = vunpack.c.0.s8 %v3693
        %v3695 = vlaneseq
        %v3696 = vshrl.u32 %v3695, 7
        %v3697 = vsub.s32 %v3694, %v3696
        %v3698 = vrot.slane %v3691, %v3697
        %3700 = vst.msk [vmem:[#allocation8 + $0x6] sm:$0x1] %vm3571, %v3698
        %v3701 = vcombine.high %v3691, %v3691
        %v3703 = vunpack.c.l.s4 1966171168
        %v3704 = vunpack.c.0.s8 %v3703
        %v3705 = vlaneseq
        %v3706 = vshrl.u32 %v3705, 7
        %v3707 = vsub.s32 %v3704, %v3706
        %v3708 = vrot.slane %v3701, %v3707
        %3709 = vrot.lane.b32.xlu0 %v3708, 64
        %v3710 = vpop.permute.xlu0 %3709
        %3712 = vst.msk [vmem:[#allocation8 + $0x6] sm:$0x1] %vm3601, %v3710
        %v3713 = vcombine.high %v3698, %v3698
        %3715 = vst.msk [vmem:[#allocation8 + $0x7] sm:$0x1] %vm3571, %v3713
        %v3716 = vcombine.high %v3708, %v3708
        %3717 = vrot.lane.b32.xlu0 %v3716, 64
        %v3718 = vpop.permute.xlu0 %3717
        %3720 = vst.msk [vmem:[#allocation8 + $0x7] sm:$0x1] %vm3601, %v3718
        %v3721 = vld [vmem:[#allocation8] sm:$0xff]
        %v3722 = vld [vmem:[%s5] sm:$0xff]
        %v3723 = vld [vmem:[%s5 + $0x8] sm:$0xff]
        %v3724 = vld [vmem:[%s5 + $0x10] sm:$0xff]
        %v3725 = vld [vmem:[%s5 + $0x18] sm:$0xff]
        %v3726 = vld [vmem:[%s5 + $0x20] sm:$0xff]
        %v3727 = vld [vmem:[%s5 + $0x28] sm:$0xff]
        %v3728 = vld [vmem:[%s5 + $0x30] sm:$0xff]
        %v3729 = vld [vmem:[%s5 + $0x38] sm:$0xff]
        %v3730 = vld [vmem:[%s5 + $0x40] sm:$0xff]
        %v3731 = vld [vmem:[%s5 + $0x48] sm:$0xff]
        %v3732 = vld [vmem:[%s5 + $0x50] sm:$0xff]
        %v3733 = vld [vmem:[%s5 + $0x58] sm:$0xff]
        %v3734 = vld [vmem:[%s5 + $0x60] sm:$0xff]
        %v3735 = vld [vmem:[%s5 + $0x68] sm:$0xff]
        %v3736 = vld [vmem:[%s5 + $0x70] sm:$0xff]
        %v3737 = vld [vmem:[%s5 + $0x78] sm:$0xff]
        %v3738 = vld [vmem:[%s5 + $0x80] sm:$0xff]
        %v3739 = vld [vmem:[%s5 + $0x88] sm:$0xff]
        %v3740 = vld [vmem:[%s5 + $0x90] sm:$0xff]
        %v3741 = vld [vmem:[%s5 + $0x98] sm:$0xff]
        %v3742 = vld [vmem:[%s5 + $0xa0] sm:$0xff]
        %v3743 = vld [vmem:[%s5 + $0xa8] sm:$0xff]
        %v3744 = vld [vmem:[%s5 + $0xb0] sm:$0xff]
        %v3745 = vld [vmem:[%s5 + $0xb8] sm:$0xff]
        %v3746 = vld [vmem:[%s5 + $0xc0] sm:$0xff]
        %v3747 = vld [vmem:[%s5 + $0xc8] sm:$0xff]
        %v3748 = vld [vmem:[%s5 + $0xd0] sm:$0xff]
        %v3749 = vld [vmem:[%s5 + $0xd8] sm:$0xff]
        %v3750 = vld [vmem:[%s5 + $0xe0] sm:$0xff]
        %v3751 = vld [vmem:[%s5 + $0xe8] sm:$0xff]
        %v3752 = vld [vmem:[%s5 + $0xf0] sm:$0xff]
        %v3753 = vld [vmem:[%s5 + $0xf8] sm:$0xff]
        %v3754 = vld [vmem:[%s5 + $0x100] sm:$0xff]
        %v3755 = vld [vmem:[%s5 + $0x108] sm:$0xff]
        %v3756 = vld [vmem:[%s5 + $0x110] sm:$0xff]
        %v3757 = vld [vmem:[%s5 + $0x118] sm:$0xff]
        %v3758 = vld [vmem:[%s5 + $0x120] sm:$0xff]
        %v3759 = vld [vmem:[%s5 + $0x128] sm:$0xff]
        %v3760 = vld [vmem:[%s5 + $0x130] sm:$0xff]
        %v3761 = vld [vmem:[%s5 + $0x138] sm:$0xff]
        %v3762 = vld [vmem:[%s5 + $0x140] sm:$0xff]
        %v3763 = vld [vmem:[%s5 + $0x148] sm:$0xff]
        %v3764 = vld [vmem:[%s5 + $0x150] sm:$0xff]
        %v3765 = vld [vmem:[%s5 + $0x158] sm:$0xff]
        %v3766 = vld [vmem:[%s5 + $0x160] sm:$0xff]
        %v3767 = vld [vmem:[%s5 + $0x168] sm:$0xff]
        %v3768 = vld [vmem:[%s5 + $0x170] sm:$0xff]
        %v3769 = vld [vmem:[%s5 + $0x178] sm:$0xff]
        %v3770 = vld [vmem:[%s5 + $0x180] sm:$0xff]
        %v3771 = vld [vmem:[%s5 + $0x188] sm:$0xff]
        %v3772 = vld [vmem:[%s5 + $0x190] sm:$0xff]
        %v3773 = vld [vmem:[%s5 + $0x198] sm:$0xff]
        %v3774 = vld [vmem:[%s5 + $0x1a0] sm:$0xff]
        %v3775 = vld [vmem:[%s5 + $0x1a8] sm:$0xff]
        %v3776 = vld [vmem:[%s5 + $0x1b0] sm:$0xff]
        %v3777 = vld [vmem:[%s5 + $0x1b8] sm:$0xff]
        %v3778 = vld [vmem:[%s5 + $0x1c0] sm:$0xff]
        %v3779 = vld [vmem:[%s5 + $0x1c8] sm:$0xff]
        %v3780 = vld [vmem:[%s5 + $0x1d0] sm:$0xff]
        %v3781 = vld [vmem:[%s5 + $0x1d8] sm:$0xff]
        %v3782 = vld [vmem:[%s5 + $0x1e0] sm:$0xff]
        %v3783 = vld [vmem:[%s5 + $0x1e8] sm:$0xff]
        %v3784 = vld [vmem:[%s5 + $0x1f0] sm:$0xff]
        %v3785 = vld [vmem:[%s5 + $0x1f8] sm:$0xff]
        %v3786 = vld [vmem:[%s5 + $0x200] sm:$0xff]
        %v3787 = vld [vmem:[%s5 + $0x208] sm:$0xff]
        %v3788 = vld [vmem:[%s5 + $0x210] sm:$0xff]
        %v3789 = vld [vmem:[%s5 + $0x218] sm:$0xff]
        %v3790 = vld [vmem:[%s5 + $0x220] sm:$0xff]
        %v3791 = vld [vmem:[%s5 + $0x228] sm:$0xff]
        %v3792 = vld [vmem:[%s5 + $0x230] sm:$0xff]
        %v3793 = vld [vmem:[%s5 + $0x238] sm:$0xff]
        %v3794 = vld [vmem:[%s5 + $0x240] sm:$0xff]
        %v3795 = vld [vmem:[%s5 + $0x248] sm:$0xff]
        %v3796 = vld [vmem:[%s5 + $0x250] sm:$0xff]
        %v3797 = vld [vmem:[%s5 + $0x258] sm:$0xff]
        %v3798 = vld [vmem:[%s5 + $0x260] sm:$0xff]
        %v3799 = vld [vmem:[%s5 + $0x268] sm:$0xff]
        %v3800 = vld [vmem:[%s5 + $0x270] sm:$0xff]
        %v3801 = vld [vmem:[%s5 + $0x278] sm:$0xff]
        %v3802 = vld [vmem:[%s5 + $0x280] sm:$0xff]
        %v3803 = vld [vmem:[%s5 + $0x288] sm:$0xff]
        %v3804 = vld [vmem:[%s5 + $0x290] sm:$0xff]
        %v3805 = vld [vmem:[%s5 + $0x298] sm:$0xff]
        %v3806 = vld [vmem:[%s5 + $0x2a0] sm:$0xff]
        %v3807 = vld [vmem:[%s5 + $0x2a8] sm:$0xff]
        %v3808 = vld [vmem:[%s5 + $0x2b0] sm:$0xff]
        %v3809 = vld [vmem:[%s5 + $0x2b8] sm:$0xff]
        %v3810 = vld [vmem:[%s5 + $0x2c0] sm:$0xff]
        %v3811 = vld [vmem:[%s5 + $0x2c8] sm:$0xff]
        %v3812 = vld [vmem:[%s5 + $0x2d0] sm:$0xff]
        %v3813 = vld [vmem:[%s5 + $0x2d8] sm:$0xff]
        %v3814 = vld [vmem:[%s5 + $0x2e0] sm:$0xff]
        %v3815 = vld [vmem:[%s5 + $0x2e8] sm:$0xff]
        %v3816 = vld [vmem:[%s5 + $0x2f0] sm:$0xff]
        %v3817 = vld [vmem:[%s5 + $0x2f8] sm:$0xff]
        %v3818 = vld [vmem:[%s5 + $0x300] sm:$0xff]
        %v3819 = vld [vmem:[%s5 + $0x308] sm:$0xff]
        %v3820 = vld [vmem:[%s5 + $0x310] sm:$0xff]
        %v3821 = vld [vmem:[%s5 + $0x318] sm:$0xff]
        %v3822 = vld [vmem:[%s5 + $0x320] sm:$0xff]
        %v3823 = vld [vmem:[%s5 + $0x328] sm:$0xff]
        %v3824 = vld [vmem:[%s5 + $0x330] sm:$0xff]
        %v3825 = vld [vmem:[%s5 + $0x338] sm:$0xff]
        %v3826 = vld [vmem:[%s5 + $0x340] sm:$0xff]
        %v3827 = vld [vmem:[%s5 + $0x348] sm:$0xff]
        %v3828 = vld [vmem:[%s5 + $0x350] sm:$0xff]
        %v3829 = vld [vmem:[%s5 + $0x358] sm:$0xff]
        %v3830 = vld [vmem:[%s5 + $0x360] sm:$0xff]
        %v3831 = vld [vmem:[%s5 + $0x368] sm:$0xff]
        %v3832 = vld [vmem:[%s5 + $0x370] sm:$0xff]
        %v3833 = vld [vmem:[%s5 + $0x378] sm:$0xff]
        %v3834 = vld [vmem:[%s5 + $0x380] sm:$0xff]
        %v3835 = vld [vmem:[%s5 + $0x388] sm:$0xff]
        %v3836 = vld [vmem:[%s5 + $0x390] sm:$0xff]
        %v3837 = vld [vmem:[%s5 + $0x398] sm:$0xff]
        %v3838 = vld [vmem:[%s5 + $0x3a0] sm:$0xff]
        %v3839 = vld [vmem:[%s5 + $0x3a8] sm:$0xff]
        %v3840 = vld [vmem:[%s5 + $0x3b0] sm:$0xff]
        %v3841 = vld [vmem:[%s5 + $0x3b8] sm:$0xff]
        %v3842 = vld [vmem:[%s5 + $0x3c0] sm:$0xff]
        %v3843 = vld [vmem:[%s5 + $0x3c8] sm:$0xff]
        %v3844 = vld [vmem:[%s5 + $0x3d0] sm:$0xff]
        %v3845 = vld [vmem:[%s5 + $0x3d8] sm:$0xff]
        %v3846 = vld [vmem:[%s5 + $0x3e0] sm:$0xff]
        %v3847 = vld [vmem:[%s5 + $0x3e8] sm:$0xff]
        %v3848 = vld [vmem:[%s5 + $0x3f0] sm:$0xff]
        %v3849 = vld [vmem:[%s5 + $0x3f8] sm:$0xff]
        %v3850 = vld [vmem:[%s6] sm:$0x1]
        %v3852 = vlaneseq
        %v3853 = vshrl.u32 %v3852, 7
        %v3854 = vsub.s32 0, %v3853
        %v3855 = vrot.slane %v3721, %v3854
        %v3856 = vlaneseq
        %v3857 = vshrl.u32 %v3856, 7
        %v3858 = vsub.s32 1, %v3857
        %v3859 = vrot.slane %v3721, %v3858
        %v3860 = vlaneseq
        %v3861 = vshrl.u32 %v3860, 7
        %v3862 = vsub.s32 2, %v3861
        %v3863 = vrot.slane %v3721, %v3862
        %v3864 = vlaneseq
        %v3865 = vshrl.u32 %v3864, 7
        %v3866 = vsub.s32 3, %v3865
        %v3867 = vrot.slane %v3721, %v3866
        %v3868 = vlaneseq
        %v3869 = vshrl.u32 %v3868, 7
        %v3870 = vsub.s32 4, %v3869
        %v3871 = vrot.slane %v3721, %v3870
        %v3872 = vlaneseq
        %v3873 = vshrl.u32 %v3872, 7
        %v3874 = vsub.s32 5, %v3873
        %v3875 = vrot.slane %v3721, %v3874
        %v3876 = vlaneseq
        %v3877 = vshrl.u32 %v3876, 7
        %v3878 = vsub.s32 6, %v3877
        %v3879 = vrot.slane %v3721, %v3878
        %v3880 = vlaneseq
        %v3881 = vshrl.u32 %v3880, 7
        %v3882 = vsub.s32 7, %v3881
        %v3883 = vrot.slane %v3721, %v3882
        %3892 = vmatprep.subr.mxu0 0.0
        %3893 = vmatpush1.msra.mxu0 %v3737
        %3894 = vmatprep.subr.mxu0 0.0
        %3895 = vmatpush1.msra.mxu0 %v3736
        %3896 = vmatprep.subr.mxu0 0.0
        %3897 = vmatpush1.msra.mxu0 %v3735
        %3898 = vmatprep.subr.mxu0 0.0
        %3899 = vmatpush1.msra.mxu0 %v3734
        %3900 = vmatprep.subr.mxu0 0.0
        %3901 = vmatpush1.msra.mxu0 %v3733
        %3902 = vmatprep.subr.mxu0 0.0
        %3903 = vmatpush1.msra.mxu0 %v3732
        %3904 = vmatprep.subr.mxu0 0.0
        %3905 = vmatpush1.msra.mxu0 %v3731
        %3906 = vmatprep.subr.mxu0 0.0
        %3907 = vmatpush1.msra.mxu0 %v3730
        %3908 = vmatprep.subr.mxu0 0.0
        %3909 = vmatpush1.msra.mxu0 %v3729
        %3910 = vmatprep.subr.mxu0 0.0
        %3911 = vmatpush1.msra.mxu0 %v3728
        %3912 = vmatprep.subr.mxu0 0.0
        %3913 = vmatpush1.msra.mxu0 %v3727
        %3914 = vmatprep.subr.mxu0 0.0
        %3915 = vmatpush1.msra.mxu0 %v3726
        %3916 = vmatprep.subr.mxu0 0.0
        %3917 = vmatpush1.msra.mxu0 %v3725
        %3918 = vmatprep.subr.mxu0 0.0
        %3919 = vmatpush1.msra.mxu0 %v3724
        %3920 = vmatprep.subr.mxu0 0.0
        %3921 = vmatpush1.msra.mxu0 %v3723
        %3922 = vmatprep.subr.mxu0 0.0
        %3923 = vmatpush1.msra.mxu0 %v3722
        %3924 = vmatprep.subr.mxu0 0.0
        %3925 = vmatpush2.msra.mxu0 %v3753
        %3926 = vmatprep.subr.mxu0 0.0
        %3927 = vmatpush2.msra.mxu0 %v3752
        %3928 = vmatprep.subr.mxu0 0.0
        %3929 = vmatpush2.msra.mxu0 %v3751
        %3930 = vmatprep.subr.mxu0 0.0
        %3931 = vmatpush2.msra.mxu0 %v3750
        %3932 = vmatprep.subr.mxu0 0.0
        %3933 = vmatpush2.msra.mxu0 %v3749
        %3934 = vmatprep.subr.mxu0 0.0
        %3935 = vmatpush2.msra.mxu0 %v3748
        %3936 = vmatprep.subr.mxu0 0.0
        %3937 = vmatpush2.msra.mxu0 %v3747
        %3938 = vmatprep.subr.mxu0 0.0
        %3939 = vmatpush2.msra.mxu0 %v3746
        %3940 = vmatprep.subr.mxu0 0.0
        %3941 = vmatpush2.msra.mxu0 %v3745
        %3942 = vmatprep.subr.mxu0 0.0
        %3943 = vmatpush2.msra.mxu0 %v3744
        %3944 = vmatprep.subr.mxu0 0.0
        %3945 = vmatpush2.msra.mxu0 %v3743
        %3946 = vmatprep.subr.mxu0 0.0
        %3947 = vmatpush2.msra.mxu0 %v3742
        %3948 = vmatprep.subr.mxu0 0.0
        %3949 = vmatpush2.msra.mxu0 %v3741
        %3950 = vmatprep.subr.mxu0 0.0
        %3951 = vmatpush2.msra.mxu0 %v3740
        %3952 = vmatprep.subr.mxu0 0.0
        %3953 = vmatpush2.msra.mxu0 %v3739
        %3954 = vmatprep.subr.mxu0 0.0
        %3955 = vmatpush2.msra.mxu0 %v3738
        %3956 = vmatprep.mubr.f32.mxu0 %v3859
        %3957 = vmatmul.mubr.f32.gmra.mxu0 %v3855
        %v3958 = vpop.f32.mrf.mxu0
        %v3959 = vadd.f32 %v3850, %v3958
        %v3960 = vpop.f32.mrf.mxu0
        %3961 = vdwg.mxu0
        %3962 = vmatprep.subr.mxu0 0.0
        %3963 = vmatpush1.msra.mxu0 %v3769
        %3964 = vmatprep.subr.mxu0 0.0
        %3965 = vmatpush1.msra.mxu0 %v3768
        %3966 = vmatprep.subr.mxu0 0.0
        %3967 = vmatpush1.msra.mxu0 %v3767
        %3968 = vmatprep.subr.mxu0 0.0
        %3969 = vmatpush1.msra.mxu0 %v3766
        %3970 = vmatprep.subr.mxu0 0.0
        %3971 = vmatpush1.msra.mxu0 %v3765
        %3972 = vmatprep.subr.mxu0 0.0
        %3973 = vmatpush1.msra.mxu0 %v3764
        %3974 = vmatprep.subr.mxu0 0.0
        %3975 = vmatpush1.msra.mxu0 %v3763
        %3976 = vmatprep.subr.mxu0 0.0
        %3977 = vmatpush1.msra.mxu0 %v3762
        %3978 = vmatprep.subr.mxu0 0.0
        %3979 = vmatpush1.msra.mxu0 %v3761
        %3980 = vmatprep.subr.mxu0 0.0
        %3981 = vmatpush1.msra.mxu0 %v3760
        %3982 = vmatprep.subr.mxu0 0.0
        %3983 = vmatpush1.msra.mxu0 %v3759
        %3984 = vmatprep.subr.mxu0 0.0
        %3985 = vmatpush1.msra.mxu0 %v3758
        %3986 = vmatprep.subr.mxu0 0.0
        %3987 = vmatpush1.msra.mxu0 %v3757
        %3988 = vmatprep.subr.mxu0 0.0
        %3989 = vmatpush1.msra.mxu0 %v3756
        %3990 = vmatprep.subr.mxu0 0.0
        %3991 = vmatpush1.msra.mxu0 %v3755
        %3992 = vmatprep.subr.mxu0 0.0
        %3993 = vmatpush1.msra.mxu0 %v3754
        %3994 = vmatprep.subr.mxu0 0.0
        %3995 = vmatpush2.msra.mxu0 %v3785
        %3996 = vmatprep.subr.mxu0 0.0
        %3997 = vmatpush2.msra.mxu0 %v3784
        %3998 = vmatprep.subr.mxu0 0.0
        %3999 = vmatpush2.msra.mxu0 %v3783
        %4000 = vmatprep.subr.mxu0 0.0
        %4001 = vmatpush2.msra.mxu0 %v3782
        %4002 = vmatprep.subr.mxu0 0.0
        %4003 = vmatpush2.msra.mxu0 %v3781
        %4004 = vmatprep.subr.mxu0 0.0
        %4005 = vmatpush2.msra.mxu0 %v3780
        %4006 = vmatprep.subr.mxu0 0.0
        %4007 = vmatpush2.msra.mxu0 %v3779
        %4008 = vmatprep.subr.mxu0 0.0
        %4009 = vmatpush2.msra.mxu0 %v3778
        %4010 = vmatprep.subr.mxu0 0.0
        %4011 = vmatpush2.msra.mxu0 %v3777
        %4012 = vmatprep.subr.mxu0 0.0
        %4013 = vmatpush2.msra.mxu0 %v3776
        %4014 = vmatprep.subr.mxu0 0.0
        %4015 = vmatpush2.msra.mxu0 %v3775
        %4016 = vmatprep.subr.mxu0 0.0
        %4017 = vmatpush2.msra.mxu0 %v3774
        %4018 = vmatprep.subr.mxu0 0.0
        %4019 = vmatpush2.msra.mxu0 %v3773
        %4020 = vmatprep.subr.mxu0 0.0
        %4021 = vmatpush2.msra.mxu0 %v3772
        %4022 = vmatprep.subr.mxu0 0.0
        %4023 = vmatpush2.msra.mxu0 %v3771
        %4024 = vmatprep.subr.mxu0 0.0
        %4025 = vmatpush2.msra.mxu0 %v3770
        %4026 = vmatprep.mubr.f32.mxu0 %v3867
        %4027 = vmatmul.mubr.f32.gmra.mxu0 %v3863
        %v4028 = vpop.f32.mrf.mxu0
        %v4029 = vadd.f32 %v3959, %v4028
        %v4030 = vpop.f32.mrf.mxu0
        %4031 = vdwg.mxu0
        %4032 = vmatprep.subr.mxu0 0.0
        %4033 = vmatpush1.msra.mxu0 %v3801
        %4034 = vmatprep.subr.mxu0 0.0
        %4035 = vmatpush1.msra.mxu0 %v3800
        %4036 = vmatprep.subr.mxu0 0.0
        %4037 = vmatpush1.msra.mxu0 %v3799
        %4038 = vmatprep.subr.mxu0 0.0
        %4039 = vmatpush1.msra.mxu0 %v3798
        %4040 = vmatprep.subr.mxu0 0.0
        %4041 = vmatpush1.msra.mxu0 %v3797
        %4042 = vmatprep.subr.mxu0 0.0
        %4043 = vmatpush1.msra.mxu0 %v3796
        %4044 = vmatprep.subr.mxu0 0.0
        %4045 = vmatpush1.msra.mxu0 %v3795
        %4046 = vmatprep.subr.mxu0 0.0
        %4047 = vmatpush1.msra.mxu0 %v3794
        %4048 = vmatprep.subr.mxu0 0.0
        %4049 = vmatpush1.msra.mxu0 %v3793
        %4050 = vmatprep.subr.mxu0 0.0
        %4051 = vmatpush1.msra.mxu0 %v3792
        %4052 = vmatprep.subr.mxu0 0.0
        %4053 = vmatpush1.msra.mxu0 %v3791
        %4054 = vmatprep.subr.mxu0 0.0
        %4055 = vmatpush1.msra.mxu0 %v3790
        %4056 = vmatprep.subr.mxu0 0.0
        %4057 = vmatpush1.msra.mxu0 %v3789
        %4058 = vmatprep.subr.mxu0 0.0
        %4059 = vmatpush1.msra.mxu0 %v3788
        %4060 = vmatprep.subr.mxu0 0.0
        %4061 = vmatpush1.msra.mxu0 %v3787
        %4062 = vmatprep.subr.mxu0 0.0
        %4063 = vmatpush1.msra.mxu0 %v3786
        %4064 = vmatprep.subr.mxu0 0.0
        %4065 = vmatpush2.msra.mxu0 %v3817
        %4066 = vmatprep.subr.mxu0 0.0
        %4067 = vmatpush2.msra.mxu0 %v3816
        %4068 = vmatprep.subr.mxu0 0.0
        %4069 = vmatpush2.msra.mxu0 %v3815
        %4070 = vmatprep.subr.mxu0 0.0
        %4071 = vmatpush2.msra.mxu0 %v3814
        %4072 = vmatprep.subr.mxu0 0.0
        %4073 = vmatpush2.msra.mxu0 %v3813
        %4074 = vmatprep.subr.mxu0 0.0
        %4075 = vmatpush2.msra.mxu0 %v3812
        %4076 = vmatprep.subr.mxu0 0.0
        %4077 = vmatpush2.msra.mxu0 %v3811
        %4078 = vmatprep.subr.mxu0 0.0
        %4079 = vmatpush2.msra.mxu0 %v3810
        %4080 = vmatprep.subr.mxu0 0.0
        %4081 = vmatpush2.msra.mxu0 %v3809
        %4082 = vmatprep.subr.mxu0 0.0
        %4083 = vmatpush2.msra.mxu0 %v3808
        %4084 = vmatprep.subr.mxu0 0.0
        %4085 = vmatpush2.msra.mxu0 %v3807
        %4086 = vmatprep.subr.mxu0 0.0
        %4087 = vmatpush2.msra.mxu0 %v3806
        %4088 = vmatprep.subr.mxu0 0.0
        %4089 = vmatpush2.msra.mxu0 %v3805
        %4090 = vmatprep.subr.mxu0 0.0
        %4091 = vmatpush2.msra.mxu0 %v3804
        %4092 = vmatprep.subr.mxu0 0.0
        %4093 = vmatpush2.msra.mxu0 %v3803
        %4094 = vmatprep.subr.mxu0 0.0
        %4095 = vmatpush2.msra.mxu0 %v3802
        %4096 = vmatprep.mubr.f32.mxu0 %v3875
        %4097 = vmatmul.mubr.f32.gmra.mxu0 %v3871
        %v4098 = vpop.f32.mrf.mxu0
        %v4099 = vadd.f32 %v4029, %v4098
        %v4100 = vpop.f32.mrf.mxu0
        %4101 = vdwg.mxu0
        %4102 = vmatprep.subr.mxu0 0.0
        %4103 = vmatpush1.msra.mxu0 %v3833
        %4104 = vmatprep.subr.mxu0 0.0
        %4105 = vmatpush1.msra.mxu0 %v3832
        %4106 = vmatprep.subr.mxu0 0.0
        %4107 = vmatpush1.msra.mxu0 %v3831
        %4108 = vmatprep.subr.mxu0 0.0
        %4109 = vmatpush1.msra.mxu0 %v3830
        %4110 = vmatprep.subr.mxu0 0.0
        %4111 = vmatpush1.msra.mxu0 %v3829
        %4112 = vmatprep.subr.mxu0 0.0
        %4113 = vmatpush1.msra.mxu0 %v3828
        %4114 = vmatprep.subr.mxu0 0.0
        %4115 = vmatpush1.msra.mxu0 %v3827
        %4116 = vmatprep.subr.mxu0 0.0
        %4117 = vmatpush1.msra.mxu0 %v3826
        %4118 = vmatprep.subr.mxu0 0.0
        %4119 = vmatpush1.msra.mxu0 %v3825
        %4120 = vmatprep.subr.mxu0 0.0
        %4121 = vmatpush1.msra.mxu0 %v3824
        %4122 = vmatprep.subr.mxu0 0.0
        %4123 = vmatpush1.msra.mxu0 %v3823
        %4124 = vmatprep.subr.mxu0 0.0
        %4125 = vmatpush1.msra.mxu0 %v3822
        %4126 = vmatprep.subr.mxu0 0.0
        %4127 = vmatpush1.msra.mxu0 %v3821
        %4128 = vmatprep.subr.mxu0 0.0
        %4129 = vmatpush1.msra.mxu0 %v3820
        %4130 = vmatprep.subr.mxu0 0.0
        %4131 = vmatpush1.msra.mxu0 %v3819
        %4132 = vmatprep.subr.mxu0 0.0
        %4133 = vmatpush1.msra.mxu0 %v3818
        %4134 = vmatprep.subr.mxu0 0.0
        %4135 = vmatpush2.msra.mxu0 %v3849
        %4136 = vmatprep.subr.mxu0 0.0
        %4137 = vmatpush2.msra.mxu0 %v3848
        %4138 = vmatprep.subr.mxu0 0.0
        %4139 = vmatpush2.msra.mxu0 %v3847
        %4140 = vmatprep.subr.mxu0 0.0
        %4141 = vmatpush2.msra.mxu0 %v3846
        %4142 = vmatprep.subr.mxu0 0.0
        %4143 = vmatpush2.msra.mxu0 %v3845
        %4144 = vmatprep.subr.mxu0 0.0
        %4145 = vmatpush2.msra.mxu0 %v3844
        %4146 = vmatprep.subr.mxu0 0.0
        %4147 = vmatpush2.msra.mxu0 %v3843
        %4148 = vmatprep.subr.mxu0 0.0
        %4149 = vmatpush2.msra.mxu0 %v3842
        %4150 = vmatprep.subr.mxu0 0.0
        %4151 = vmatpush2.msra.mxu0 %v3841
        %4152 = vmatprep.subr.mxu0 0.0
        %4153 = vmatpush2.msra.mxu0 %v3840
        %4154 = vmatprep.subr.mxu0 0.0
        %4155 = vmatpush2.msra.mxu0 %v3839
        %4156 = vmatprep.subr.mxu0 0.0
        %4157 = vmatpush2.msra.mxu0 %v3838
        %4158 = vmatprep.subr.mxu0 0.0
        %4159 = vmatpush2.msra.mxu0 %v3837
        %4160 = vmatprep.subr.mxu0 0.0
        %4161 = vmatpush2.msra.mxu0 %v3836
        %4162 = vmatprep.subr.mxu0 0.0
        %4163 = vmatpush2.msra.mxu0 %v3835
        %4164 = vmatprep.subr.mxu0 0.0
        %4165 = vmatpush2.msra.mxu0 %v3834
        %4166 = vmatprep.mubr.f32.mxu0 %v3883
        %4167 = vmatmul.mubr.f32.gmra.mxu0 %v3879
        %v4168 = vpop.f32.mrf.mxu0
        %v4169 = vadd.f32 %v4099, %v4168
        %v4170 = vpop.f32.mrf.mxu0
        %4171 = vdwg.mxu0
        %vm4172 = vcmask 73728
        %4173 = vst.msk [vmem:[%s324] sm:$0x1] %vm4172, %v4169
        %s4174 = sand.u32 %s225, 1
        %s4175 = scalar_lea.sflag [#allocation10], %s4174
        %s4176 = sand.u32 %s225, 1
        %s4177 = scalar_lea.vmem [#allocation9], %s4176
        // Predicated region
        $region57: #{cnn_forward.1} parent=55 // pred_check
          %p4178 = pneg %p235
        $region58: #{cnn_forward.1} parent=55 // pred_check_branch
          %4180 = sbr.rel (%p4178) target = $region60
        $region59: #{cnn_forward.1} parent=55 // pred_region
          %s4182 = ssub.s32 16, 16
          %4183 = vsyncadd %s4175, %s4182
          %s4184 = smul.addr %s23, 16
          %s4185 = scalar_lea.hbm %s9, %s4184
          %s4187 = sshll.u32 %s4177, 4
          %s4188 = int_to_ptr.vmem [resolvable:$true] %s4187
          %4190 = dma.vmem_to_hbm [thread:$0]  %s4188, 16, %s4185, %s4175
        $region60: #{cnn_forward.1} parent=55 // pred_fallthru
          _
      $region56: #{cnn_forward.1} parent=5 // pred_fallthru
        _
      %p4191 = scmp.le.s32.totalorder 2, %s18
      // Predicated region
      $region61: #{cnn_forward.1} parent=5 // pred_check
        %p4192 = pneg %p4191
      $region62: #{cnn_forward.1} parent=5 // pred_check_branch
        %4194 = sbr.rel (%p4192) target = $region64
      $region63: #{cnn_forward.1} parent=5 // pred_region
        %s4195 = ssub.s32 %s18, 2
        // Predicated region
        $region65: #{cnn_forward.1} parent=63 // pred_check
          %p4196 = pneg %p241
        $region66: #{cnn_forward.1} parent=63 // pred_check_branch
          %4198 = sbr.rel (%p4196) target = $region68
        $region67: #{cnn_forward.1} parent=63 // pred_region
          %s4199 = sand.u32 %s226, 1
          %s4200 = scalar_lea.sflag [#allocation10], %s4199
          %s4201 = sand.u32 %s226, 1
          %s4202 = scalar_lea.vmem [#allocation9], %s4201
          %4203 = dma.done %s4200, 16
        $region68: #{cnn_forward.1} parent=63 // pred_fallthru
          _
      $region64: #{cnn_forward.1} parent=5 // pred_fallthru
        _
    $region6: #{cnn_forward.1} parent=1 // loop_footer
      %s22 = sadd.s32 1, %s18
    $region7: #{cnn_forward.1} parent=1 // loop_footer_branch
      %17 = sbr.rel target = $region3
    $region8: #{cnn_forward.1} parent=1 // loop_exit
      _
    %4204 = vsyncpa [#allocation10], 1
    %s4205 = scalar_lea.sflag [#allocation10], 1
    %4206 = vsyncpa %s4205, 1

</llo_original>
